<compile_context>
chip_gen: v7x
topology: tpu7x:2x2x1
jax: 0.10.0
libtpu: 0.0.40
codegen_flags: <defaults>
</compile_context>

<pallas_src>
import functools

import jax
import jax.numpy as jnp
from jax import lax
from jax.experimental import pallas as pl
from jax.experimental.pallas import tpu as pltpu


def _conv3x3_cf(x_cf, mask_ref, w_ref, width):
    """3x3 'SAME' conv in channels-first, batch-folded flattened layout.

    x_cf:     (C, N)        activations, N = B*H*W (lane-dense)
    mask_ref: (9, C, N)     pre-broadcast 0/1 border masks, one slab per tap
    w_ref:    (9, Cout, C)  weights (BN scale pre-folded), tap-major leading axis
    returns   (Cout, N)     accumulated over the nine taps (no im2col scratch)
    """
    c, n = x_cf.shape
    # center tap (dy=dx=0): no shift, no mask -- seeds the accumulator
    acc = jnp.dot(w_ref[4], x_cf, preferred_element_type=jnp.float32)
    for t in (0, 1, 2, 3, 5, 6, 7, 8):
        dy, dx = t // 3 - 1, t % 3 - 1
        shift = dy * width + dx
        # rolled[c, p] = x[c, (p + shift) mod N]; boundary/cross-image wrap zeroed by mask
        tap = pltpu.roll(x_cf, shift=(-shift) % n, axis=1) * mask_ref[t]
        acc = acc + jnp.dot(w_ref[t], tap, preferred_element_type=jnp.float32)
    return acc


def se_block_kernel(x_ref, mask_ref, w1_ref, t1_ref, w2_ref, t2_ref,
                    fw1_ref, fb1_ref, fw2t_ref, fb2_ref, out_ref,
                    *, width, hw_img, n_img):
    x = x_ref[...]                                              # (C, B*HW), lane-dense

    # ---- conv1 (BN scale folded into weights) -> +shift -> relu ----
    y1 = _conv3x3_cf(x, mask_ref, w1_ref, width)
    y1 = jnp.maximum(y1 + t1_ref[...], 0.0)

    # ---- conv2 (BN scale folded into weights) -> +shift ----
    y2 = _conv3x3_cf(y1, mask_ref, w2_ref, width)
    y2 = y2 + t2_ref[...]

    # ---- residual add + relu ----
    z = jnp.maximum(y2 + x, 0.0)                                # (C, B*HW)

    # ---- per-image squeeze/excite; static 256-lane (128-aligned) slices ----
    for b in range(n_img):
        zb = z[:, b * hw_img:(b + 1) * hw_img]                  # (C, HW)
        se = jnp.mean(zb, axis=1, keepdims=True)                # (C, 1)
        # tiny FCs as broadcast-multiply-reduce (no degenerate matmuls)
        h = jnp.sum(fw1_ref[...] * se, axis=0, keepdims=True) + fb1_ref[...]   # (1, Cr)
        h = jnp.maximum(h, 0.0)
        e = jnp.sum(fw2t_ref[...] * h, axis=1, keepdims=True) + fb2_ref[...]   # (C, 1)
        gate = jax.nn.sigmoid(e)                                # (C, 1)
        # channel-wise rescale; store is a full-width, lane-aligned dense vst
        out_ref[:, b * hw_img:(b + 1) * hw_img] = zb * gate


def se_block_pallas(x_nchw, p, eps=1e-5):
    B, Cin, H, W = x_nchw.shape
    HW = H * W
    N = B * HW
    C = p["w1"].shape[-1]
    Cr = p["fw1"].shape[-1]
    assert Cin == C, "example configuration uses in_channels == out_channels (stride 1)"

    # (B, C, H, W) -> (C, B*HW): channels-first, batch folded onto the lane axis
    x_flat = jnp.transpose(x_nchw.reshape(B, C, HW), (1, 0, 2)).reshape(C, N)

    # eval-mode BN affine; scales folded into conv weight rows, shifts kept as (C, 1)
    s1 = p["g1"] / jnp.sqrt(p["v1"] + eps)
    t1 = (p["be1"] + (p["b1"] - p["m1"]) * s1).reshape(C, 1)
    s2 = p["g2"] / jnp.sqrt(p["v2"] + eps)
    t2 = (p["be2"] + (p["b2"] - p["m2"]) * s2).reshape(C, 1)

    # conv weights HWIO (3,3,Cin,Cout) -> (9, Cout, Cin); BN scale folded per out-channel
    w1 = jnp.transpose(p["w1"].reshape(9, Cin, C), (0, 2, 1)) * s1[None, :, None]
    w2 = jnp.transpose(p["w2"].reshape(9, C, C), (0, 2, 1)) * s2[None, :, None]

    fb1 = p["fb1"].reshape(1, Cr)
    fw2t = p["fw2"].T                                           # (C, Cr)
    fb2 = p["fb2"].reshape(C, 1)

    # 0/1 border masks for the 9 taps, tiled over batch and pre-broadcast over channels
    pos = jnp.arange(HW)
    ii, jj = pos // W, pos % W
    base = jnp.stack(
        [(((ii + dy) >= 0) & ((ii + dy) < H) & ((jj + dx) >= 0) & ((jj + dx) < W))
         .astype(jnp.float32)
         for dy in (-1, 0, 1) for dx in (-1, 0, 1)],
        axis=0)                                                 # (9, HW)
    masks = jnp.broadcast_to(jnp.tile(base, (1, B))[:, None, :], (9, C, N))

    out = pl.pallas_call(
        functools.partial(se_block_kernel, width=W, hw_img=HW, n_img=B),
        out_shape=jax.ShapeDtypeStruct((C, N), jnp.float32),
        grid=(1,),
        in_specs=[
            pl.BlockSpec((C, N), lambda i: (0, 0)),             # x (channels-first, folded)
            pl.BlockSpec((9, C, N), lambda i: (0, 0, 0)),       # border masks (pre-broadcast)
            pl.BlockSpec((9, C, Cin), lambda i: (0, 0, 0)),     # conv1 weights (BN-folded)
            pl.BlockSpec((C, 1), lambda i: (0, 0)),             # bn1 shift
            pl.BlockSpec((9, C, C), lambda i: (0, 0, 0)),       # conv2 weights (BN-folded)
            pl.BlockSpec((C, 1), lambda i: (0, 0)),             # bn2 shift
            pl.BlockSpec((C, Cr), lambda i: (0, 0)),            # fc1 weight
            pl.BlockSpec((1, Cr), lambda i: (0, 0)),            # fc1 bias
            pl.BlockSpec((C, Cr), lambda i: (0, 0)),            # fc2 weight (transposed)
            pl.BlockSpec((C, 1), lambda i: (0, 0)),             # fc2 bias
        ],
        out_specs=pl.BlockSpec((C, N), lambda i: (0, 0)),
        compiler_params=pltpu.CompilerParams(dimension_semantics=("arbitrary",)),
    )(x_flat, masks, w1, t1, w2, t2, p["fw1"], fb1, fw2t, fb2)

    # (C, B*HW) -> (B, C, H, W)
    return jnp.transpose(out.reshape(C, B, H, W), (1, 0, 2, 3))


def se_block_ref(x_nhwc, p, eps=1e-5):
    """Pure-JAX reference (eval-mode BN), NHWC, for correctness checking."""
    def conv3x3(x, w, b):
        y = lax.conv_general_dilated(x, w, (1, 1), "SAME",
                                     dimension_numbers=("NHWC", "HWIO", "NHWC"))
        return y + b
    y = conv3x3(x_nhwc, p["w1"], p["b1"])
    y = (y - p["m1"]) / jnp.sqrt(p["v1"] + eps) * p["g1"] + p["be1"]
    y = jnp.maximum(y, 0.0)
    y = conv3x3(y, p["w2"], p["b2"])
    y = (y - p["m2"]) / jnp.sqrt(p["v2"] + eps) * p["g2"] + p["be2"]
    y = jnp.maximum(y + x_nhwc, 0.0)
    se = y.mean(axis=(1, 2))                                    # (B, C)
    se = jnp.maximum(se @ p["fw1"] + p["fb1"], 0.0)
    se = se @ p["fw2"] + p["fb2"]
    gate = jax.nn.sigmoid(se)[:, None, None, :]
    return y * gate


def init_params(key, cin, cout, r=16):
    ks = jax.random.split(key, 16)
    cr = cout // r
    p = {}
    p["w1"] = 0.1 * jax.random.normal(ks[0], (3, 3, cin, cout), jnp.float32)
    p["b1"] = 0.1 * jax.random.normal(ks[1], (cout,), jnp.float32)
    p["g1"] = 1.0 + 0.1 * jax.random.normal(ks[2], (cout,), jnp.float32)
    p["be1"] = 0.1 * jax.random.normal(ks[3], (cout,), jnp.float32)
    p["m1"] = 0.1 * jax.random.normal(ks[4], (cout,), jnp.float32)
    p["v1"] = jax.random.uniform(ks[5], (cout,), jnp.float32, 0.5, 1.5)
    p["w2"] = 0.1 * jax.random.normal(ks[6], (3, 3, cout, cout), jnp.float32)
    p["b2"] = 0.1 * jax.random.normal(ks[7], (cout,), jnp.float32)
    p["g2"] = 1.0 + 0.1 * jax.random.normal(ks[8], (cout,), jnp.float32)
    p["be2"] = 0.1 * jax.random.normal(ks[9], (cout,), jnp.float32)
    p["m2"] = 0.1 * jax.random.normal(ks[10], (cout,), jnp.float32)
    p["v2"] = jax.random.uniform(ks[11], (cout,), jnp.float32, 0.5, 1.5)
    p["fw1"] = 0.3 * jax.random.normal(ks[12], (cout, cr), jnp.float32)
    p["fb1"] = 0.1 * jax.random.normal(ks[13], (cr,), jnp.float32)
    p["fw2"] = 0.3 * jax.random.normal(ks[14], (cr, cout), jnp.float32)
    p["fb2"] = 0.1 * jax.random.normal(ks[15], (cout,), jnp.float32)
    return p


if __name__ == "__main__":
    B, C, H, W = 2, 32, 16, 16   # in_channels == out_channels == 32, r=16 -> hidden=2
    key = jax.random.PRNGKey(0)
    kx, kp = jax.random.split(key)

    x_nchw = jax.random.normal(kx, (B, C, H, W), jnp.float32)   # PyTorch NCHW layout
    params = init_params(kp, C, C, r=16)

    out_nchw = jax.block_until_ready(se_block_pallas(x_nchw, params))

    ref_nhwc = se_block_ref(jnp.transpose(x_nchw, (0, 2, 3, 1)), params)
    ref_nchw = jnp.transpose(ref_nhwc, (0, 3, 1, 2))

    assert out_nchw.shape == (B, C, H, W)
    assert jnp.allclose(out_nchw, ref_nchw, rtol=1e-3, atol=1e-3), "mismatch vs reference"

    print("KERNEL_OK")
</pallas_src>

<mosaic_0001>
module attributes {stable_mosaic.version = 11 : i64} {
  func.func @se_block_kernel(%arg0: i32, %arg1: memref<32x512xf32, #tpu.memory_space<vmem>>, %arg2: memref<9x32x512xf32, #tpu.memory_space<vmem>>, %arg3: memref<9x32x32xf32, #tpu.memory_space<vmem>>, %arg4: memref<32x1xf32, #tpu.memory_space<vmem>>, %arg5: memref<9x32x32xf32, #tpu.memory_space<vmem>>, %arg6: memref<32x1xf32, #tpu.memory_space<vmem>>, %arg7: memref<32x2xf32, #tpu.memory_space<vmem>>, %arg8: memref<1x2xf32, #tpu.memory_space<vmem>>, %arg9: memref<32x2xf32, #tpu.memory_space<vmem>>, %arg10: memref<32x1xf32, #tpu.memory_space<vmem>>, %arg11: memref<32x512xf32, #tpu.memory_space<vmem>>) attributes {dimension_semantics = [#tpu.dimension_semantics<arbitrary>], iteration_bounds = array<i64: 1>, scalar_prefetch = 0 : i64, scratch_operands = 0 : i64, tpu.core_type = #tpu.core_type<tc>, window_params = [{pipeline_mode = #tpu.pipeline_mode<synchronous>, transform_indices = @transform_0, window_bounds = array<i64: 32, 512>}, {pipeline_mode = #tpu.pipeline_mode<synchronous>, transform_indices = @transform_1, window_bounds = array<i64: 9, 32, 512>}, {pipeline_mode = #tpu.pipeline_mode<synchronous>, transform_indices = @transform_2, window_bounds = array<i64: 9, 32, 32>}, {pipeline_mode = #tpu.pipeline_mode<synchronous>, transform_indices = @transform_3, window_bounds = array<i64: 32, 1>}, {pipeline_mode = #tpu.pipeline_mode<synchronous>, transform_indices = @transform_4, window_bounds = array<i64: 9, 32, 32>}, {pipeline_mode = #tpu.pipeline_mode<synchronous>, transform_indices = @transform_5, window_bounds = array<i64: 32, 1>}, {pipeline_mode = #tpu.pipeline_mode<synchronous>, transform_indices = @transform_6, window_bounds = array<i64: 32, 2>}, {pipeline_mode = #tpu.pipeline_mode<synchronous>, transform_indices = @transform_7, window_bounds = array<i64: 1, 2>}, {pipeline_mode = #tpu.pipeline_mode<synchronous>, transform_indices = @transform_8, window_bounds = array<i64: 32, 2>}, {pipeline_mode = #tpu.pipeline_mode<synchronous>, transform_indices = @transform_9, window_bounds = array<i64: 32, 1>}, {pipeline_mode = #tpu.pipeline_mode<synchronous>, transform_indices = @transform_10, window_bounds = array<i64: 32, 512>}]} {
    %c0 = arith.constant 0 : index
    %c0_0 = arith.constant 0 : index
    %0 = vector.load %arg1[%c0, %c0_0] : memref<32x512xf32, #tpu.memory_space<vmem>>, vector<32x512xf32>
    %c4 = arith.constant 4 : index
    %c0_1 = arith.constant 0 : index
    %c0_2 = arith.constant 0 : index
    %1 = vector.load %arg3[%c4, %c0_1, %c0_2] : memref<9x32x32xf32, #tpu.memory_space<vmem>>, vector<1x32x32xf32>
    %2 = vector.shape_cast %1 : vector<1x32x32xf32> to vector<32x32xf32>
    %cst = arith.constant dense<0.000000e+00> : vector<32x512xf32>
    %3 = tpu.matmul %2, %0, %cst {dimension_numbers = #tpu.dot_dimension_numbers<[1], [0], [0], [1], [0, 0, 1, 1], [], []>} : vector<32x32xf32>, vector<32x512xf32>, vector<32x512xf32> -> vector<32x512xf32>
    %c17_i32 = arith.constant 17 : i32
    %4 = tpu.dynamic_rotate %0 by %c17_i32 dim 1 : vector<32x512xf32>, i32 -> vector<32x512xf32>
    %c0_3 = arith.constant 0 : index
    %c0_4 = arith.constant 0 : index
    %c0_5 = arith.constant 0 : index
    %5 = vector.load %arg2[%c0_3, %c0_4, %c0_5] : memref<9x32x512xf32, #tpu.memory_space<vmem>>, vector<1x32x512xf32>
    %6 = vector.shape_cast %5 : vector<1x32x512xf32> to vector<32x512xf32>
    %7 = arith.mulf %4, %6 : vector<32x512xf32>
    %c0_6 = arith.constant 0 : index
    %c0_7 = arith.constant 0 : index
    %c0_8 = arith.constant 0 : index
    %8 = vector.load %arg3[%c0_6, %c0_7, %c0_8] : memref<9x32x32xf32, #tpu.memory_space<vmem>>, vector<1x32x32xf32>
    %9 = vector.shape_cast %8 : vector<1x32x32xf32> to vector<32x32xf32>
    %cst_9 = arith.constant dense<0.000000e+00> : vector<32x512xf32>
    %10 = tpu.matmul %9, %7, %cst_9 {dimension_numbers = #tpu.dot_dimension_numbers<[1], [0], [0], [1], [0, 0, 1, 1], [], []>} : vector<32x32xf32>, vector<32x512xf32>, vector<32x512xf32> -> vector<32x512xf32>
    %11 = arith.addf %3, %10 : vector<32x512xf32>
    %c16_i32 = arith.constant 16 : i32
    %12 = tpu.dynamic_rotate %0 by %c16_i32 dim 1 : vector<32x512xf32>, i32 -> vector<32x512xf32>
    %c1 = arith.constant 1 : index
    %c0_10 = arith.constant 0 : index
    %c0_11 = arith.constant 0 : index
    %13 = vector.load %arg2[%c1, %c0_10, %c0_11] : memref<9x32x512xf32, #tpu.memory_space<vmem>>, vector<1x32x512xf32>
    %14 = vector.shape_cast %13 : vector<1x32x512xf32> to vector<32x512xf32>
    %15 = arith.mulf %12, %14 : vector<32x512xf32>
    %c1_12 = arith.constant 1 : index
    %c0_13 = arith.constant 0 : index
    %c0_14 = arith.constant 0 : index
    %16 = vector.load %arg3[%c1_12, %c0_13, %c0_14] : memref<9x32x32xf32, #tpu.memory_space<vmem>>, vector<1x32x32xf32>
    %17 = vector.shape_cast %16 : vector<1x32x32xf32> to vector<32x32xf32>
    %cst_15 = arith.constant dense<0.000000e+00> : vector<32x512xf32>
    %18 = tpu.matmul %17, %15, %cst_15 {dimension_numbers = #tpu.dot_dimension_numbers<[1], [0], [0], [1], [0, 0, 1, 1], [], []>} : vector<32x32xf32>, vector<32x512xf32>, vector<32x512xf32> -> vector<32x512xf32>
    %19 = arith.addf %11, %18 : vector<32x512xf32>
    %c15_i32 = arith.constant 15 : i32
    %20 = tpu.dynamic_rotate %0 by %c15_i32 dim 1 : vector<32x512xf32>, i32 -> vector<32x512xf32>
    %c2 = arith.constant 2 : index
    %c0_16 = arith.constant 0 : index
    %c0_17 = arith.constant 0 : index
    %21 = vector.load %arg2[%c2, %c0_16, %c0_17] : memref<9x32x512xf32, #tpu.memory_space<vmem>>, vector<1x32x512xf32>
    %22 = vector.shape_cast %21 : vector<1x32x512xf32> to vector<32x512xf32>
    %23 = arith.mulf %20, %22 : vector<32x512xf32>
    %c2_18 = arith.constant 2 : index
    %c0_19 = arith.constant 0 : index
    %c0_20 = arith.constant 0 : index
    %24 = vector.load %arg3[%c2_18, %c0_19, %c0_20] : memref<9x32x32xf32, #tpu.memory_space<vmem>>, vector<1x32x32xf32>
    %25 = vector.shape_cast %24 : vector<1x32x32xf32> to vector<32x32xf32>
    %cst_21 = arith.constant dense<0.000000e+00> : vector<32x512xf32>
    %26 = tpu.matmul %25, %23, %cst_21 {dimension_numbers = #tpu.dot_dimension_numbers<[1], [0], [0], [1], [0, 0, 1, 1], [], []>} : vector<32x32xf32>, vector<32x512xf32>, vector<32x512xf32> -> vector<32x512xf32>
    %27 = arith.addf %19, %26 : vector<32x512xf32>
    %c1_i32 = arith.constant 1 : i32
    %28 = tpu.dynamic_rotate %0 by %c1_i32 dim 1 : vector<32x512xf32>, i32 -> vector<32x512xf32>
    %c3 = arith.constant 3 : index
    %c0_22 = arith.constant 0 : index
    %c0_23 = arith.constant 0 : index
    %29 = vector.load %arg2[%c3, %c0_22, %c0_23] : memref<9x32x512xf32, #tpu.memory_space<vmem>>, vector<1x32x512xf32>
    %30 = vector.shape_cast %29 : vector<1x32x512xf32> to vector<32x512xf32>
    %31 = arith.mulf %28, %30 : vector<32x512xf32>
    %c3_24 = arith.constant 3 : index
    %c0_25 = arith.constant 0 : index
    %c0_26 = arith.constant 0 : index
    %32 = vector.load %arg3[%c3_24, %c0_25, %c0_26] : memref<9x32x32xf32, #tpu.memory_space<vmem>>, vector<1x32x32xf32>
    %33 = vector.shape_cast %32 : vector<1x32x32xf32> to vector<32x32xf32>
    %cst_27 = arith.constant dense<0.000000e+00> : vector<32x512xf32>
    %34 = tpu.matmul %33, %31, %cst_27 {dimension_numbers = #tpu.dot_dimension_numbers<[1], [0], [0], [1], [0, 0, 1, 1], [], []>} : vector<32x32xf32>, vector<32x512xf32>, vector<32x512xf32> -> vector<32x512xf32>
    %35 = arith.addf %27, %34 : vector<32x512xf32>
    %c511_i32 = arith.constant 511 : i32
    %36 = tpu.dynamic_rotate %0 by %c511_i32 dim 1 : vector<32x512xf32>, i32 -> vector<32x512xf32>
    %c5 = arith.constant 5 : index
    %c0_28 = arith.constant 0 : index
    %c0_29 = arith.constant 0 : index
    %37 = vector.load %arg2[%c5, %c0_28, %c0_29] : memref<9x32x512xf32, #tpu.memory_space<vmem>>, vector<1x32x512xf32>
    %38 = vector.shape_cast %37 : vector<1x32x512xf32> to vector<32x512xf32>
    %39 = arith.mulf %36, %38 : vector<32x512xf32>
    %c5_30 = arith.constant 5 : index
    %c0_31 = arith.constant 0 : index
    %c0_32 = arith.constant 0 : index
    %40 = vector.load %arg3[%c5_30, %c0_31, %c0_32] : memref<9x32x32xf32, #tpu.memory_space<vmem>>, vector<1x32x32xf32>
    %41 = vector.shape_cast %40 : vector<1x32x32xf32> to vector<32x32xf32>
    %cst_33 = arith.constant dense<0.000000e+00> : vector<32x512xf32>
    %42 = tpu.matmul %41, %39, %cst_33 {dimension_numbers = #tpu.dot_dimension_numbers<[1], [0], [0], [1], [0, 0, 1, 1], [], []>} : vector<32x32xf32>, vector<32x512xf32>, vector<32x512xf32> -> vector<32x512xf32>
    %43 = arith.addf %35, %42 : vector<32x512xf32>
    %c497_i32 = arith.constant 497 : i32
    %44 = tpu.dynamic_rotate %0 by %c497_i32 dim 1 : vector<32x512xf32>, i32 -> vector<32x512xf32>
    %c6 = arith.constant 6 : index
    %c0_34 = arith.constant 0 : index
    %c0_35 = arith.constant 0 : index
    %45 = vector.load %arg2[%c6, %c0_34, %c0_35] : memref<9x32x512xf32, #tpu.memory_space<vmem>>, vector<1x32x512xf32>
    %46 = vector.shape_cast %45 : vector<1x32x512xf32> to vector<32x512xf32>
    %47 = arith.mulf %44, %46 : vector<32x512xf32>
    %c6_36 = arith.constant 6 : index
    %c0_37 = arith.constant 0 : index
    %c0_38 = arith.constant 0 : index
    %48 = vector.load %arg3[%c6_36, %c0_37, %c0_38] : memref<9x32x32xf32, #tpu.memory_space<vmem>>, vector<1x32x32xf32>
    %49 = vector.shape_cast %48 : vector<1x32x32xf32> to vector<32x32xf32>
    %cst_39 = arith.constant dense<0.000000e+00> : vector<32x512xf32>
    %50 = tpu.matmul %49, %47, %cst_39 {dimension_numbers = #tpu.dot_dimension_numbers<[1], [0], [0], [1], [0, 0, 1, 1], [], []>} : vector<32x32xf32>, vector<32x512xf32>, vector<32x512xf32> -> vector<32x512xf32>
    %51 = arith.addf %43, %50 : vector<32x512xf32>
    %c496_i32 = arith.constant 496 : i32
    %52 = tpu.dynamic_rotate %0 by %c496_i32 dim 1 : vector<32x512xf32>, i32 -> vector<32x512xf32>
    %c7 = arith.constant 7 : index
    %c0_40 = arith.constant 0 : index
    %c0_41 = arith.constant 0 : index
    %53 = vector.load %arg2[%c7, %c0_40, %c0_41] : memref<9x32x512xf32, #tpu.memory_space<vmem>>, vector<1x32x512xf32>
    %54 = vector.shape_cast %53 : vector<1x32x512xf32> to vector<32x512xf32>
    %55 = arith.mulf %52, %54 : vector<32x512xf32>
    %c7_42 = arith.constant 7 : index
    %c0_43 = arith.constant 0 : index
    %c0_44 = arith.constant 0 : index
    %56 = vector.load %arg3[%c7_42, %c0_43, %c0_44] : memref<9x32x32xf32, #tpu.memory_space<vmem>>, vector<1x32x32xf32>
    %57 = vector.shape_cast %56 : vector<1x32x32xf32> to vector<32x32xf32>
    %cst_45 = arith.constant dense<0.000000e+00> : vector<32x512xf32>
    %58 = tpu.matmul %57, %55, %cst_45 {dimension_numbers = #tpu.dot_dimension_numbers<[1], [0], [0], [1], [0, 0, 1, 1], [], []>} : vector<32x32xf32>, vector<32x512xf32>, vector<32x512xf32> -> vector<32x512xf32>
    %59 = arith.addf %51, %58 : vector<32x512xf32>
    %c495_i32 = arith.constant 495 : i32
    %60 = tpu.dynamic_rotate %0 by %c495_i32 dim 1 : vector<32x512xf32>, i32 -> vector<32x512xf32>
    %c8 = arith.constant 8 : index
    %c0_46 = arith.constant 0 : index
    %c0_47 = arith.constant 0 : index
    %61 = vector.load %arg2[%c8, %c0_46, %c0_47] : memref<9x32x512xf32, #tpu.memory_space<vmem>>, vector<1x32x512xf32>
    %62 = vector.shape_cast %61 : vector<1x32x512xf32> to vector<32x512xf32>
    %63 = arith.mulf %60, %62 : vector<32x512xf32>
    %c8_48 = arith.constant 8 : index
    %c0_49 = arith.constant 0 : index
    %c0_50 = arith.constant 0 : index
    %64 = vector.load %arg3[%c8_48, %c0_49, %c0_50] : memref<9x32x32xf32, #tpu.memory_space<vmem>>, vector<1x32x32xf32>
    %65 = vector.shape_cast %64 : vector<1x32x32xf32> to vector<32x32xf32>
    %cst_51 = arith.constant dense<0.000000e+00> : vector<32x512xf32>
    %66 = tpu.matmul %65, %63, %cst_51 {dimension_numbers = #tpu.dot_dimension_numbers<[1], [0], [0], [1], [0, 0, 1, 1], [], []>} : vector<32x32xf32>, vector<32x512xf32>, vector<32x512xf32> -> vector<32x512xf32>
    %67 = arith.addf %59, %66 : vector<32x512xf32>
    %c0_52 = arith.constant 0 : index
    %c0_53 = arith.constant 0 : index
    %68 = vector.load %arg4[%c0_52, %c0_53] : memref<32x1xf32, #tpu.memory_space<vmem>>, vector<32x1xf32>
    %69 = vector.broadcast %68 : vector<32x1xf32> to vector<32x512xf32>
    %70 = arith.addf %67, %69 : vector<32x512xf32>
    %cst_54 = arith.constant 0.000000e+00 : f32
    %71 = vector.broadcast %cst_54 : f32 to vector<32x512xf32>
    %72 = arith.maximumf %70, %71 : vector<32x512xf32>
    %c4_55 = arith.constant 4 : index
    %c0_56 = arith.constant 0 : index
    %c0_57 = arith.constant 0 : index
    %73 = vector.load %arg5[%c4_55, %c0_56, %c0_57] : memref<9x32x32xf32, #tpu.memory_space<vmem>>, vector<1x32x32xf32>
    %74 = vector.shape_cast %73 : vector<1x32x32xf32> to vector<32x32xf32>
    %cst_58 = arith.constant dense<0.000000e+00> : vector<32x512xf32>
    %75 = tpu.matmul %74, %72, %cst_58 {dimension_numbers = #tpu.dot_dimension_numbers<[1], [0], [0], [1], [0, 0, 1, 1], [], []>} : vector<32x32xf32>, vector<32x512xf32>, vector<32x512xf32> -> vector<32x512xf32>
    %c17_i32_59 = arith.constant 17 : i32
    %76 = tpu.dynamic_rotate %72 by %c17_i32_59 dim 1 : vector<32x512xf32>, i32 -> vector<32x512xf32>
    %c0_60 = arith.constant 0 : index
    %c0_61 = arith.constant 0 : index
    %c0_62 = arith.constant 0 : index
    %77 = vector.load %arg2[%c0_60, %c0_61, %c0_62] : memref<9x32x512xf32, #tpu.memory_space<vmem>>, vector<1x32x512xf32>
    %78 = vector.shape_cast %77 : vector<1x32x512xf32> to vector<32x512xf32>
    %79 = arith.mulf %76, %78 : vector<32x512xf32>
    %c0_63 = arith.constant 0 : index
    %c0_64 = arith.constant 0 : index
    %c0_65 = arith.constant 0 : index
    %80 = vector.load %arg5[%c0_63, %c0_64, %c0_65] : memref<9x32x32xf32, #tpu.memory_space<vmem>>, vector<1x32x32xf32>
    %81 = vector.shape_cast %80 : vector<1x32x32xf32> to vector<32x32xf32>
    %cst_66 = arith.constant dense<0.000000e+00> : vector<32x512xf32>
    %82 = tpu.matmul %81, %79, %cst_66 {dimension_numbers = #tpu.dot_dimension_numbers<[1], [0], [0], [1], [0, 0, 1, 1], [], []>} : vector<32x32xf32>, vector<32x512xf32>, vector<32x512xf32> -> vector<32x512xf32>
    %83 = arith.addf %75, %82 : vector<32x512xf32>
    %c16_i32_67 = arith.constant 16 : i32
    %84 = tpu.dynamic_rotate %72 by %c16_i32_67 dim 1 : vector<32x512xf32>, i32 -> vector<32x512xf32>
    %c1_68 = arith.constant 1 : index
    %c0_69 = arith.constant 0 : index
    %c0_70 = arith.constant 0 : index
    %85 = vector.load %arg2[%c1_68, %c0_69, %c0_70] : memref<9x32x512xf32, #tpu.memory_space<vmem>>, vector<1x32x512xf32>
    %86 = vector.shape_cast %85 : vector<1x32x512xf32> to vector<32x512xf32>
    %87 = arith.mulf %84, %86 : vector<32x512xf32>
    %c1_71 = arith.constant 1 : index
    %c0_72 = arith.constant 0 : index
    %c0_73 = arith.constant 0 : index
    %88 = vector.load %arg5[%c1_71, %c0_72, %c0_73] : memref<9x32x32xf32, #tpu.memory_space<vmem>>, vector<1x32x32xf32>
    %89 = vector.shape_cast %88 : vector<1x32x32xf32> to vector<32x32xf32>
    %cst_74 = arith.constant dense<0.000000e+00> : vector<32x512xf32>
    %90 = tpu.matmul %89, %87, %cst_74 {dimension_numbers = #tpu.dot_dimension_numbers<[1], [0], [0], [1], [0, 0, 1, 1], [], []>} : vector<32x32xf32>, vector<32x512xf32>, vector<32x512xf32> -> vector<32x512xf32>
    %91 = arith.addf %83, %90 : vector<32x512xf32>
    %c15_i32_75 = arith.constant 15 : i32
    %92 = tpu.dynamic_rotate %72 by %c15_i32_75 dim 1 : vector<32x512xf32>, i32 -> vector<32x512xf32>
    %c2_76 = arith.constant 2 : index
    %c0_77 = arith.constant 0 : index
    %c0_78 = arith.constant 0 : index
    %93 = vector.load %arg2[%c2_76, %c0_77, %c0_78] : memref<9x32x512xf32, #tpu.memory_space<vmem>>, vector<1x32x512xf32>
    %94 = vector.shape_cast %93 : vector<1x32x512xf32> to vector<32x512xf32>
    %95 = arith.mulf %92, %94 : vector<32x512xf32>
    %c2_79 = arith.constant 2 : index
    %c0_80 = arith.constant 0 : index
    %c0_81 = arith.constant 0 : index
    %96 = vector.load %arg5[%c2_79, %c0_80, %c0_81] : memref<9x32x32xf32, #tpu.memory_space<vmem>>, vector<1x32x32xf32>
    %97 = vector.shape_cast %96 : vector<1x32x32xf32> to vector<32x32xf32>
    %cst_82 = arith.constant dense<0.000000e+00> : vector<32x512xf32>
    %98 = tpu.matmul %97, %95, %cst_82 {dimension_numbers = #tpu.dot_dimension_numbers<[1], [0], [0], [1], [0, 0, 1, 1], [], []>} : vector<32x32xf32>, vector<32x512xf32>, vector<32x512xf32> -> vector<32x512xf32>
    %99 = arith.addf %91, %98 : vector<32x512xf32>
    %c1_i32_83 = arith.constant 1 : i32
    %100 = tpu.dynamic_rotate %72 by %c1_i32_83 dim 1 : vector<32x512xf32>, i32 -> vector<32x512xf32>
    %c3_84 = arith.constant 3 : index
    %c0_85 = arith.constant 0 : index
    %c0_86 = arith.constant 0 : index
    %101 = vector.load %arg2[%c3_84, %c0_85, %c0_86] : memref<9x32x512xf32, #tpu.memory_space<vmem>>, vector<1x32x512xf32>
    %102 = vector.shape_cast %101 : vector<1x32x512xf32> to vector<32x512xf32>
    %103 = arith.mulf %100, %102 : vector<32x512xf32>
    %c3_87 = arith.constant 3 : index
    %c0_88 = arith.constant 0 : index
    %c0_89 = arith.constant 0 : index
    %104 = vector.load %arg5[%c3_87, %c0_88, %c0_89] : memref<9x32x32xf32, #tpu.memory_space<vmem>>, vector<1x32x32xf32>
    %105 = vector.shape_cast %104 : vector<1x32x32xf32> to vector<32x32xf32>
    %cst_90 = arith.constant dense<0.000000e+00> : vector<32x512xf32>
    %106 = tpu.matmul %105, %103, %cst_90 {dimension_numbers = #tpu.dot_dimension_numbers<[1], [0], [0], [1], [0, 0, 1, 1], [], []>} : vector<32x32xf32>, vector<32x512xf32>, vector<32x512xf32> -> vector<32x512xf32>
    %107 = arith.addf %99, %106 : vector<32x512xf32>
    %c511_i32_91 = arith.constant 511 : i32
    %108 = tpu.dynamic_rotate %72 by %c511_i32_91 dim 1 : vector<32x512xf32>, i32 -> vector<32x512xf32>
    %c5_92 = arith.constant 5 : index
    %c0_93 = arith.constant 0 : index
    %c0_94 = arith.constant 0 : index
    %109 = vector.load %arg2[%c5_92, %c0_93, %c0_94] : memref<9x32x512xf32, #tpu.memory_space<vmem>>, vector<1x32x512xf32>
    %110 = vector.shape_cast %109 : vector<1x32x512xf32> to vector<32x512xf32>
    %111 = arith.mulf %108, %110 : vector<32x512xf32>
    %c5_95 = arith.constant 5 : index
    %c0_96 = arith.constant 0 : index
    %c0_97 = arith.constant 0 : index
    %112 = vector.load %arg5[%c5_95, %c0_96, %c0_97] : memref<9x32x32xf32, #tpu.memory_space<vmem>>, vector<1x32x32xf32>
    %113 = vector.shape_cast %112 : vector<1x32x32xf32> to vector<32x32xf32>
    %cst_98 = arith.constant dense<0.000000e+00> : vector<32x512xf32>
    %114 = tpu.matmul %113, %111, %cst_98 {dimension_numbers = #tpu.dot_dimension_numbers<[1], [0], [0], [1], [0, 0, 1, 1], [], []>} : vector<32x32xf32>, vector<32x512xf32>, vector<32x512xf32> -> vector<32x512xf32>
    %115 = arith.addf %107, %114 : vector<32x512xf32>
    %c497_i32_99 = arith.constant 497 : i32
    %116 = tpu.dynamic_rotate %72 by %c497_i32_99 dim 1 : vector<32x512xf32>, i32 -> vector<32x512xf32>
    %c6_100 = arith.constant 6 : index
    %c0_101 = arith.constant 0 : index
    %c0_102 = arith.constant 0 : index
    %117 = vector.load %arg2[%c6_100, %c0_101, %c0_102] : memref<9x32x512xf32, #tpu.memory_space<vmem>>, vector<1x32x512xf32>
    %118 = vector.shape_cast %117 : vector<1x32x512xf32> to vector<32x512xf32>
    %119 = arith.mulf %116, %118 : vector<32x512xf32>
    %c6_103 = arith.constant 6 : index
    %c0_104 = arith.constant 0 : index
    %c0_105 = arith.constant 0 : index
    %120 = vector.load %arg5[%c6_103, %c0_104, %c0_105] : memref<9x32x32xf32, #tpu.memory_space<vmem>>, vector<1x32x32xf32>
    %121 = vector.shape_cast %120 : vector<1x32x32xf32> to vector<32x32xf32>
    %cst_106 = arith.constant dense<0.000000e+00> : vector<32x512xf32>
    %122 = tpu.matmul %121, %119, %cst_106 {dimension_numbers = #tpu.dot_dimension_numbers<[1], [0], [0], [1], [0, 0, 1, 1], [], []>} : vector<32x32xf32>, vector<32x512xf32>, vector<32x512xf32> -> vector<32x512xf32>
    %123 = arith.addf %115, %122 : vector<32x512xf32>
    %c496_i32_107 = arith.constant 496 : i32
    %124 = tpu.dynamic_rotate %72 by %c496_i32_107 dim 1 : vector<32x512xf32>, i32 -> vector<32x512xf32>
    %c7_108 = arith.constant 7 : index
    %c0_109 = arith.constant 0 : index
    %c0_110 = arith.constant 0 : index
    %125 = vector.load %arg2[%c7_108, %c0_109, %c0_110] : memref<9x32x512xf32, #tpu.memory_space<vmem>>, vector<1x32x512xf32>
    %126 = vector.shape_cast %125 : vector<1x32x512xf32> to vector<32x512xf32>
    %127 = arith.mulf %124, %126 : vector<32x512xf32>
    %c7_111 = arith.constant 7 : index
    %c0_112 = arith.constant 0 : index
    %c0_113 = arith.constant 0 : index
    %128 = vector.load %arg5[%c7_111, %c0_112, %c0_113] : memref<9x32x32xf32, #tpu.memory_space<vmem>>, vector<1x32x32xf32>
    %129 = vector.shape_cast %128 : vector<1x32x32xf32> to vector<32x32xf32>
    %cst_114 = arith.constant dense<0.000000e+00> : vector<32x512xf32>
    %130 = tpu.matmul %129, %127, %cst_114 {dimension_numbers = #tpu.dot_dimension_numbers<[1], [0], [0], [1], [0, 0, 1, 1], [], []>} : vector<32x32xf32>, vector<32x512xf32>, vector<32x512xf32> -> vector<32x512xf32>
    %131 = arith.addf %123, %130 : vector<32x512xf32>
    %c495_i32_115 = arith.constant 495 : i32
    %132 = tpu.dynamic_rotate %72 by %c495_i32_115 dim 1 : vector<32x512xf32>, i32 -> vector<32x512xf32>
    %c8_116 = arith.constant 8 : index
    %c0_117 = arith.constant 0 : index
    %c0_118 = arith.constant 0 : index
    %133 = vector.load %arg2[%c8_116, %c0_117, %c0_118] : memref<9x32x512xf32, #tpu.memory_space<vmem>>, vector<1x32x512xf32>
    %134 = vector.shape_cast %133 : vector<1x32x512xf32> to vector<32x512xf32>
    %135 = arith.mulf %132, %134 : vector<32x512xf32>
    %c8_119 = arith.constant 8 : index
    %c0_120 = arith.constant 0 : index
    %c0_121 = arith.constant 0 : index
    %136 = vector.load %arg5[%c8_119, %c0_120, %c0_121] : memref<9x32x32xf32, #tpu.memory_space<vmem>>, vector<1x32x32xf32>
    %137 = vector.shape_cast %136 : vector<1x32x32xf32> to vector<32x32xf32>
    %cst_122 = arith.constant dense<0.000000e+00> : vector<32x512xf32>
    %138 = tpu.matmul %137, %135, %cst_122 {dimension_numbers = #tpu.dot_dimension_numbers<[1], [0], [0], [1], [0, 0, 1, 1], [], []>} : vector<32x32xf32>, vector<32x512xf32>, vector<32x512xf32> -> vector<32x512xf32>
    %139 = arith.addf %131, %138 : vector<32x512xf32>
    %c0_123 = arith.constant 0 : index
    %c0_124 = arith.constant 0 : index
    %140 = vector.load %arg6[%c0_123, %c0_124] : memref<32x1xf32, #tpu.memory_space<vmem>>, vector<32x1xf32>
    %141 = vector.broadcast %140 : vector<32x1xf32> to vector<32x512xf32>
    %142 = arith.addf %139, %141 : vector<32x512xf32>
    %143 = arith.addf %142, %0 : vector<32x512xf32>
    %cst_125 = arith.constant 0.000000e+00 : f32
    %144 = vector.broadcast %cst_125 : f32 to vector<32x512xf32>
    %145 = arith.maximumf %143, %144 : vector<32x512xf32>
    %146 = vector.extract_strided_slice %145 {offsets = [0, 0], sizes = [32, 256], strides = [1, 1]} : vector<32x512xf32> to vector<32x256xf32>
    %cst_126 = arith.constant dense<0.000000e+00> : vector<32xf32>
    %147 = vector.multi_reduction <add>, %146, %cst_126 [1] : vector<32x256xf32> to vector<32xf32>
    %148 = vector.shape_cast %147 : vector<32xf32> to vector<32x1xf32>
    %cst_127 = arith.constant 2.560000e+02 : f32
    %149 = vector.broadcast %cst_127 : f32 to vector<32x1xf32>
    %150 = arith.divf %148, %149 : vector<32x1xf32>
    %c0_128 = arith.constant 0 : index
    %c0_129 = arith.constant 0 : index
    %151 = vector.load %arg7[%c0_128, %c0_129] : memref<32x2xf32, #tpu.memory_space<vmem>>, vector<32x2xf32>
    %152 = vector.broadcast %150 : vector<32x1xf32> to vector<32x2xf32>
    %153 = arith.mulf %151, %152 : vector<32x2xf32>
    %cst_130 = arith.constant dense<0.000000e+00> : vector<2xf32>
    %154 = vector.multi_reduction <add>, %153, %cst_130 [0] : vector<32x2xf32> to vector<2xf32>
    %155 = vector.shape_cast %154 : vector<2xf32> to vector<1x2xf32>
    %c0_131 = arith.constant 0 : index
    %c0_132 = arith.constant 0 : index
    %156 = vector.load %arg8[%c0_131, %c0_132] : memref<1x2xf32, #tpu.memory_space<vmem>>, vector<1x2xf32>
    %157 = arith.addf %155, %156 : vector<1x2xf32>
    %cst_133 = arith.constant 0.000000e+00 : f32
    %158 = vector.broadcast %cst_133 : f32 to vector<1x2xf32>
    %159 = arith.maximumf %157, %158 : vector<1x2xf32>
    %c0_134 = arith.constant 0 : index
    %c0_135 = arith.constant 0 : index
    %160 = vector.load %arg9[%c0_134, %c0_135] : memref<32x2xf32, #tpu.memory_space<vmem>>, vector<32x2xf32>
    %161 = vector.broadcast %159 : vector<1x2xf32> to vector<32x2xf32>
    %162 = arith.mulf %160, %161 : vector<32x2xf32>
    %cst_136 = arith.constant dense<0.000000e+00> : vector<32xf32>
    %163 = vector.multi_reduction <add>, %162, %cst_136 [1] : vector<32x2xf32> to vector<32xf32>
    %164 = vector.shape_cast %163 : vector<32xf32> to vector<32x1xf32>
    %c0_137 = arith.constant 0 : index
    %c0_138 = arith.constant 0 : index
    %165 = vector.load %arg10[%c0_137, %c0_138] : memref<32x1xf32, #tpu.memory_space<vmem>>, vector<32x1xf32>
    %166 = arith.addf %164, %165 : vector<32x1xf32>
    %167 = arith.negf %166 : vector<32x1xf32>
    %168 = math.exp %167 : vector<32x1xf32>
    %cst_139 = arith.constant 1.000000e+00 : f32
    %169 = vector.broadcast %cst_139 : f32 to vector<32x1xf32>
    %170 = arith.addf %169, %168 : vector<32x1xf32>
    %171 = arith.divf %169, %170 : vector<32x1xf32>
    %172 = vector.broadcast %171 : vector<32x1xf32> to vector<32x256xf32>
    %173 = arith.mulf %146, %172 : vector<32x256xf32>
    %c0_140 = arith.constant 0 : index
    %c0_141 = arith.constant 0 : index
    %174 = vector.load %arg11[%c0_140, %c0_141] : memref<32x512xf32, #tpu.memory_space<vmem>>, vector<32x256xf32>
    tpu.vector_store %arg11[%c0_140, %c0_141], %173 {strides = array<i32>} : memref<32x512xf32, #tpu.memory_space<vmem>>, vector<32x256xf32>,
    %175 = vector.extract_strided_slice %145 {offsets = [0, 256], sizes = [32, 256], strides = [1, 1]} : vector<32x512xf32> to vector<32x256xf32>
    %cst_142 = arith.constant dense<0.000000e+00> : vector<32xf32>
    %176 = vector.multi_reduction <add>, %175, %cst_142 [1] : vector<32x256xf32> to vector<32xf32>
    %177 = vector.shape_cast %176 : vector<32xf32> to vector<32x1xf32>
    %cst_143 = arith.constant 2.560000e+02 : f32
    %178 = vector.broadcast %cst_143 : f32 to vector<32x1xf32>
    %179 = arith.divf %177, %178 : vector<32x1xf32>
    %c0_144 = arith.constant 0 : index
    %c0_145 = arith.constant 0 : index
    %180 = vector.load %arg7[%c0_144, %c0_145] : memref<32x2xf32, #tpu.memory_space<vmem>>, vector<32x2xf32>
    %181 = vector.broadcast %179 : vector<32x1xf32> to vector<32x2xf32>
    %182 = arith.mulf %180, %181 : vector<32x2xf32>
    %cst_146 = arith.constant dense<0.000000e+00> : vector<2xf32>
    %183 = vector.multi_reduction <add>, %182, %cst_146 [0] : vector<32x2xf32> to vector<2xf32>
    %184 = vector.shape_cast %183 : vector<2xf32> to vector<1x2xf32>
    %c0_147 = arith.constant 0 : index
    %c0_148 = arith.constant 0 : index
    %185 = vector.load %arg8[%c0_147, %c0_148] : memref<1x2xf32, #tpu.memory_space<vmem>>, vector<1x2xf32>
    %186 = arith.addf %184, %185 : vector<1x2xf32>
    %cst_149 = arith.constant 0.000000e+00 : f32
    %187 = vector.broadcast %cst_149 : f32 to vector<1x2xf32>
    %188 = arith.maximumf %186, %187 : vector<1x2xf32>
    %c0_150 = arith.constant 0 : index
    %c0_151 = arith.constant 0 : index
    %189 = vector.load %arg9[%c0_150, %c0_151] : memref<32x2xf32, #tpu.memory_space<vmem>>, vector<32x2xf32>
    %190 = vector.broadcast %188 : vector<1x2xf32> to vector<32x2xf32>
    %191 = arith.mulf %189, %190 : vector<32x2xf32>
    %cst_152 = arith.constant dense<0.000000e+00> : vector<32xf32>
    %192 = vector.multi_reduction <add>, %191, %cst_152 [1] : vector<32x2xf32> to vector<32xf32>
    %193 = vector.shape_cast %192 : vector<32xf32> to vector<32x1xf32>
    %c0_153 = arith.constant 0 : index
    %c0_154 = arith.constant 0 : index
    %194 = vector.load %arg10[%c0_153, %c0_154] : memref<32x1xf32, #tpu.memory_space<vmem>>, vector<32x1xf32>
    %195 = arith.addf %193, %194 : vector<32x1xf32>
    %196 = arith.negf %195 : vector<32x1xf32>
    %197 = math.exp %196 : vector<32x1xf32>
    %cst_155 = arith.constant 1.000000e+00 : f32
    %198 = vector.broadcast %cst_155 : f32 to vector<32x1xf32>
    %199 = arith.addf %198, %197 : vector<32x1xf32>
    %200 = arith.divf %198, %199 : vector<32x1xf32>
    %201 = vector.broadcast %200 : vector<32x1xf32> to vector<32x256xf32>
    %202 = arith.mulf %175, %201 : vector<32x256xf32>
    %c0_156 = arith.constant 0 : index
    %c256 = arith.constant 256 : index
    %203 = vector.load %arg11[%c0_156, %c256] : memref<32x512xf32, #tpu.memory_space<vmem>>, vector<32x256xf32>
    tpu.vector_store %arg11[%c0_156, %c256], %202 {strides = array<i32>} : memref<32x512xf32, #tpu.memory_space<vmem>>, vector<32x256xf32>,
    return
  }
  func.func @transform_0(%arg0: i32) -> (i32, i32) {
    %c0_i32 = arith.constant 0 : i32
    %c0_i32_0 = arith.constant 0 : i32
    %c0_i32_1 = arith.constant 0 : i32
    return %c0_i32, %c0_i32_0 : i32, i32
  }
  func.func @transform_1(%arg0: i32) -> (i32, i32, i32) {
    %c0_i32 = arith.constant 0 : i32
    %c0_i32_0 = arith.constant 0 : i32
    %c0_i32_1 = arith.constant 0 : i32
    %c0_i32_2 = arith.constant 0 : i32
    return %c0_i32, %c0_i32_0, %c0_i32_1 : i32, i32, i32
  }
  func.func @transform_2(%arg0: i32) -> (i32, i32, i32) {
    %c0_i32 = arith.constant 0 : i32
    %c0_i32_0 = arith.constant 0 : i32
    %c0_i32_1 = arith.constant 0 : i32
    %c0_i32_2 = arith.constant 0 : i32
    return %c0_i32, %c0_i32_0, %c0_i32_1 : i32, i32, i32
  }
  func.func @transform_3(%arg0: i32) -> (i32, i32) {
    %c0_i32 = arith.constant 0 : i32
    %c0_i32_0 = arith.constant 0 : i32
    %c0_i32_1 = arith.constant 0 : i32
    return %c0_i32, %c0_i32_0 : i32, i32
  }
  func.func @transform_4(%arg0: i32) -> (i32, i32, i32) {
    %c0_i32 = arith.constant 0 : i32
    %c0_i32_0 = arith.constant 0 : i32
    %c0_i32_1 = arith.constant 0 : i32
    %c0_i32_2 = arith.constant 0 : i32
    return %c0_i32, %c0_i32_0, %c0_i32_1 : i32, i32, i32
  }
  func.func @transform_5(%arg0: i32) -> (i32, i32) {
    %c0_i32 = arith.constant 0 : i32
    %c0_i32_0 = arith.constant 0 : i32
    %c0_i32_1 = arith.constant 0 : i32
    return %c0_i32, %c0_i32_0 : i32, i32
  }
  func.func @transform_6(%arg0: i32) -> (i32, i32) {
    %c0_i32 = arith.constant 0 : i32
    %c0_i32_0 = arith.constant 0 : i32
    %c0_i32_1 = arith.constant 0 : i32
    return %c0_i32, %c0_i32_0 : i32, i32
  }
  func.func @transform_7(%arg0: i32) -> (i32, i32) {
    %c0_i32 = arith.constant 0 : i32
    %c0_i32_0 = arith.constant 0 : i32
    %c0_i32_1 = arith.constant 0 : i32
    return %c0_i32, %c0_i32_0 : i32, i32
  }
  func.func @transform_8(%arg0: i32) -> (i32, i32) {
    %c0_i32 = arith.constant 0 : i32
    %c0_i32_0 = arith.constant 0 : i32
    %c0_i32_1 = arith.constant 0 : i32
    return %c0_i32, %c0_i32_0 : i32, i32
  }
  func.func @transform_9(%arg0: i32) -> (i32, i32) {
    %c0_i32 = arith.constant 0 : i32
    %c0_i32_0 = arith.constant 0 : i32
    %c0_i32_1 = arith.constant 0 : i32
    return %c0_i32, %c0_i32_0 : i32, i32
  }
  func.func @transform_10(%arg0: i32) -> (i32, i32) {
    %c0_i32 = arith.constant 0 : i32
    %c0_i32_0 = arith.constant 0 : i32
    %c0_i32_1 = arith.constant 0 : i32
    return %c0_i32, %c0_i32_0 : i32, i32
  }
}

</mosaic_0001>

<llo_original>
// kernel: tpu_custom_call.1
$region0: #{tpu_custom_call.1}
  #allocation0 [shape = 'u32[]', space=smem, size = 0x4, offset = 0x4, fixed_abs, tag = 'smem constant byte address 0x4 - core index']
  #allocation1 [shape = 'u32[144,128]{1,0:T(1,128)}', space=vmem, size = 0x12000, scoped, tag = 'internal scratch']
  %s0 = inlined_call_operand.vmem [shape: f32[32,512], index: 0, kind: input, shape index: {}]
  %s1 = inlined_call_operand.hbm [shape: f32[9,32,512], index: 1, kind: input, shape index: {}]
  %s2 = inlined_call_operand.hbm [shape: f32[9,32,32], index: 2, kind: input, shape index: {}]
  %s3 = inlined_call_operand.vmem [shape: f32[32,1], index: 3, kind: input, shape index: {}]
  %s4 = inlined_call_operand.hbm [shape: f32[9,32,32], index: 4, kind: input, shape index: {}]
  %s5 = inlined_call_operand.vmem [shape: f32[32,1], index: 5, kind: input, shape index: {}]
  %s6 = inlined_call_operand.vmem [shape: f32[32,2], index: 6, kind: input, shape index: {}]
  %s7 = inlined_call_operand.vmem [shape: f32[1,2], index: 7, kind: input, shape index: {}]
  %s8 = inlined_call_operand.vmem [shape: f32[32,2], index: 8, kind: input, shape index: {}]
  %s9 = inlined_call_operand.vmem [shape: f32[32,1], index: 9, kind: input, shape index: {}]
  %s10 = inlined_call_operand.hbm [shape: f32[32,512], index: 10, kind: output, shape index: {}]
  %s11 = sld [smem:[#allocation0]]
  $region62: #{tpu_custom_call.1} parent=0
    _
  %s13 = ssub.s32 1, %s11
  %s14 = scalar_select 0, %s13, %s11
  $region1: #{tpu_custom_call.1} parent=0
    #allocation2 [shape = 'u8[589824]{0}', space=vmem, size = 0x90000, scoped, tag = 'input window, operand 1, single buffered']
    #allocation3 [shape = 's32[1]{0}', space=sflag, size = 0x4, scoped, tag = 'scoped memory for tpu_custom_call.1']
    #allocation4 [shape = 's32[1]{0}', space=sflag, size = 0x4, scoped, tag = 'scoped memory for tpu_custom_call.1']
    #allocation5 [shape = 'u8[147456]{0}', space=vmem, size = 0x24000, scoped, tag = 'input window, operand 2, single buffered']
    #allocation6 [shape = 's32[1]{0}', space=sflag, size = 0x4, scoped, tag = 'scoped memory for tpu_custom_call.1']
    #allocation7 [shape = 'u8[147456]{0}', space=vmem, size = 0x24000, scoped, tag = 'input window, operand 4, single buffered']
    #allocation8 [shape = 'u8[65536]{0}', space=vmem, size = 0x10000, scoped, tag = 'output window, operand 0, single buffered']
    %15 = vsyncpa [#allocation3], 0
    %16 = vsyncpa [#allocation6], 0
    %17 = vsyncpa [#allocation4], 0
    // Predicated region
    $region2: #{tpu_custom_call.1} parent=1 // pred_check
      _
    $region3: #{tpu_custom_call.1} parent=1 // pred_check_branch
      %19 = sbr.rel (0) target = $region5
    $region4: #{tpu_custom_call.1} parent=1 // pred_region
      _
    $region5: #{tpu_custom_call.1} parent=1 // pred_fallthru
      _
    // Predicated region
    $region6: #{tpu_custom_call.1} parent=1 // pred_check
      _
    $region7: #{tpu_custom_call.1} parent=1 // pred_check_branch
      %21 = sbr.rel (0) target = $region9
    $region8: #{tpu_custom_call.1} parent=1 // pred_region
      %s23 = ssub.s32 18432, 18432
      %24 = vsyncadd [#allocation3], %s23
      %s25 = sshll.u32 [#allocation2], 4
      %s26 = int_to_ptr.vmem [resolvable:$true] %s25
      %31 = dma.hbm_to_vmem [thread:$0]  %s1, 18432, %s26, [#allocation3], 512, 512, 32
    $region9: #{tpu_custom_call.1} parent=1 // pred_fallthru
      _
    // Predicated region
    $region10: #{tpu_custom_call.1} parent=1 // pred_check
      _
    $region11: #{tpu_custom_call.1} parent=1 // pred_check_branch
      %33 = sbr.rel (0) target = $region13
    $region12: #{tpu_custom_call.1} parent=1 // pred_region
      %s35 = ssub.s32 4608, 4608
      %36 = vsyncadd [#allocation6], %s35
      %s37 = sshll.u32 [#allocation5], 4
      %s38 = int_to_ptr.vmem [resolvable:$true] %s37
      %43 = dma.hbm_to_vmem [thread:$0]  %s2, 4608, %s38, [#allocation6], 128, 128, 8
    $region13: #{tpu_custom_call.1} parent=1 // pred_fallthru
      _
    // Predicated region
    $region14: #{tpu_custom_call.1} parent=1 // pred_check
      _
    $region15: #{tpu_custom_call.1} parent=1 // pred_check_branch
      %45 = sbr.rel (0) target = $region17
    $region16: #{tpu_custom_call.1} parent=1 // pred_region
      _
    $region17: #{tpu_custom_call.1} parent=1 // pred_fallthru
      _
    // Predicated region
    $region18: #{tpu_custom_call.1} parent=1 // pred_check
      _
    $region19: #{tpu_custom_call.1} parent=1 // pred_check_branch
      %47 = sbr.rel (0) target = $region21
    $region20: #{tpu_custom_call.1} parent=1 // pred_region
      %s49 = ssub.s32 4608, 4608
      %50 = vsyncadd [#allocation6], %s49
      %s51 = sshll.u32 [#allocation7], 4
      %s52 = int_to_ptr.vmem [resolvable:$true] %s51
      %57 = dma.hbm_to_vmem [thread:$0]  %s4, 4608, %s52, [#allocation6], 128, 128, 8
    $region21: #{tpu_custom_call.1} parent=1 // pred_fallthru
      _
    // Predicated region
    $region22: #{tpu_custom_call.1} parent=1 // pred_check
      _
    $region23: #{tpu_custom_call.1} parent=1 // pred_check_branch
      %59 = sbr.rel (0) target = $region25
    $region24: #{tpu_custom_call.1} parent=1 // pred_region
      _
    $region25: #{tpu_custom_call.1} parent=1 // pred_fallthru
      _
    // Predicated region
    $region26: #{tpu_custom_call.1} parent=1 // pred_check
      _
    $region27: #{tpu_custom_call.1} parent=1 // pred_check_branch
      %61 = sbr.rel (0) target = $region29
    $region28: #{tpu_custom_call.1} parent=1 // pred_region
      _
    $region29: #{tpu_custom_call.1} parent=1 // pred_fallthru
      _
    // Predicated region
    $region30: #{tpu_custom_call.1} parent=1 // pred_check
      _
    $region31: #{tpu_custom_call.1} parent=1 // pred_check_branch
      %63 = sbr.rel (0) target = $region33
    $region32: #{tpu_custom_call.1} parent=1 // pred_region
      _
    $region33: #{tpu_custom_call.1} parent=1 // pred_fallthru
      _
    // Predicated region
    $region34: #{tpu_custom_call.1} parent=1 // pred_check
      _
    $region35: #{tpu_custom_call.1} parent=1 // pred_check_branch
      %65 = sbr.rel (0) target = $region37
    $region36: #{tpu_custom_call.1} parent=1 // pred_region
      _
    $region37: #{tpu_custom_call.1} parent=1 // pred_fallthru
      _
    // Predicated region
    $region38: #{tpu_custom_call.1} parent=1 // pred_check
      _
    $region39: #{tpu_custom_call.1} parent=1 // pred_check_branch
      %67 = sbr.rel (0) target = $region41
    $region40: #{tpu_custom_call.1} parent=1 // pred_region
      _
    $region41: #{tpu_custom_call.1} parent=1 // pred_fallthru
      _
    // Predicated region
    $region42: #{tpu_custom_call.1} parent=1 // pred_check
      _
    $region43: #{tpu_custom_call.1} parent=1 // pred_check_branch
      %69 = sbr.rel (0) target = $region45
    $region44: #{tpu_custom_call.1} parent=1 // pred_region
      %70 = dma.done [#allocation3], 18432
    $region45: #{tpu_custom_call.1} parent=1 // pred_fallthru
      _
    // Predicated region
    $region46: #{tpu_custom_call.1} parent=1 // pred_check
      _
    $region47: #{tpu_custom_call.1} parent=1 // pred_check_branch
      %72 = sbr.rel (0) target = $region49
    $region48: #{tpu_custom_call.1} parent=1 // pred_region
      %73 = dma.done [#allocation6], 4608
    $region49: #{tpu_custom_call.1} parent=1 // pred_fallthru
      _
    // Predicated region
    $region50: #{tpu_custom_call.1} parent=1 // pred_check
      _
    $region51: #{tpu_custom_call.1} parent=1 // pred_check_branch
      %75 = sbr.rel (0) target = $region53
    $region52: #{tpu_custom_call.1} parent=1 // pred_region
      %76 = dma.done [#allocation6], 4608
    $region53: #{tpu_custom_call.1} parent=1 // pred_fallthru
      _
    %v77 = vld [vmem:[%s0] sm:$0xff]
    %v78 = vld [vmem:[%s0 + $0x8] sm:$0xff]
    %v79 = vld [vmem:[%s0 + $0x10] sm:$0xff]
    %v80 = vld [vmem:[%s0 + $0x18] sm:$0xff]
    %v81 = vld [vmem:[%s0 + $0x20] sm:$0xff]
    %v82 = vld [vmem:[%s0 + $0x28] sm:$0xff]
    %v83 = vld [vmem:[%s0 + $0x30] sm:$0xff]
    %v84 = vld [vmem:[%s0 + $0x38] sm:$0xff]
    %v85 = vld [vmem:[%s0 + $0x40] sm:$0xff]
    %v86 = vld [vmem:[%s0 + $0x48] sm:$0xff]
    %v87 = vld [vmem:[%s0 + $0x50] sm:$0xff]
    %v88 = vld [vmem:[%s0 + $0x58] sm:$0xff]
    %v89 = vld [vmem:[%s0 + $0x60] sm:$0xff]
    %v90 = vld [vmem:[%s0 + $0x68] sm:$0xff]
    %v91 = vld [vmem:[%s0 + $0x70] sm:$0xff]
    %v92 = vld [vmem:[%s0 + $0x78] sm:$0xff]
    %s93 = scalar_lea.vmem [#allocation5], 128
    %v94 = vld [vmem:[%s93] sm:$0xff]
    %v95 = vld [vmem:[%s93 + $0x8] sm:$0xff]
    %v96 = vld [vmem:[%s93 + $0x10] sm:$0xff]
    %v97 = vld [vmem:[%s93 + $0x18] sm:$0xff]
    %98 = vrot.lane.b32.xlu0 %v77, 17
    %v99 = vpop.permute.xlu0 %98
    %100 = vrot.lane.b32.xlu0 %v81, 17
    %v101 = vpop.permute.xlu0 %100
    %102 = vrot.lane.b32.xlu0 %v85, 17
    %v103 = vpop.permute.xlu0 %102
    %104 = vrot.lane.b32.xlu0 %v89, 17
    %v105 = vpop.permute.xlu0 %104
    %106 = vrot.lane.b32.xlu0 %v78, 17
    %v107 = vpop.permute.xlu0 %106
    %108 = vrot.lane.b32.xlu0 %v82, 17
    %v109 = vpop.permute.xlu0 %108
    %110 = vrot.lane.b32.xlu0 %v86, 17
    %v111 = vpop.permute.xlu0 %110
    %112 = vrot.lane.b32.xlu0 %v90, 17
    %v113 = vpop.permute.xlu0 %112
    %114 = vrot.lane.b32.xlu0 %v79, 17
    %v115 = vpop.permute.xlu0 %114
    %116 = vrot.lane.b32.xlu0 %v83, 17
    %v117 = vpop.permute.xlu0 %116
    %118 = vrot.lane.b32.xlu0 %v87, 17
    %v119 = vpop.permute.xlu0 %118
    %120 = vrot.lane.b32.xlu0 %v91, 17
    %v121 = vpop.permute.xlu0 %120
    %122 = vrot.lane.b32.xlu0 %v80, 17
    %v123 = vpop.permute.xlu0 %122
    %124 = vrot.lane.b32.xlu0 %v84, 17
    %v125 = vpop.permute.xlu0 %124
    %126 = vrot.lane.b32.xlu0 %v88, 17
    %v127 = vpop.permute.xlu0 %126
    %128 = vrot.lane.b32.xlu0 %v92, 17
    %v129 = vpop.permute.xlu0 %128
    %v130 = vlaneseq
    %v131 = vand.u32 %v130, 127
    %vm132 = vcmp.lt.s32.totalorder %v131, 17
    %v133 = vsel %vm132, %v115, %v123
    %v134 = vsel %vm132, %v117, %v125
    %v135 = vsel %vm132, %v119, %v127
    %v136 = vsel %vm132, %v121, %v129
    %v137 = vsel %vm132, %v107, %v115
    %v138 = vsel %vm132, %v109, %v117
    %v139 = vsel %vm132, %v111, %v119
    %v140 = vsel %vm132, %v113, %v121
    %v141 = vsel %vm132, %v99, %v107
    %v142 = vsel %vm132, %v101, %v109
    %v143 = vsel %vm132, %v103, %v111
    %v144 = vsel %vm132, %v105, %v113
    %v145 = vsel %vm132, %v123, %v99
    %v146 = vsel %vm132, %v125, %v101
    %v147 = vsel %vm132, %v127, %v103
    %v148 = vsel %vm132, %v129, %v105
    %v149 = vld [vmem:[#allocation2] sm:$0xff]
    %v150 = vld [vmem:[#allocation2 + $0x8] sm:$0xff]
    %v151 = vld [vmem:[#allocation2 + $0x10] sm:$0xff]
    %v152 = vld [vmem:[#allocation2 + $0x18] sm:$0xff]
    %v153 = vld [vmem:[#allocation2 + $0x20] sm:$0xff]
    %v154 = vld [vmem:[#allocation2 + $0x28] sm:$0xff]
    %v155 = vld [vmem:[#allocation2 + $0x30] sm:$0xff]
    %v156 = vld [vmem:[#allocation2 + $0x38] sm:$0xff]
    %v157 = vld [vmem:[#allocation2 + $0x40] sm:$0xff]
    %v158 = vld [vmem:[#allocation2 + $0x48] sm:$0xff]
    %v159 = vld [vmem:[#allocation2 + $0x50] sm:$0xff]
    %v160 = vld [vmem:[#allocation2 + $0x58] sm:$0xff]
    %v161 = vld [vmem:[#allocation2 + $0x60] sm:$0xff]
    %v162 = vld [vmem:[#allocation2 + $0x68] sm:$0xff]
    %v163 = vld [vmem:[#allocation2 + $0x70] sm:$0xff]
    %v164 = vld [vmem:[#allocation2 + $0x78] sm:$0xff]
    %v165 = vmul.f32 %v145, %v149
    %v166 = vmul.f32 %v141, %v150
    %v167 = vmul.f32 %v137, %v151
    %v168 = vmul.f32 %v133, %v152
    %v169 = vmul.f32 %v146, %v153
    %v170 = vmul.f32 %v142, %v154
    %v171 = vmul.f32 %v138, %v155
    %v172 = vmul.f32 %v134, %v156
    %v173 = vmul.f32 %v147, %v157
    %v174 = vmul.f32 %v143, %v158
    %v175 = vmul.f32 %v139, %v159
    %v176 = vmul.f32 %v135, %v160
    %v177 = vmul.f32 %v148, %v161
    %v178 = vmul.f32 %v144, %v162
    %v179 = vmul.f32 %v140, %v163
    %v180 = vmul.f32 %v136, %v164
    %v181 = vld [vmem:[#allocation5] sm:$0xff]
    %v182 = vld [vmem:[#allocation5 + $0x8] sm:$0xff]
    %v183 = vld [vmem:[#allocation5 + $0x10] sm:$0xff]
    %v184 = vld [vmem:[#allocation5 + $0x18] sm:$0xff]
    %vm185 = vcmask 261120
    %v187 = vsel %vm185, %v181, 0
    %v190 = vsel %vm185, %v182, 0
    %v193 = vsel %vm185, %v183, 0
    %v196 = vsel %vm185, %v184, 0
    %198 = vmatprep.subr.mxu0 %v166
    %199 = vmatpush1.msra.mxu0 %v165
    %200 = vmatprep.subr.mxu0 %v170
    %201 = vmatpush1.msra.mxu0 %v169
    %202 = vmatprep.subr.mxu0 %v174
    %203 = vmatpush1.msra.mxu0 %v173
    %204 = vmatprep.subr.mxu0 %v178
    %205 = vmatpush1.msra.mxu0 %v177
    %206 = vmatprep.subr.mxu0 0.0
    %207 = vmatpush1.msra.mxu0 0.0
    %208 = vmatprep.subr.mxu0 0.0
    %209 = vmatpush1.msra.mxu0 0.0
    %210 = vmatprep.subr.mxu0 0.0
    %211 = vmatpush1.msra.mxu0 0.0
    %212 = vmatprep.subr.mxu0 0.0
    %213 = vmatpush1.msra.mxu0 0.0
    %214 = vmatprep.subr.mxu0 0.0
    %215 = vmatpush1.msra.mxu0 0.0
    %216 = vmatprep.subr.mxu0 0.0
    %217 = vmatpush1.msra.mxu0 0.0
    %218 = vmatprep.subr.mxu0 0.0
    %219 = vmatpush1.msra.mxu0 0.0
    %220 = vmatprep.subr.mxu0 0.0
    %221 = vmatpush1.msra.mxu0 0.0
    %222 = vmatprep.subr.mxu0 0.0
    %223 = vmatpush1.msra.mxu0 0.0
    %224 = vmatprep.subr.mxu0 0.0
    %225 = vmatpush1.msra.mxu0 0.0
    %226 = vmatprep.subr.mxu0 0.0
    %227 = vmatpush1.msra.mxu0 0.0
    %228 = vmatprep.subr.mxu0 0.0
    %229 = vmatpush1.msra.mxu0 0.0
    %230 = vmatprep.subr.mxu0 0.0
    %231 = vmatpush1.msra.mxu0 0.0
    %232 = vmatprep.subr.mxu0 0.0
    %233 = vmatpush1.msra.mxu0 0.0
    %234 = vmatprep.subr.mxu0 0.0
    %235 = vmatpush1.msra.mxu0 0.0
    %236 = vmatprep.subr.mxu0 0.0
    %237 = vmatpush1.msra.mxu0 0.0
    %238 = vmatprep.subr.mxu0 0.0
    %239 = vmatpush1.msra.mxu0 0.0
    %240 = vmatprep.subr.mxu0 0.0
    %241 = vmatpush1.msra.mxu0 0.0
    %242 = vmatprep.subr.mxu0 0.0
    %243 = vmatpush1.msra.mxu0 0.0
    %244 = vmatprep.subr.mxu0 0.0
    %245 = vmatpush1.msra.mxu0 0.0
    %246 = vmatprep.subr.mxu0 0.0
    %247 = vmatpush1.msra.mxu0 0.0
    %248 = vmatprep.subr.mxu0 0.0
    %249 = vmatpush1.msra.mxu0 0.0
    %250 = vmatprep.subr.mxu0 0.0
    %251 = vmatpush1.msra.mxu0 0.0
    %252 = vmatprep.subr.mxu0 0.0
    %253 = vmatpush1.msra.mxu0 0.0
    %254 = vmatprep.subr.mxu0 0.0
    %255 = vmatpush1.msra.mxu0 0.0
    %256 = vmatprep.subr.mxu0 0.0
    %257 = vmatpush1.msra.mxu0 0.0
    %258 = vmatprep.subr.mxu0 0.0
    %259 = vmatpush1.msra.mxu0 0.0
    %260 = vmatprep.subr.mxu0 0.0
    %261 = vmatpush1.msra.mxu0 0.0
    %262 = vmatprep.mubr.f32.mxu0 0.0
    %263 = vmatmul.mubr.f32.gmra.mrb[0].mxu0 %v187
    %v264 = vpop.f32.mrb[0].mxu0
    %v265 = vadd.f32 0.0, %v264
    %v266 = vpop.f32.mrb[0].mxu0
    %v267 = vadd.f32 0.0, %v266
    %268 = vmatprep.mubr.f32.mxu0 0.0
    %269 = vmatmul.mubr.f32.gmra.mrb[0].mxu0 %v190
    %v270 = vpop.f32.mrb[0].mxu0
    %v271 = vadd.f32 0.0, %v270
    %v272 = vpop.f32.mrb[0].mxu0
    %v273 = vadd.f32 0.0, %v272
    %274 = vmatprep.mubr.f32.mxu0 0.0
    %275 = vmatmul.mubr.f32.gmra.mrb[0].mxu0 %v193
    %v276 = vpop.f32.mrb[0].mxu0
    %v277 = vadd.f32 0.0, %v276
    %v278 = vpop.f32.mrb[0].mxu0
    %v279 = vadd.f32 0.0, %v278
    %280 = vmatprep.mubr.f32.mxu0 0.0
    %281 = vmatmul.mubr.f32.gmra.mrb[0].mxu0 %v196
    %v282 = vpop.f32.mrb[0].mxu0
    %v283 = vadd.f32 0.0, %v282
    %v284 = vpop.f32.mrb[0].mxu0
    %v285 = vadd.f32 0.0, %v284
    %286 = vdwg.mxu0
    %287 = vmatprep.subr.mxu0 %v168
    %288 = vmatpush1.msra.mxu0 %v167
    %289 = vmatprep.subr.mxu0 %v172
    %290 = vmatpush1.msra.mxu0 %v171
    %291 = vmatprep.subr.mxu0 %v176
    %292 = vmatpush1.msra.mxu0 %v175
    %293 = vmatprep.subr.mxu0 %v180
    %294 = vmatpush1.msra.mxu0 %v179
    %295 = vmatprep.subr.mxu0 0.0
    %296 = vmatpush1.msra.mxu0 0.0
    %297 = vmatprep.subr.mxu0 0.0
    %298 = vmatpush1.msra.mxu0 0.0
    %299 = vmatprep.subr.mxu0 0.0
    %300 = vmatpush1.msra.mxu0 0.0
    %301 = vmatprep.subr.mxu0 0.0
    %302 = vmatpush1.msra.mxu0 0.0
    %303 = vmatprep.subr.mxu0 0.0
    %304 = vmatpush1.msra.mxu0 0.0
    %305 = vmatprep.subr.mxu0 0.0
    %306 = vmatpush1.msra.mxu0 0.0
    %307 = vmatprep.subr.mxu0 0.0
    %308 = vmatpush1.msra.mxu0 0.0
    %309 = vmatprep.subr.mxu0 0.0
    %310 = vmatpush1.msra.mxu0 0.0
    %311 = vmatprep.subr.mxu0 0.0
    %312 = vmatpush1.msra.mxu0 0.0
    %313 = vmatprep.subr.mxu0 0.0
    %314 = vmatpush1.msra.mxu0 0.0
    %315 = vmatprep.subr.mxu0 0.0
    %316 = vmatpush1.msra.mxu0 0.0
    %317 = vmatprep.subr.mxu0 0.0
    %318 = vmatpush1.msra.mxu0 0.0
    %319 = vmatprep.subr.mxu0 0.0
    %320 = vmatpush1.msra.mxu0 0.0
    %321 = vmatprep.subr.mxu0 0.0
    %322 = vmatpush1.msra.mxu0 0.0
    %323 = vmatprep.subr.mxu0 0.0
    %324 = vmatpush1.msra.mxu0 0.0
    %325 = vmatprep.subr.mxu0 0.0
    %326 = vmatpush1.msra.mxu0 0.0
    %327 = vmatprep.subr.mxu0 0.0
    %328 = vmatpush1.msra.mxu0 0.0
    %329 = vmatprep.subr.mxu0 0.0
    %330 = vmatpush1.msra.mxu0 0.0
    %331 = vmatprep.subr.mxu0 0.0
    %332 = vmatpush1.msra.mxu0 0.0
    %333 = vmatprep.subr.mxu0 0.0
    %334 = vmatpush1.msra.mxu0 0.0
    %335 = vmatprep.subr.mxu0 0.0
    %336 = vmatpush1.msra.mxu0 0.0
    %337 = vmatprep.subr.mxu0 0.0
    %338 = vmatpush1.msra.mxu0 0.0
    %339 = vmatprep.subr.mxu0 0.0
    %340 = vmatpush1.msra.mxu0 0.0
    %341 = vmatprep.subr.mxu0 0.0
    %342 = vmatpush1.msra.mxu0 0.0
    %343 = vmatprep.subr.mxu0 0.0
    %344 = vmatpush1.msra.mxu0 0.0
    %345 = vmatprep.subr.mxu0 0.0
    %346 = vmatpush1.msra.mxu0 0.0
    %347 = vmatprep.subr.mxu0 0.0
    %348 = vmatpush1.msra.mxu0 0.0
    %349 = vmatprep.subr.mxu0 0.0
    %350 = vmatpush1.msra.mxu0 0.0
    %351 = vmatprep.mubr.f32.mxu0 0.0
    %352 = vmatmul.mubr.f32.gmra.mrb[0].mxu0 %v187
    %v353 = vpop.f32.mrb[0].mxu0
    %v354 = vadd.f32 0.0, %v353
    %v355 = vpop.f32.mrb[0].mxu0
    %v356 = vadd.f32 0.0, %v355
    %357 = vmatprep.mubr.f32.mxu0 0.0
    %358 = vmatmul.mubr.f32.gmra.mrb[0].mxu0 %v190
    %v359 = vpop.f32.mrb[0].mxu0
    %v360 = vadd.f32 0.0, %v359
    %v361 = vpop.f32.mrb[0].mxu0
    %v362 = vadd.f32 0.0, %v361
    %363 = vmatprep.mubr.f32.mxu0 0.0
    %364 = vmatmul.mubr.f32.gmra.mrb[0].mxu0 %v193
    %v365 = vpop.f32.mrb[0].mxu0
    %v366 = vadd.f32 0.0, %v365
    %v367 = vpop.f32.mrb[0].mxu0
    %v368 = vadd.f32 0.0, %v367
    %369 = vmatprep.mubr.f32.mxu0 0.0
    %370 = vmatmul.mubr.f32.gmra.mrb[0].mxu0 %v196
    %v371 = vpop.f32.mrb[0].mxu0
    %v372 = vadd.f32 0.0, %v371
    %v373 = vpop.f32.mrb[0].mxu0
    %v374 = vadd.f32 0.0, %v373
    %375 = vdwg.mxu0
    %v377 = vsel %vm185, %v94, 0
    %v380 = vsel %vm185, %v95, 0
    %v383 = vsel %vm185, %v96, 0
    %v386 = vsel %vm185, %v97, 0
    %388 = vmatprep.subr.mxu0 %v78
    %389 = vmatpush1.msra.mxu0 %v77
    %390 = vmatprep.subr.mxu0 %v82
    %391 = vmatpush1.msra.mxu0 %v81
    %392 = vmatprep.subr.mxu0 %v86
    %393 = vmatpush1.msra.mxu0 %v85
    %394 = vmatprep.subr.mxu0 %v90
    %395 = vmatpush1.msra.mxu0 %v89
    %396 = vmatprep.subr.mxu0 0.0
    %397 = vmatpush1.msra.mxu0 0.0
    %398 = vmatprep.subr.mxu0 0.0
    %399 = vmatpush1.msra.mxu0 0.0
    %400 = vmatprep.subr.mxu0 0.0
    %401 = vmatpush1.msra.mxu0 0.0
    %402 = vmatprep.subr.mxu0 0.0
    %403 = vmatpush1.msra.mxu0 0.0
    %404 = vmatprep.subr.mxu0 0.0
    %405 = vmatpush1.msra.mxu0 0.0
    %406 = vmatprep.subr.mxu0 0.0
    %407 = vmatpush1.msra.mxu0 0.0
    %408 = vmatprep.subr.mxu0 0.0
    %409 = vmatpush1.msra.mxu0 0.0
    %410 = vmatprep.subr.mxu0 0.0
    %411 = vmatpush1.msra.mxu0 0.0
    %412 = vmatprep.subr.mxu0 0.0
    %413 = vmatpush1.msra.mxu0 0.0
    %414 = vmatprep.subr.mxu0 0.0
    %415 = vmatpush1.msra.mxu0 0.0
    %416 = vmatprep.subr.mxu0 0.0
    %417 = vmatpush1.msra.mxu0 0.0
    %418 = vmatprep.subr.mxu0 0.0
    %419 = vmatpush1.msra.mxu0 0.0
    %420 = vmatprep.subr.mxu0 0.0
    %421 = vmatpush1.msra.mxu0 0.0
    %422 = vmatprep.subr.mxu0 0.0
    %423 = vmatpush1.msra.mxu0 0.0
    %424 = vmatprep.subr.mxu0 0.0
    %425 = vmatpush1.msra.mxu0 0.0
    %426 = vmatprep.subr.mxu0 0.0
    %427 = vmatpush1.msra.mxu0 0.0
    %428 = vmatprep.subr.mxu0 0.0
    %429 = vmatpush1.msra.mxu0 0.0
    %430 = vmatprep.subr.mxu0 0.0
    %431 = vmatpush1.msra.mxu0 0.0
    %432 = vmatprep.subr.mxu0 0.0
    %433 = vmatpush1.msra.mxu0 0.0
    %434 = vmatprep.subr.mxu0 0.0
    %435 = vmatpush1.msra.mxu0 0.0
    %436 = vmatprep.subr.mxu0 0.0
    %437 = vmatpush1.msra.mxu0 0.0
    %438 = vmatprep.subr.mxu0 0.0
    %439 = vmatpush1.msra.mxu0 0.0
    %440 = vmatprep.subr.mxu0 0.0
    %441 = vmatpush1.msra.mxu0 0.0
    %442 = vmatprep.subr.mxu0 0.0
    %443 = vmatpush1.msra.mxu0 0.0
    %444 = vmatprep.subr.mxu0 0.0
    %445 = vmatpush1.msra.mxu0 0.0
    %446 = vmatprep.subr.mxu0 0.0
    %447 = vmatpush1.msra.mxu0 0.0
    %448 = vmatprep.subr.mxu0 0.0
    %449 = vmatpush1.msra.mxu0 0.0
    %450 = vmatprep.subr.mxu0 0.0
    %451 = vmatpush1.msra.mxu0 0.0
    %452 = vmatprep.mubr.f32.mxu0 0.0
    %453 = vmatmul.mubr.f32.gmra.mrb[0].mxu0 %v377
    %v454 = vpop.f32.mrb[0].mxu0
    %v455 = vadd.f32 %v265, %v454
    %v456 = vpop.f32.mrb[0].mxu0
    %v457 = vadd.f32 %v267, %v456
    %458 = vmatprep.mubr.f32.mxu0 0.0
    %459 = vmatmul.mubr.f32.gmra.mrb[0].mxu0 %v380
    %v460 = vpop.f32.mrb[0].mxu0
    %v461 = vadd.f32 %v271, %v460
    %v462 = vpop.f32.mrb[0].mxu0
    %v463 = vadd.f32 %v273, %v462
    %464 = vmatprep.mubr.f32.mxu0 0.0
    %465 = vmatmul.mubr.f32.gmra.mrb[0].mxu0 %v383
    %v466 = vpop.f32.mrb[0].mxu0
    %v467 = vadd.f32 %v277, %v466
    %v468 = vpop.f32.mrb[0].mxu0
    %v469 = vadd.f32 %v279, %v468
    %470 = vmatprep.mubr.f32.mxu0 0.0
    %471 = vmatmul.mubr.f32.gmra.mrb[0].mxu0 %v386
    %v472 = vpop.f32.mrb[0].mxu0
    %v473 = vadd.f32 %v283, %v472
    %v474 = vpop.f32.mrb[0].mxu0
    %v475 = vadd.f32 %v285, %v474
    %476 = vdwg.mxu0
    %477 = vmatprep.subr.mxu0 %v80
    %478 = vmatpush1.msra.mxu0 %v79
    %479 = vmatprep.subr.mxu0 %v84
    %480 = vmatpush1.msra.mxu0 %v83
    %481 = vmatprep.subr.mxu0 %v88
    %482 = vmatpush1.msra.mxu0 %v87
    %483 = vmatprep.subr.mxu0 %v92
    %484 = vmatpush1.msra.mxu0 %v91
    %485 = vmatprep.subr.mxu0 0.0
    %486 = vmatpush1.msra.mxu0 0.0
    %487 = vmatprep.subr.mxu0 0.0
    %488 = vmatpush1.msra.mxu0 0.0
    %489 = vmatprep.subr.mxu0 0.0
    %490 = vmatpush1.msra.mxu0 0.0
    %491 = vmatprep.subr.mxu0 0.0
    %492 = vmatpush1.msra.mxu0 0.0
    %493 = vmatprep.subr.mxu0 0.0
    %494 = vmatpush1.msra.mxu0 0.0
    %495 = vmatprep.subr.mxu0 0.0
    %496 = vmatpush1.msra.mxu0 0.0
    %497 = vmatprep.subr.mxu0 0.0
    %498 = vmatpush1.msra.mxu0 0.0
    %499 = vmatprep.subr.mxu0 0.0
    %500 = vmatpush1.msra.mxu0 0.0
    %501 = vmatprep.subr.mxu0 0.0
    %502 = vmatpush1.msra.mxu0 0.0
    %503 = vmatprep.subr.mxu0 0.0
    %504 = vmatpush1.msra.mxu0 0.0
    %505 = vmatprep.subr.mxu0 0.0
    %506 = vmatpush1.msra.mxu0 0.0
    %507 = vmatprep.subr.mxu0 0.0
    %508 = vmatpush1.msra.mxu0 0.0
    %509 = vmatprep.subr.mxu0 0.0
    %510 = vmatpush1.msra.mxu0 0.0
    %511 = vmatprep.subr.mxu0 0.0
    %512 = vmatpush1.msra.mxu0 0.0
    %513 = vmatprep.subr.mxu0 0.0
    %514 = vmatpush1.msra.mxu0 0.0
    %515 = vmatprep.subr.mxu0 0.0
    %516 = vmatpush1.msra.mxu0 0.0
    %517 = vmatprep.subr.mxu0 0.0
    %518 = vmatpush1.msra.mxu0 0.0
    %519 = vmatprep.subr.mxu0 0.0
    %520 = vmatpush1.msra.mxu0 0.0
    %521 = vmatprep.subr.mxu0 0.0
    %522 = vmatpush1.msra.mxu0 0.0
    %523 = vmatprep.subr.mxu0 0.0
    %524 = vmatpush1.msra.mxu0 0.0
    %525 = vmatprep.subr.mxu0 0.0
    %526 = vmatpush1.msra.mxu0 0.0
    %527 = vmatprep.subr.mxu0 0.0
    %528 = vmatpush1.msra.mxu0 0.0
    %529 = vmatprep.subr.mxu0 0.0
    %530 = vmatpush1.msra.mxu0 0.0
    %531 = vmatprep.subr.mxu0 0.0
    %532 = vmatpush1.msra.mxu0 0.0
    %533 = vmatprep.subr.mxu0 0.0
    %534 = vmatpush1.msra.mxu0 0.0
    %535 = vmatprep.subr.mxu0 0.0
    %536 = vmatpush1.msra.mxu0 0.0
    %537 = vmatprep.subr.mxu0 0.0
    %538 = vmatpush1.msra.mxu0 0.0
    %539 = vmatprep.subr.mxu0 0.0
    %540 = vmatpush1.msra.mxu0 0.0
    %541 = vmatprep.mubr.f32.mxu0 0.0
    %542 = vmatmul.mubr.f32.gmra.mrb[0].mxu0 %v377
    %v543 = vpop.f32.mrb[0].mxu0
    %v544 = vadd.f32 %v354, %v543
    %v545 = vpop.f32.mrb[0].mxu0
    %v546 = vadd.f32 %v356, %v545
    %547 = vmatprep.mubr.f32.mxu0 0.0
    %548 = vmatmul.mubr.f32.gmra.mrb[0].mxu0 %v380
    %v549 = vpop.f32.mrb[0].mxu0
    %v550 = vadd.f32 %v360, %v549
    %v551 = vpop.f32.mrb[0].mxu0
    %v552 = vadd.f32 %v362, %v551
    %553 = vmatprep.mubr.f32.mxu0 0.0
    %554 = vmatmul.mubr.f32.gmra.mrb[0].mxu0 %v383
    %v555 = vpop.f32.mrb[0].mxu0
    %v556 = vadd.f32 %v366, %v555
    %v557 = vpop.f32.mrb[0].mxu0
    %v558 = vadd.f32 %v368, %v557
    %559 = vmatprep.mubr.f32.mxu0 0.0
    %560 = vmatmul.mubr.f32.gmra.mrb[0].mxu0 %v386
    %v561 = vpop.f32.mrb[0].mxu0
    %v562 = vadd.f32 %v372, %v561
    %v563 = vpop.f32.mrb[0].mxu0
    %v564 = vadd.f32 %v374, %v563
    %565 = vdwg.mxu0
    %566 = vrot.lane.b32.xlu0 %v77, 16
    %v567 = vpop.permute.xlu0 %566
    %568 = vrot.lane.b32.xlu0 %v81, 16
    %v569 = vpop.permute.xlu0 %568
    %570 = vrot.lane.b32.xlu0 %v85, 16
    %v571 = vpop.permute.xlu0 %570
    %572 = vrot.lane.b32.xlu0 %v89, 16
    %v573 = vpop.permute.xlu0 %572
    %574 = vrot.lane.b32.xlu0 %v78, 16
    %v575 = vpop.permute.xlu0 %574
    %576 = vrot.lane.b32.xlu0 %v82, 16
    %v577 = vpop.permute.xlu0 %576
    %578 = vrot.lane.b32.xlu0 %v86, 16
    %v579 = vpop.permute.xlu0 %578
    %580 = vrot.lane.b32.xlu0 %v90, 16
    %v581 = vpop.permute.xlu0 %580
    %582 = vrot.lane.b32.xlu0 %v79, 16
    %v583 = vpop.permute.xlu0 %582
    %584 = vrot.lane.b32.xlu0 %v83, 16
    %v585 = vpop.permute.xlu0 %584
    %586 = vrot.lane.b32.xlu0 %v87, 16
    %v587 = vpop.permute.xlu0 %586
    %588 = vrot.lane.b32.xlu0 %v91, 16
    %v589 = vpop.permute.xlu0 %588
    %590 = vrot.lane.b32.xlu0 %v80, 16
    %v591 = vpop.permute.xlu0 %590
    %592 = vrot.lane.b32.xlu0 %v84, 16
    %v593 = vpop.permute.xlu0 %592
    %594 = vrot.lane.b32.xlu0 %v88, 16
    %v595 = vpop.permute.xlu0 %594
    %596 = vrot.lane.b32.xlu0 %v92, 16
    %v597 = vpop.permute.xlu0 %596
    %vm598 = vcmp.lt.s32.totalorder %v131, 16
    %v599 = vsel %vm598, %v583, %v591
    %v600 = vsel %vm598, %v585, %v593
    %v601 = vsel %vm598, %v587, %v595
    %v602 = vsel %vm598, %v589, %v597
    %v603 = vsel %vm598, %v575, %v583
    %v604 = vsel %vm598, %v577, %v585
    %v605 = vsel %vm598, %v579, %v587
    %v606 = vsel %vm598, %v581, %v589
    %v607 = vsel %vm598, %v567, %v575
    %v608 = vsel %vm598, %v569, %v577
    %v609 = vsel %vm598, %v571, %v579
    %v610 = vsel %vm598, %v573, %v581
    %v611 = vsel %vm598, %v591, %v567
    %v612 = vsel %vm598, %v593, %v569
    %v613 = vsel %vm598, %v595, %v571
    %v614 = vsel %vm598, %v597, %v573
    %s615 = scalar_lea.vmem [#allocation2], 128
    %v616 = vld [vmem:[%s615] sm:$0xff]
    %v617 = vld [vmem:[%s615 + $0x8] sm:$0xff]
    %v618 = vld [vmem:[%s615 + $0x10] sm:$0xff]
    %v619 = vld [vmem:[%s615 + $0x18] sm:$0xff]
    %v620 = vld [vmem:[%s615 + $0x20] sm:$0xff]
    %v621 = vld [vmem:[%s615 + $0x28] sm:$0xff]
    %v622 = vld [vmem:[%s615 + $0x30] sm:$0xff]
    %v623 = vld [vmem:[%s615 + $0x38] sm:$0xff]
    %v624 = vld [vmem:[%s615 + $0x40] sm:$0xff]
    %v625 = vld [vmem:[%s615 + $0x48] sm:$0xff]
    %v626 = vld [vmem:[%s615 + $0x50] sm:$0xff]
    %v627 = vld [vmem:[%s615 + $0x58] sm:$0xff]
    %v628 = vld [vmem:[%s615 + $0x60] sm:$0xff]
    %v629 = vld [vmem:[%s615 + $0x68] sm:$0xff]
    %v630 = vld [vmem:[%s615 + $0x70] sm:$0xff]
    %v631 = vld [vmem:[%s615 + $0x78] sm:$0xff]
    %v632 = vmul.f32 %v611, %v616
    %v633 = vmul.f32 %v607, %v617
    %v634 = vmul.f32 %v603, %v618
    %v635 = vmul.f32 %v599, %v619
    %v636 = vmul.f32 %v612, %v620
    %v637 = vmul.f32 %v608, %v621
    %v638 = vmul.f32 %v604, %v622
    %v639 = vmul.f32 %v600, %v623
    %v640 = vmul.f32 %v613, %v624
    %v641 = vmul.f32 %v609, %v625
    %v642 = vmul.f32 %v605, %v626
    %v643 = vmul.f32 %v601, %v627
    %v644 = vmul.f32 %v614, %v628
    %v645 = vmul.f32 %v610, %v629
    %v646 = vmul.f32 %v606, %v630
    %v647 = vmul.f32 %v602, %v631
    %s648 = scalar_lea.vmem [#allocation5], 32
    %v649 = vld [vmem:[%s648] sm:$0xff]
    %v650 = vld [vmem:[%s648 + $0x8] sm:$0xff]
    %v651 = vld [vmem:[%s648 + $0x10] sm:$0xff]
    %v652 = vld [vmem:[%s648 + $0x18] sm:$0xff]
    %v654 = vsel %vm185, %v649, 0
    %v657 = vsel %vm185, %v650, 0
    %v660 = vsel %vm185, %v651, 0
    %v663 = vsel %vm185, %v652, 0
    %665 = vmatprep.subr.mxu0 %v633
    %666 = vmatpush1.msra.mxu0 %v632
    %667 = vmatprep.subr.mxu0 %v637
    %668 = vmatpush1.msra.mxu0 %v636
    %669 = vmatprep.subr.mxu0 %v641
    %670 = vmatpush1.msra.mxu0 %v640
    %671 = vmatprep.subr.mxu0 %v645
    %672 = vmatpush1.msra.mxu0 %v644
    %673 = vmatprep.subr.mxu0 0.0
    %674 = vmatpush1.msra.mxu0 0.0
    %675 = vmatprep.subr.mxu0 0.0
    %676 = vmatpush1.msra.mxu0 0.0
    %677 = vmatprep.subr.mxu0 0.0
    %678 = vmatpush1.msra.mxu0 0.0
    %679 = vmatprep.subr.mxu0 0.0
    %680 = vmatpush1.msra.mxu0 0.0
    %681 = vmatprep.subr.mxu0 0.0
    %682 = vmatpush1.msra.mxu0 0.0
    %683 = vmatprep.subr.mxu0 0.0
    %684 = vmatpush1.msra.mxu0 0.0
    %685 = vmatprep.subr.mxu0 0.0
    %686 = vmatpush1.msra.mxu0 0.0
    %687 = vmatprep.subr.mxu0 0.0
    %688 = vmatpush1.msra.mxu0 0.0
    %689 = vmatprep.subr.mxu0 0.0
    %690 = vmatpush1.msra.mxu0 0.0
    %691 = vmatprep.subr.mxu0 0.0
    %692 = vmatpush1.msra.mxu0 0.0
    %693 = vmatprep.subr.mxu0 0.0
    %694 = vmatpush1.msra.mxu0 0.0
    %695 = vmatprep.subr.mxu0 0.0
    %696 = vmatpush1.msra.mxu0 0.0
    %697 = vmatprep.subr.mxu0 0.0
    %698 = vmatpush1.msra.mxu0 0.0
    %699 = vmatprep.subr.mxu0 0.0
    %700 = vmatpush1.msra.mxu0 0.0
    %701 = vmatprep.subr.mxu0 0.0
    %702 = vmatpush1.msra.mxu0 0.0
    %703 = vmatprep.subr.mxu0 0.0
    %704 = vmatpush1.msra.mxu0 0.0
    %705 = vmatprep.subr.mxu0 0.0
    %706 = vmatpush1.msra.mxu0 0.0
    %707 = vmatprep.subr.mxu0 0.0
    %708 = vmatpush1.msra.mxu0 0.0
    %709 = vmatprep.subr.mxu0 0.0
    %710 = vmatpush1.msra.mxu0 0.0
    %711 = vmatprep.subr.mxu0 0.0
    %712 = vmatpush1.msra.mxu0 0.0
    %713 = vmatprep.subr.mxu0 0.0
    %714 = vmatpush1.msra.mxu0 0.0
    %715 = vmatprep.subr.mxu0 0.0
    %716 = vmatpush1.msra.mxu0 0.0
    %717 = vmatprep.subr.mxu0 0.0
    %718 = vmatpush1.msra.mxu0 0.0
    %719 = vmatprep.subr.mxu0 0.0
    %720 = vmatpush1.msra.mxu0 0.0
    %721 = vmatprep.subr.mxu0 0.0
    %722 = vmatpush1.msra.mxu0 0.0
    %723 = vmatprep.subr.mxu0 0.0
    %724 = vmatpush1.msra.mxu0 0.0
    %725 = vmatprep.subr.mxu0 0.0
    %726 = vmatpush1.msra.mxu0 0.0
    %727 = vmatprep.subr.mxu0 0.0
    %728 = vmatpush1.msra.mxu0 0.0
    %729 = vmatprep.mubr.f32.mxu0 0.0
    %730 = vmatmul.mubr.f32.gmra.mrb[0].mxu0 %v654
    %v731 = vpop.f32.mrb[0].mxu0
    %v732 = vadd.f32 0.0, %v731
    %v733 = vpop.f32.mrb[0].mxu0
    %v734 = vadd.f32 0.0, %v733
    %735 = vmatprep.mubr.f32.mxu0 0.0
    %736 = vmatmul.mubr.f32.gmra.mrb[0].mxu0 %v657
    %v737 = vpop.f32.mrb[0].mxu0
    %v738 = vadd.f32 0.0, %v737
    %v739 = vpop.f32.mrb[0].mxu0
    %v740 = vadd.f32 0.0, %v739
    %741 = vmatprep.mubr.f32.mxu0 0.0
    %742 = vmatmul.mubr.f32.gmra.mrb[0].mxu0 %v660
    %v743 = vpop.f32.mrb[0].mxu0
    %v744 = vadd.f32 0.0, %v743
    %v745 = vpop.f32.mrb[0].mxu0
    %v746 = vadd.f32 0.0, %v745
    %747 = vmatprep.mubr.f32.mxu0 0.0
    %748 = vmatmul.mubr.f32.gmra.mrb[0].mxu0 %v663
    %v749 = vpop.f32.mrb[0].mxu0
    %v750 = vadd.f32 0.0, %v749
    %v751 = vpop.f32.mrb[0].mxu0
    %v752 = vadd.f32 0.0, %v751
    %753 = vdwg.mxu0
    %754 = vmatprep.subr.mxu0 %v635
    %755 = vmatpush1.msra.mxu0 %v634
    %756 = vmatprep.subr.mxu0 %v639
    %757 = vmatpush1.msra.mxu0 %v638
    %758 = vmatprep.subr.mxu0 %v643
    %759 = vmatpush1.msra.mxu0 %v642
    %760 = vmatprep.subr.mxu0 %v647
    %761 = vmatpush1.msra.mxu0 %v646
    %762 = vmatprep.subr.mxu0 0.0
    %763 = vmatpush1.msra.mxu0 0.0
    %764 = vmatprep.subr.mxu0 0.0
    %765 = vmatpush1.msra.mxu0 0.0
    %766 = vmatprep.subr.mxu0 0.0
    %767 = vmatpush1.msra.mxu0 0.0
    %768 = vmatprep.subr.mxu0 0.0
    %769 = vmatpush1.msra.mxu0 0.0
    %770 = vmatprep.subr.mxu0 0.0
    %771 = vmatpush1.msra.mxu0 0.0
    %772 = vmatprep.subr.mxu0 0.0
    %773 = vmatpush1.msra.mxu0 0.0
    %774 = vmatprep.subr.mxu0 0.0
    %775 = vmatpush1.msra.mxu0 0.0
    %776 = vmatprep.subr.mxu0 0.0
    %777 = vmatpush1.msra.mxu0 0.0
    %778 = vmatprep.subr.mxu0 0.0
    %779 = vmatpush1.msra.mxu0 0.0
    %780 = vmatprep.subr.mxu0 0.0
    %781 = vmatpush1.msra.mxu0 0.0
    %782 = vmatprep.subr.mxu0 0.0
    %783 = vmatpush1.msra.mxu0 0.0
    %784 = vmatprep.subr.mxu0 0.0
    %785 = vmatpush1.msra.mxu0 0.0
    %786 = vmatprep.subr.mxu0 0.0
    %787 = vmatpush1.msra.mxu0 0.0
    %788 = vmatprep.subr.mxu0 0.0
    %789 = vmatpush1.msra.mxu0 0.0
    %790 = vmatprep.subr.mxu0 0.0
    %791 = vmatpush1.msra.mxu0 0.0
    %792 = vmatprep.subr.mxu0 0.0
    %793 = vmatpush1.msra.mxu0 0.0
    %794 = vmatprep.subr.mxu0 0.0
    %795 = vmatpush1.msra.mxu0 0.0
    %796 = vmatprep.subr.mxu0 0.0
    %797 = vmatpush1.msra.mxu0 0.0
    %798 = vmatprep.subr.mxu0 0.0
    %799 = vmatpush1.msra.mxu0 0.0
    %800 = vmatprep.subr.mxu0 0.0
    %801 = vmatpush1.msra.mxu0 0.0
    %802 = vmatprep.subr.mxu0 0.0
    %803 = vmatpush1.msra.mxu0 0.0
    %804 = vmatprep.subr.mxu0 0.0
    %805 = vmatpush1.msra.mxu0 0.0
    %806 = vmatprep.subr.mxu0 0.0
    %807 = vmatpush1.msra.mxu0 0.0
    %808 = vmatprep.subr.mxu0 0.0
    %809 = vmatpush1.msra.mxu0 0.0
    %810 = vmatprep.subr.mxu0 0.0
    %811 = vmatpush1.msra.mxu0 0.0
    %812 = vmatprep.subr.mxu0 0.0
    %813 = vmatpush1.msra.mxu0 0.0
    %814 = vmatprep.subr.mxu0 0.0
    %815 = vmatpush1.msra.mxu0 0.0
    %816 = vmatprep.subr.mxu0 0.0
    %817 = vmatpush1.msra.mxu0 0.0
    %818 = vmatprep.mubr.f32.mxu0 0.0
    %819 = vmatmul.mubr.f32.gmra.mrb[0].mxu0 %v654
    %v820 = vpop.f32.mrb[0].mxu0
    %v821 = vadd.f32 0.0, %v820
    %v822 = vpop.f32.mrb[0].mxu0
    %v823 = vadd.f32 0.0, %v822
    %824 = vmatprep.mubr.f32.mxu0 0.0
    %825 = vmatmul.mubr.f32.gmra.mrb[0].mxu0 %v657
    %v826 = vpop.f32.mrb[0].mxu0
    %v827 = vadd.f32 0.0, %v826
    %v828 = vpop.f32.mrb[0].mxu0
    %v829 = vadd.f32 0.0, %v828
    %830 = vmatprep.mubr.f32.mxu0 0.0
    %831 = vmatmul.mubr.f32.gmra.mrb[0].mxu0 %v660
    %v832 = vpop.f32.mrb[0].mxu0
    %v833 = vadd.f32 0.0, %v832
    %v834 = vpop.f32.mrb[0].mxu0
    %v835 = vadd.f32 0.0, %v834
    %836 = vmatprep.mubr.f32.mxu0 0.0
    %837 = vmatmul.mubr.f32.gmra.mrb[0].mxu0 %v663
    %v838 = vpop.f32.mrb[0].mxu0
    %v839 = vadd.f32 0.0, %v838
    %v840 = vpop.f32.mrb[0].mxu0
    %v841 = vadd.f32 0.0, %v840
    %842 = vdwg.mxu0
    %v843 = vadd.f32 %v455, %v732
    %v844 = vadd.f32 %v457, %v734
    %v845 = vadd.f32 %v544, %v821
    %v846 = vadd.f32 %v546, %v823
    %v847 = vadd.f32 %v461, %v738
    %v848 = vadd.f32 %v463, %v740
    %v849 = vadd.f32 %v550, %v827
    %v850 = vadd.f32 %v552, %v829
    %v851 = vadd.f32 %v467, %v744
    %v852 = vadd.f32 %v469, %v746
    %v853 = vadd.f32 %v556, %v833
    %v854 = vadd.f32 %v558, %v835
    %v855 = vadd.f32 %v473, %v750
    %v856 = vadd.f32 %v475, %v752
    %v857 = vadd.f32 %v562, %v839
    %v858 = vadd.f32 %v564, %v841
    %859 = vrot.lane.b32.xlu0 %v77, 15
    %v860 = vpop.permute.xlu0 %859
    %861 = vrot.lane.b32.xlu0 %v81, 15
    %v862 = vpop.permute.xlu0 %861
    %863 = vrot.lane.b32.xlu0 %v85, 15
    %v864 = vpop.permute.xlu0 %863
    %865 = vrot.lane.b32.xlu0 %v89, 15
    %v866 = vpop.permute.xlu0 %865
    %867 = vrot.lane.b32.xlu0 %v78, 15
    %v868 = vpop.permute.xlu0 %867
    %869 = vrot.lane.b32.xlu0 %v82, 15
    %v870 = vpop.permute.xlu0 %869
    %871 = vrot.lane.b32.xlu0 %v86, 15
    %v872 = vpop.permute.xlu0 %871
    %873 = vrot.lane.b32.xlu0 %v90, 15
    %v874 = vpop.permute.xlu0 %873
    %875 = vrot.lane.b32.xlu0 %v79, 15
    %v876 = vpop.permute.xlu0 %875
    %877 = vrot.lane.b32.xlu0 %v83, 15
    %v878 = vpop.permute.xlu0 %877
    %879 = vrot.lane.b32.xlu0 %v87, 15
    %v880 = vpop.permute.xlu0 %879
    %881 = vrot.lane.b32.xlu0 %v91, 15
    %v882 = vpop.permute.xlu0 %881
    %883 = vrot.lane.b32.xlu0 %v80, 15
    %v884 = vpop.permute.xlu0 %883
    %885 = vrot.lane.b32.xlu0 %v84, 15
    %v886 = vpop.permute.xlu0 %885
    %887 = vrot.lane.b32.xlu0 %v88, 15
    %v888 = vpop.permute.xlu0 %887
    %889 = vrot.lane.b32.xlu0 %v92, 15
    %v890 = vpop.permute.xlu0 %889
    %vm891 = vcmp.lt.s32.totalorder %v131, 15
    %v892 = vsel %vm891, %v876, %v884
    %v893 = vsel %vm891, %v878, %v886
    %v894 = vsel %vm891, %v880, %v888
    %v895 = vsel %vm891, %v882, %v890
    %v896 = vsel %vm891, %v868, %v876
    %v897 = vsel %vm891, %v870, %v878
    %v898 = vsel %vm891, %v872, %v880
    %v899 = vsel %vm891, %v874, %v882
    %v900 = vsel %vm891, %v860, %v868
    %v901 = vsel %vm891, %v862, %v870
    %v902 = vsel %vm891, %v864, %v872
    %v903 = vsel %vm891, %v866, %v874
    %v904 = vsel %vm891, %v884, %v860
    %v905 = vsel %vm891, %v886, %v862
    %v906 = vsel %vm891, %v888, %v864
    %v907 = vsel %vm891, %v890, %v866
    %s908 = scalar_lea.vmem [#allocation2], 256
    %v909 = vld [vmem:[%s908] sm:$0xff]
    %v910 = vld [vmem:[%s908 + $0x8] sm:$0xff]
    %v911 = vld [vmem:[%s908 + $0x10] sm:$0xff]
    %v912 = vld [vmem:[%s908 + $0x18] sm:$0xff]
    %v913 = vld [vmem:[%s908 + $0x20] sm:$0xff]
    %v914 = vld [vmem:[%s908 + $0x28] sm:$0xff]
    %v915 = vld [vmem:[%s908 + $0x30] sm:$0xff]
    %v916 = vld [vmem:[%s908 + $0x38] sm:$0xff]
    %v917 = vld [vmem:[%s908 + $0x40] sm:$0xff]
    %v918 = vld [vmem:[%s908 + $0x48] sm:$0xff]
    %v919 = vld [vmem:[%s908 + $0x50] sm:$0xff]
    %v920 = vld [vmem:[%s908 + $0x58] sm:$0xff]
    %v921 = vld [vmem:[%s908 + $0x60] sm:$0xff]
    %v922 = vld [vmem:[%s908 + $0x68] sm:$0xff]
    %v923 = vld [vmem:[%s908 + $0x70] sm:$0xff]
    %v924 = vld [vmem:[%s908 + $0x78] sm:$0xff]
    %v925 = vmul.f32 %v904, %v909
    %v926 = vmul.f32 %v900, %v910
    %v927 = vmul.f32 %v896, %v911
    %v928 = vmul.f32 %v892, %v912
    %v929 = vmul.f32 %v905, %v913
    %v930 = vmul.f32 %v901, %v914
    %v931 = vmul.f32 %v897, %v915
    %v932 = vmul.f32 %v893, %v916
    %v933 = vmul.f32 %v906, %v917
    %v934 = vmul.f32 %v902, %v918
    %v935 = vmul.f32 %v898, %v919
    %v936 = vmul.f32 %v894, %v920
    %v937 = vmul.f32 %v907, %v921
    %v938 = vmul.f32 %v903, %v922
    %v939 = vmul.f32 %v899, %v923
    %v940 = vmul.f32 %v895, %v924
    %s941 = scalar_lea.vmem [#allocation5], 64
    %v942 = vld [vmem:[%s941] sm:$0xff]
    %v943 = vld [vmem:[%s941 + $0x8] sm:$0xff]
    %v944 = vld [vmem:[%s941 + $0x10] sm:$0xff]
    %v945 = vld [vmem:[%s941 + $0x18] sm:$0xff]
    %v947 = vsel %vm185, %v942, 0
    %v950 = vsel %vm185, %v943, 0
    %v953 = vsel %vm185, %v944, 0
    %v956 = vsel %vm185, %v945, 0
    %958 = vmatprep.subr.mxu0 %v926
    %959 = vmatpush1.msra.mxu0 %v925
    %960 = vmatprep.subr.mxu0 %v930
    %961 = vmatpush1.msra.mxu0 %v929
    %962 = vmatprep.subr.mxu0 %v934
    %963 = vmatpush1.msra.mxu0 %v933
    %964 = vmatprep.subr.mxu0 %v938
    %965 = vmatpush1.msra.mxu0 %v937
    %966 = vmatprep.subr.mxu0 0.0
    %967 = vmatpush1.msra.mxu0 0.0
    %968 = vmatprep.subr.mxu0 0.0
    %969 = vmatpush1.msra.mxu0 0.0
    %970 = vmatprep.subr.mxu0 0.0
    %971 = vmatpush1.msra.mxu0 0.0
    %972 = vmatprep.subr.mxu0 0.0
    %973 = vmatpush1.msra.mxu0 0.0
    %974 = vmatprep.subr.mxu0 0.0
    %975 = vmatpush1.msra.mxu0 0.0
    %976 = vmatprep.subr.mxu0 0.0
    %977 = vmatpush1.msra.mxu0 0.0
    %978 = vmatprep.subr.mxu0 0.0
    %979 = vmatpush1.msra.mxu0 0.0
    %980 = vmatprep.subr.mxu0 0.0
    %981 = vmatpush1.msra.mxu0 0.0
    %982 = vmatprep.subr.mxu0 0.0
    %983 = vmatpush1.msra.mxu0 0.0
    %984 = vmatprep.subr.mxu0 0.0
    %985 = vmatpush1.msra.mxu0 0.0
    %986 = vmatprep.subr.mxu0 0.0
    %987 = vmatpush1.msra.mxu0 0.0
    %988 = vmatprep.subr.mxu0 0.0
    %989 = vmatpush1.msra.mxu0 0.0
    %990 = vmatprep.subr.mxu0 0.0
    %991 = vmatpush1.msra.mxu0 0.0
    %992 = vmatprep.subr.mxu0 0.0
    %993 = vmatpush1.msra.mxu0 0.0
    %994 = vmatprep.subr.mxu0 0.0
    %995 = vmatpush1.msra.mxu0 0.0
    %996 = vmatprep.subr.mxu0 0.0
    %997 = vmatpush1.msra.mxu0 0.0
    %998 = vmatprep.subr.mxu0 0.0
    %999 = vmatpush1.msra.mxu0 0.0
    %1000 = vmatprep.subr.mxu0 0.0
    %1001 = vmatpush1.msra.mxu0 0.0
    %1002 = vmatprep.subr.mxu0 0.0
    %1003 = vmatpush1.msra.mxu0 0.0
    %1004 = vmatprep.subr.mxu0 0.0
    %1005 = vmatpush1.msra.mxu0 0.0
    %1006 = vmatprep.subr.mxu0 0.0
    %1007 = vmatpush1.msra.mxu0 0.0
    %1008 = vmatprep.subr.mxu0 0.0
    %1009 = vmatpush1.msra.mxu0 0.0
    %1010 = vmatprep.subr.mxu0 0.0
    %1011 = vmatpush1.msra.mxu0 0.0
    %1012 = vmatprep.subr.mxu0 0.0
    %1013 = vmatpush1.msra.mxu0 0.0
    %1014 = vmatprep.subr.mxu0 0.0
    %1015 = vmatpush1.msra.mxu0 0.0
    %1016 = vmatprep.subr.mxu0 0.0
    %1017 = vmatpush1.msra.mxu0 0.0
    %1018 = vmatprep.subr.mxu0 0.0
    %1019 = vmatpush1.msra.mxu0 0.0
    %1020 = vmatprep.subr.mxu0 0.0
    %1021 = vmatpush1.msra.mxu0 0.0
    %1022 = vmatprep.mubr.f32.mxu0 0.0
    %1023 = vmatmul.mubr.f32.gmra.mrb[0].mxu0 %v947
    %v1024 = vpop.f32.mrb[0].mxu0
    %v1025 = vadd.f32 0.0, %v1024
    %v1026 = vpop.f32.mrb[0].mxu0
    %v1027 = vadd.f32 0.0, %v1026
    %1028 = vmatprep.mubr.f32.mxu0 0.0
    %1029 = vmatmul.mubr.f32.gmra.mrb[0].mxu0 %v950
    %v1030 = vpop.f32.mrb[0].mxu0
    %v1031 = vadd.f32 0.0, %v1030
    %v1032 = vpop.f32.mrb[0].mxu0
    %v1033 = vadd.f32 0.0, %v1032
    %1034 = vmatprep.mubr.f32.mxu0 0.0
    %1035 = vmatmul.mubr.f32.gmra.mrb[0].mxu0 %v953
    %v1036 = vpop.f32.mrb[0].mxu0
    %v1037 = vadd.f32 0.0, %v1036
    %v1038 = vpop.f32.mrb[0].mxu0
    %v1039 = vadd.f32 0.0, %v1038
    %1040 = vmatprep.mubr.f32.mxu0 0.0
    %1041 = vmatmul.mubr.f32.gmra.mrb[0].mxu0 %v956
    %v1042 = vpop.f32.mrb[0].mxu0
    %v1043 = vadd.f32 0.0, %v1042
    %v1044 = vpop.f32.mrb[0].mxu0
    %v1045 = vadd.f32 0.0, %v1044
    %1046 = vdwg.mxu0
    %1047 = vmatprep.subr.mxu0 %v928
    %1048 = vmatpush1.msra.mxu0 %v927
    %1049 = vmatprep.subr.mxu0 %v932
    %1050 = vmatpush1.msra.mxu0 %v931
    %1051 = vmatprep.subr.mxu0 %v936
    %1052 = vmatpush1.msra.mxu0 %v935
    %1053 = vmatprep.subr.mxu0 %v940
    %1054 = vmatpush1.msra.mxu0 %v939
    %1055 = vmatprep.subr.mxu0 0.0
    %1056 = vmatpush1.msra.mxu0 0.0
    %1057 = vmatprep.subr.mxu0 0.0
    %1058 = vmatpush1.msra.mxu0 0.0
    %1059 = vmatprep.subr.mxu0 0.0
    %1060 = vmatpush1.msra.mxu0 0.0
    %1061 = vmatprep.subr.mxu0 0.0
    %1062 = vmatpush1.msra.mxu0 0.0
    %1063 = vmatprep.subr.mxu0 0.0
    %1064 = vmatpush1.msra.mxu0 0.0
    %1065 = vmatprep.subr.mxu0 0.0
    %1066 = vmatpush1.msra.mxu0 0.0
    %1067 = vmatprep.subr.mxu0 0.0
    %1068 = vmatpush1.msra.mxu0 0.0
    %1069 = vmatprep.subr.mxu0 0.0
    %1070 = vmatpush1.msra.mxu0 0.0
    %1071 = vmatprep.subr.mxu0 0.0
    %1072 = vmatpush1.msra.mxu0 0.0
    %1073 = vmatprep.subr.mxu0 0.0
    %1074 = vmatpush1.msra.mxu0 0.0
    %1075 = vmatprep.subr.mxu0 0.0
    %1076 = vmatpush1.msra.mxu0 0.0
    %1077 = vmatprep.subr.mxu0 0.0
    %1078 = vmatpush1.msra.mxu0 0.0
    %1079 = vmatprep.subr.mxu0 0.0
    %1080 = vmatpush1.msra.mxu0 0.0
    %1081 = vmatprep.subr.mxu0 0.0
    %1082 = vmatpush1.msra.mxu0 0.0
    %1083 = vmatprep.subr.mxu0 0.0
    %1084 = vmatpush1.msra.mxu0 0.0
    %1085 = vmatprep.subr.mxu0 0.0
    %1086 = vmatpush1.msra.mxu0 0.0
    %1087 = vmatprep.subr.mxu0 0.0
    %1088 = vmatpush1.msra.mxu0 0.0
    %1089 = vmatprep.subr.mxu0 0.0
    %1090 = vmatpush1.msra.mxu0 0.0
    %1091 = vmatprep.subr.mxu0 0.0
    %1092 = vmatpush1.msra.mxu0 0.0
    %1093 = vmatprep.subr.mxu0 0.0
    %1094 = vmatpush1.msra.mxu0 0.0
    %1095 = vmatprep.subr.mxu0 0.0
    %1096 = vmatpush1.msra.mxu0 0.0
    %1097 = vmatprep.subr.mxu0 0.0
    %1098 = vmatpush1.msra.mxu0 0.0
    %1099 = vmatprep.subr.mxu0 0.0
    %1100 = vmatpush1.msra.mxu0 0.0
    %1101 = vmatprep.subr.mxu0 0.0
    %1102 = vmatpush1.msra.mxu0 0.0
    %1103 = vmatprep.subr.mxu0 0.0
    %1104 = vmatpush1.msra.mxu0 0.0
    %1105 = vmatprep.subr.mxu0 0.0
    %1106 = vmatpush1.msra.mxu0 0.0
    %1107 = vmatprep.subr.mxu0 0.0
    %1108 = vmatpush1.msra.mxu0 0.0
    %1109 = vmatprep.subr.mxu0 0.0
    %1110 = vmatpush1.msra.mxu0 0.0
    %1111 = vmatprep.mubr.f32.mxu0 0.0
    %1112 = vmatmul.mubr.f32.gmra.mrb[0].mxu0 %v947
    %v1113 = vpop.f32.mrb[0].mxu0
    %v1114 = vadd.f32 0.0, %v1113
    %v1115 = vpop.f32.mrb[0].mxu0
    %v1116 = vadd.f32 0.0, %v1115
    %1117 = vmatprep.mubr.f32.mxu0 0.0
    %1118 = vmatmul.mubr.f32.gmra.mrb[0].mxu0 %v950
    %v1119 = vpop.f32.mrb[0].mxu0
    %v1120 = vadd.f32 0.0, %v1119
    %v1121 = vpop.f32.mrb[0].mxu0
    %v1122 = vadd.f32 0.0, %v1121
    %1123 = vmatprep.mubr.f32.mxu0 0.0
    %1124 = vmatmul.mubr.f32.gmra.mrb[0].mxu0 %v953
    %v1125 = vpop.f32.mrb[0].mxu0
    %v1126 = vadd.f32 0.0, %v1125
    %v1127 = vpop.f32.mrb[0].mxu0
    %v1128 = vadd.f32 0.0, %v1127
    %1129 = vmatprep.mubr.f32.mxu0 0.0
    %1130 = vmatmul.mubr.f32.gmra.mrb[0].mxu0 %v956
    %v1131 = vpop.f32.mrb[0].mxu0
    %v1132 = vadd.f32 0.0, %v1131
    %v1133 = vpop.f32.mrb[0].mxu0
    %v1134 = vadd.f32 0.0, %v1133
    %1135 = vdwg.mxu0
    %v1136 = vadd.f32 %v843, %v1025
    %v1137 = vadd.f32 %v844, %v1027
    %v1138 = vadd.f32 %v845, %v1114
    %v1139 = vadd.f32 %v846, %v1116
    %v1140 = vadd.f32 %v847, %v1031
    %v1141 = vadd.f32 %v848, %v1033
    %v1142 = vadd.f32 %v849, %v1120
    %v1143 = vadd.f32 %v850, %v1122
    %v1144 = vadd.f32 %v851, %v1037
    %v1145 = vadd.f32 %v852, %v1039
    %v1146 = vadd.f32 %v853, %v1126
    %v1147 = vadd.f32 %v854, %v1128
    %v1148 = vadd.f32 %v855, %v1043
    %v1149 = vadd.f32 %v856, %v1045
    %v1150 = vadd.f32 %v857, %v1132
    %v1151 = vadd.f32 %v858, %v1134
    %1152 = vrot.lane.b32.xlu0 %v77, 1
    %v1153 = vpop.permute.xlu0 %1152
    %1154 = vrot.lane.b32.xlu0 %v81, 1
    %v1155 = vpop.permute.xlu0 %1154
    %1156 = vrot.lane.b32.xlu0 %v85, 1
    %v1157 = vpop.permute.xlu0 %1156
    %1158 = vrot.lane.b32.xlu0 %v89, 1
    %v1159 = vpop.permute.xlu0 %1158
    %1160 = vrot.lane.b32.xlu0 %v78, 1
    %v1161 = vpop.permute.xlu0 %1160
    %1162 = vrot.lane.b32.xlu0 %v82, 1
    %v1163 = vpop.permute.xlu0 %1162
    %1164 = vrot.lane.b32.xlu0 %v86, 1
    %v1165 = vpop.permute.xlu0 %1164
    %1166 = vrot.lane.b32.xlu0 %v90, 1
    %v1167 = vpop.permute.xlu0 %1166
    %1168 = vrot.lane.b32.xlu0 %v79, 1
    %v1169 = vpop.permute.xlu0 %1168
    %1170 = vrot.lane.b32.xlu0 %v83, 1
    %v1171 = vpop.permute.xlu0 %1170
    %1172 = vrot.lane.b32.xlu0 %v87, 1
    %v1173 = vpop.permute.xlu0 %1172
    %1174 = vrot.lane.b32.xlu0 %v91, 1
    %v1175 = vpop.permute.xlu0 %1174
    %1176 = vrot.lane.b32.xlu0 %v80, 1
    %v1177 = vpop.permute.xlu0 %1176
    %1178 = vrot.lane.b32.xlu0 %v84, 1
    %v1179 = vpop.permute.xlu0 %1178
    %1180 = vrot.lane.b32.xlu0 %v88, 1
    %v1181 = vpop.permute.xlu0 %1180
    %1182 = vrot.lane.b32.xlu0 %v92, 1
    %v1183 = vpop.permute.xlu0 %1182
    %vm1184 = vcmp.lt.s32.totalorder %v131, 1
    %v1185 = vsel %vm1184, %v1169, %v1177
    %v1186 = vsel %vm1184, %v1171, %v1179
    %v1187 = vsel %vm1184, %v1173, %v1181
    %v1188 = vsel %vm1184, %v1175, %v1183
    %v1189 = vsel %vm1184, %v1161, %v1169
    %v1190 = vsel %vm1184, %v1163, %v1171
    %v1191 = vsel %vm1184, %v1165, %v1173
    %v1192 = vsel %vm1184, %v1167, %v1175
    %v1193 = vsel %vm1184, %v1153, %v1161
    %v1194 = vsel %vm1184, %v1155, %v1163
    %v1195 = vsel %vm1184, %v1157, %v1165
    %v1196 = vsel %vm1184, %v1159, %v1167
    %v1197 = vsel %vm1184, %v1177, %v1153
    %v1198 = vsel %vm1184, %v1179, %v1155
    %v1199 = vsel %vm1184, %v1181, %v1157
    %v1200 = vsel %vm1184, %v1183, %v1159
    %s1201 = scalar_lea.vmem [#allocation2], 384
    %v1202 = vld [vmem:[%s1201] sm:$0xff]
    %v1203 = vld [vmem:[%s1201 + $0x8] sm:$0xff]
    %v1204 = vld [vmem:[%s1201 + $0x10] sm:$0xff]
    %v1205 = vld [vmem:[%s1201 + $0x18] sm:$0xff]
    %v1206 = vld [vmem:[%s1201 + $0x20] sm:$0xff]
    %v1207 = vld [vmem:[%s1201 + $0x28] sm:$0xff]
    %v1208 = vld [vmem:[%s1201 + $0x30] sm:$0xff]
    %v1209 = vld [vmem:[%s1201 + $0x38] sm:$0xff]
    %v1210 = vld [vmem:[%s1201 + $0x40] sm:$0xff]
    %v1211 = vld [vmem:[%s1201 + $0x48] sm:$0xff]
    %v1212 = vld [vmem:[%s1201 + $0x50] sm:$0xff]
    %v1213 = vld [vmem:[%s1201 + $0x58] sm:$0xff]
    %v1214 = vld [vmem:[%s1201 + $0x60] sm:$0xff]
    %v1215 = vld [vmem:[%s1201 + $0x68] sm:$0xff]
    %v1216 = vld [vmem:[%s1201 + $0x70] sm:$0xff]
    %v1217 = vld [vmem:[%s1201 + $0x78] sm:$0xff]
    %v1218 = vmul.f32 %v1197, %v1202
    %v1219 = vmul.f32 %v1193, %v1203
    %v1220 = vmul.f32 %v1189, %v1204
    %v1221 = vmul.f32 %v1185, %v1205
    %v1222 = vmul.f32 %v1198, %v1206
    %v1223 = vmul.f32 %v1194, %v1207
    %v1224 = vmul.f32 %v1190, %v1208
    %v1225 = vmul.f32 %v1186, %v1209
    %v1226 = vmul.f32 %v1199, %v1210
    %v1227 = vmul.f32 %v1195, %v1211
    %v1228 = vmul.f32 %v1191, %v1212
    %v1229 = vmul.f32 %v1187, %v1213
    %v1230 = vmul.f32 %v1200, %v1214
    %v1231 = vmul.f32 %v1196, %v1215
    %v1232 = vmul.f32 %v1192, %v1216
    %v1233 = vmul.f32 %v1188, %v1217
    %s1234 = scalar_lea.vmem [#allocation5], 96
    %v1235 = vld [vmem:[%s1234] sm:$0xff]
    %v1236 = vld [vmem:[%s1234 + $0x8] sm:$0xff]
    %v1237 = vld [vmem:[%s1234 + $0x10] sm:$0xff]
    %v1238 = vld [vmem:[%s1234 + $0x18] sm:$0xff]
    %v1240 = vsel %vm185, %v1235, 0
    %v1243 = vsel %vm185, %v1236, 0
    %v1246 = vsel %vm185, %v1237, 0
    %v1249 = vsel %vm185, %v1238, 0
    %1251 = vmatprep.subr.mxu0 %v1219
    %1252 = vmatpush1.msra.mxu0 %v1218
    %1253 = vmatprep.subr.mxu0 %v1223
    %1254 = vmatpush1.msra.mxu0 %v1222
    %1255 = vmatprep.subr.mxu0 %v1227
    %1256 = vmatpush1.msra.mxu0 %v1226
    %1257 = vmatprep.subr.mxu0 %v1231
    %1258 = vmatpush1.msra.mxu0 %v1230
    %1259 = vmatprep.subr.mxu0 0.0
    %1260 = vmatpush1.msra.mxu0 0.0
    %1261 = vmatprep.subr.mxu0 0.0
    %1262 = vmatpush1.msra.mxu0 0.0
    %1263 = vmatprep.subr.mxu0 0.0
    %1264 = vmatpush1.msra.mxu0 0.0
    %1265 = vmatprep.subr.mxu0 0.0
    %1266 = vmatpush1.msra.mxu0 0.0
    %1267 = vmatprep.subr.mxu0 0.0
    %1268 = vmatpush1.msra.mxu0 0.0
    %1269 = vmatprep.subr.mxu0 0.0
    %1270 = vmatpush1.msra.mxu0 0.0
    %1271 = vmatprep.subr.mxu0 0.0
    %1272 = vmatpush1.msra.mxu0 0.0
    %1273 = vmatprep.subr.mxu0 0.0
    %1274 = vmatpush1.msra.mxu0 0.0
    %1275 = vmatprep.subr.mxu0 0.0
    %1276 = vmatpush1.msra.mxu0 0.0
    %1277 = vmatprep.subr.mxu0 0.0
    %1278 = vmatpush1.msra.mxu0 0.0
    %1279 = vmatprep.subr.mxu0 0.0
    %1280 = vmatpush1.msra.mxu0 0.0
    %1281 = vmatprep.subr.mxu0 0.0
    %1282 = vmatpush1.msra.mxu0 0.0
    %1283 = vmatprep.subr.mxu0 0.0
    %1284 = vmatpush1.msra.mxu0 0.0
    %1285 = vmatprep.subr.mxu0 0.0
    %1286 = vmatpush1.msra.mxu0 0.0
    %1287 = vmatprep.subr.mxu0 0.0
    %1288 = vmatpush1.msra.mxu0 0.0
    %1289 = vmatprep.subr.mxu0 0.0
    %1290 = vmatpush1.msra.mxu0 0.0
    %1291 = vmatprep.subr.mxu0 0.0
    %1292 = vmatpush1.msra.mxu0 0.0
    %1293 = vmatprep.subr.mxu0 0.0
    %1294 = vmatpush1.msra.mxu0 0.0
    %1295 = vmatprep.subr.mxu0 0.0
    %1296 = vmatpush1.msra.mxu0 0.0
    %1297 = vmatprep.subr.mxu0 0.0
    %1298 = vmatpush1.msra.mxu0 0.0
    %1299 = vmatprep.subr.mxu0 0.0
    %1300 = vmatpush1.msra.mxu0 0.0
    %1301 = vmatprep.subr.mxu0 0.0
    %1302 = vmatpush1.msra.mxu0 0.0
    %1303 = vmatprep.subr.mxu0 0.0
    %1304 = vmatpush1.msra.mxu0 0.0
    %1305 = vmatprep.subr.mxu0 0.0
    %1306 = vmatpush1.msra.mxu0 0.0
    %1307 = vmatprep.subr.mxu0 0.0
    %1308 = vmatpush1.msra.mxu0 0.0
    %1309 = vmatprep.subr.mxu0 0.0
    %1310 = vmatpush1.msra.mxu0 0.0
    %1311 = vmatprep.subr.mxu0 0.0
    %1312 = vmatpush1.msra.mxu0 0.0
    %1313 = vmatprep.subr.mxu0 0.0
    %1314 = vmatpush1.msra.mxu0 0.0
    %1315 = vmatprep.mubr.f32.mxu0 0.0
    %1316 = vmatmul.mubr.f32.gmra.mrb[0].mxu0 %v1240
    %v1317 = vpop.f32.mrb[0].mxu0
    %v1318 = vadd.f32 0.0, %v1317
    %v1319 = vpop.f32.mrb[0].mxu0
    %v1320 = vadd.f32 0.0, %v1319
    %1321 = vmatprep.mubr.f32.mxu0 0.0
    %1322 = vmatmul.mubr.f32.gmra.mrb[0].mxu0 %v1243
    %v1323 = vpop.f32.mrb[0].mxu0
    %v1324 = vadd.f32 0.0, %v1323
    %v1325 = vpop.f32.mrb[0].mxu0
    %v1326 = vadd.f32 0.0, %v1325
    %1327 = vmatprep.mubr.f32.mxu0 0.0
    %1328 = vmatmul.mubr.f32.gmra.mrb[0].mxu0 %v1246
    %v1329 = vpop.f32.mrb[0].mxu0
    %v1330 = vadd.f32 0.0, %v1329
    %v1331 = vpop.f32.mrb[0].mxu0
    %v1332 = vadd.f32 0.0, %v1331
    %1333 = vmatprep.mubr.f32.mxu0 0.0
    %1334 = vmatmul.mubr.f32.gmra.mrb[0].mxu0 %v1249
    %v1335 = vpop.f32.mrb[0].mxu0
    %v1336 = vadd.f32 0.0, %v1335
    %v1337 = vpop.f32.mrb[0].mxu0
    %v1338 = vadd.f32 0.0, %v1337
    %1339 = vdwg.mxu0
    %1340 = vmatprep.subr.mxu0 %v1221
    %1341 = vmatpush1.msra.mxu0 %v1220
    %1342 = vmatprep.subr.mxu0 %v1225
    %1343 = vmatpush1.msra.mxu0 %v1224
    %1344 = vmatprep.subr.mxu0 %v1229
    %1345 = vmatpush1.msra.mxu0 %v1228
    %1346 = vmatprep.subr.mxu0 %v1233
    %1347 = vmatpush1.msra.mxu0 %v1232
    %1348 = vmatprep.subr.mxu0 0.0
    %1349 = vmatpush1.msra.mxu0 0.0
    %1350 = vmatprep.subr.mxu0 0.0
    %1351 = vmatpush1.msra.mxu0 0.0
    %1352 = vmatprep.subr.mxu0 0.0
    %1353 = vmatpush1.msra.mxu0 0.0
    %1354 = vmatprep.subr.mxu0 0.0
    %1355 = vmatpush1.msra.mxu0 0.0
    %1356 = vmatprep.subr.mxu0 0.0
    %1357 = vmatpush1.msra.mxu0 0.0
    %1358 = vmatprep.subr.mxu0 0.0
    %1359 = vmatpush1.msra.mxu0 0.0
    %1360 = vmatprep.subr.mxu0 0.0
    %1361 = vmatpush1.msra.mxu0 0.0
    %1362 = vmatprep.subr.mxu0 0.0
    %1363 = vmatpush1.msra.mxu0 0.0
    %1364 = vmatprep.subr.mxu0 0.0
    %1365 = vmatpush1.msra.mxu0 0.0
    %1366 = vmatprep.subr.mxu0 0.0
    %1367 = vmatpush1.msra.mxu0 0.0
    %1368 = vmatprep.subr.mxu0 0.0
    %1369 = vmatpush1.msra.mxu0 0.0
    %1370 = vmatprep.subr.mxu0 0.0
    %1371 = vmatpush1.msra.mxu0 0.0
    %1372 = vmatprep.subr.mxu0 0.0
    %1373 = vmatpush1.msra.mxu0 0.0
    %1374 = vmatprep.subr.mxu0 0.0
    %1375 = vmatpush1.msra.mxu0 0.0
    %1376 = vmatprep.subr.mxu0 0.0
    %1377 = vmatpush1.msra.mxu0 0.0
    %1378 = vmatprep.subr.mxu0 0.0
    %1379 = vmatpush1.msra.mxu0 0.0
    %1380 = vmatprep.subr.mxu0 0.0
    %1381 = vmatpush1.msra.mxu0 0.0
    %1382 = vmatprep.subr.mxu0 0.0
    %1383 = vmatpush1.msra.mxu0 0.0
    %1384 = vmatprep.subr.mxu0 0.0
    %1385 = vmatpush1.msra.mxu0 0.0
    %1386 = vmatprep.subr.mxu0 0.0
    %1387 = vmatpush1.msra.mxu0 0.0
    %1388 = vmatprep.subr.mxu0 0.0
    %1389 = vmatpush1.msra.mxu0 0.0
    %1390 = vmatprep.subr.mxu0 0.0
    %1391 = vmatpush1.msra.mxu0 0.0
    %1392 = vmatprep.subr.mxu0 0.0
    %1393 = vmatpush1.msra.mxu0 0.0
    %1394 = vmatprep.subr.mxu0 0.0
    %1395 = vmatpush1.msra.mxu0 0.0
    %1396 = vmatprep.subr.mxu0 0.0
    %1397 = vmatpush1.msra.mxu0 0.0
    %1398 = vmatprep.subr.mxu0 0.0
    %1399 = vmatpush1.msra.mxu0 0.0
    %1400 = vmatprep.subr.mxu0 0.0
    %1401 = vmatpush1.msra.mxu0 0.0
    %1402 = vmatprep.subr.mxu0 0.0
    %1403 = vmatpush1.msra.mxu0 0.0
    %1404 = vmatprep.mubr.f32.mxu0 0.0
    %1405 = vmatmul.mubr.f32.gmra.mrb[0].mxu0 %v1240
    %v1406 = vpop.f32.mrb[0].mxu0
    %v1407 = vadd.f32 0.0, %v1406
    %v1408 = vpop.f32.mrb[0].mxu0
    %v1409 = vadd.f32 0.0, %v1408
    %1410 = vmatprep.mubr.f32.mxu0 0.0
    %1411 = vmatmul.mubr.f32.gmra.mrb[0].mxu0 %v1243
    %v1412 = vpop.f32.mrb[0].mxu0
    %v1413 = vadd.f32 0.0, %v1412
    %v1414 = vpop.f32.mrb[0].mxu0
    %v1415 = vadd.f32 0.0, %v1414
    %1416 = vmatprep.mubr.f32.mxu0 0.0
    %1417 = vmatmul.mubr.f32.gmra.mrb[0].mxu0 %v1246
    %v1418 = vpop.f32.mrb[0].mxu0
    %v1419 = vadd.f32 0.0, %v1418
    %v1420 = vpop.f32.mrb[0].mxu0
    %v1421 = vadd.f32 0.0, %v1420
    %1422 = vmatprep.mubr.f32.mxu0 0.0
    %1423 = vmatmul.mubr.f32.gmra.mrb[0].mxu0 %v1249
    %v1424 = vpop.f32.mrb[0].mxu0
    %v1425 = vadd.f32 0.0, %v1424
    %v1426 = vpop.f32.mrb[0].mxu0
    %v1427 = vadd.f32 0.0, %v1426
    %1428 = vdwg.mxu0
    %v1429 = vadd.f32 %v1136, %v1318
    %v1430 = vadd.f32 %v1137, %v1320
    %v1431 = vadd.f32 %v1138, %v1407
    %v1432 = vadd.f32 %v1139, %v1409
    %v1433 = vadd.f32 %v1140, %v1324
    %v1434 = vadd.f32 %v1141, %v1326
    %v1435 = vadd.f32 %v1142, %v1413
    %v1436 = vadd.f32 %v1143, %v1415
    %v1437 = vadd.f32 %v1144, %v1330
    %v1438 = vadd.f32 %v1145, %v1332
    %v1439 = vadd.f32 %v1146, %v1419
    %v1440 = vadd.f32 %v1147, %v1421
    %v1441 = vadd.f32 %v1148, %v1336
    %v1442 = vadd.f32 %v1149, %v1338
    %v1443 = vadd.f32 %v1150, %v1425
    %v1444 = vadd.f32 %v1151, %v1427
    %1445 = vrot.lane.b32.xlu0 %v77, 127
    %v1446 = vpop.permute.xlu0 %1445
    %1447 = vrot.lane.b32.xlu0 %v81, 127
    %v1448 = vpop.permute.xlu0 %1447
    %1449 = vrot.lane.b32.xlu0 %v85, 127
    %v1450 = vpop.permute.xlu0 %1449
    %1451 = vrot.lane.b32.xlu0 %v89, 127
    %v1452 = vpop.permute.xlu0 %1451
    %1453 = vrot.lane.b32.xlu0 %v78, 127
    %v1454 = vpop.permute.xlu0 %1453
    %1455 = vrot.lane.b32.xlu0 %v82, 127
    %v1456 = vpop.permute.xlu0 %1455
    %1457 = vrot.lane.b32.xlu0 %v86, 127
    %v1458 = vpop.permute.xlu0 %1457
    %1459 = vrot.lane.b32.xlu0 %v90, 127
    %v1460 = vpop.permute.xlu0 %1459
    %1461 = vrot.lane.b32.xlu0 %v79, 127
    %v1462 = vpop.permute.xlu0 %1461
    %1463 = vrot.lane.b32.xlu0 %v83, 127
    %v1464 = vpop.permute.xlu0 %1463
    %1465 = vrot.lane.b32.xlu0 %v87, 127
    %v1466 = vpop.permute.xlu0 %1465
    %1467 = vrot.lane.b32.xlu0 %v91, 127
    %v1468 = vpop.permute.xlu0 %1467
    %1469 = vrot.lane.b32.xlu0 %v80, 127
    %v1470 = vpop.permute.xlu0 %1469
    %1471 = vrot.lane.b32.xlu0 %v84, 127
    %v1472 = vpop.permute.xlu0 %1471
    %1473 = vrot.lane.b32.xlu0 %v88, 127
    %v1474 = vpop.permute.xlu0 %1473
    %1475 = vrot.lane.b32.xlu0 %v92, 127
    %v1476 = vpop.permute.xlu0 %1475
    %vm1477 = vcmp.lt.s32.totalorder %v131, 127
    %v1478 = vsel %vm1477, %v1462, %v1470
    %v1479 = vsel %vm1477, %v1464, %v1472
    %v1480 = vsel %vm1477, %v1466, %v1474
    %v1481 = vsel %vm1477, %v1468, %v1476
    %v1482 = vsel %vm1477, %v1454, %v1462
    %v1483 = vsel %vm1477, %v1456, %v1464
    %v1484 = vsel %vm1477, %v1458, %v1466
    %v1485 = vsel %vm1477, %v1460, %v1468
    %v1486 = vsel %vm1477, %v1446, %v1454
    %v1487 = vsel %vm1477, %v1448, %v1456
    %v1488 = vsel %vm1477, %v1450, %v1458
    %v1489 = vsel %vm1477, %v1452, %v1460
    %v1490 = vsel %vm1477, %v1470, %v1446
    %v1491 = vsel %vm1477, %v1472, %v1448
    %v1492 = vsel %vm1477, %v1474, %v1450
    %v1493 = vsel %vm1477, %v1476, %v1452
    %s1494 = scalar_lea.vmem [#allocation2], 640
    %v1495 = vld [vmem:[%s1494] sm:$0xff]
    %v1496 = vld [vmem:[%s1494 + $0x8] sm:$0xff]
    %v1497 = vld [vmem:[%s1494 + $0x10] sm:$0xff]
    %v1498 = vld [vmem:[%s1494 + $0x18] sm:$0xff]
    %v1499 = vld [vmem:[%s1494 + $0x20] sm:$0xff]
    %v1500 = vld [vmem:[%s1494 + $0x28] sm:$0xff]
    %v1501 = vld [vmem:[%s1494 + $0x30] sm:$0xff]
    %v1502 = vld [vmem:[%s1494 + $0x38] sm:$0xff]
    %v1503 = vld [vmem:[%s1494 + $0x40] sm:$0xff]
    %v1504 = vld [vmem:[%s1494 + $0x48] sm:$0xff]
    %v1505 = vld [vmem:[%s1494 + $0x50] sm:$0xff]
    %v1506 = vld [vmem:[%s1494 + $0x58] sm:$0xff]
    %v1507 = vld [vmem:[%s1494 + $0x60] sm:$0xff]
    %v1508 = vld [vmem:[%s1494 + $0x68] sm:$0xff]
    %v1509 = vld [vmem:[%s1494 + $0x70] sm:$0xff]
    %v1510 = vld [vmem:[%s1494 + $0x78] sm:$0xff]
    %v1511 = vmul.f32 %v1486, %v1495
    %v1512 = vmul.f32 %v1482, %v1496
    %v1513 = vmul.f32 %v1478, %v1497
    %v1514 = vmul.f32 %v1490, %v1498
    %v1515 = vmul.f32 %v1487, %v1499
    %v1516 = vmul.f32 %v1483, %v1500
    %v1517 = vmul.f32 %v1479, %v1501
    %v1518 = vmul.f32 %v1491, %v1502
    %v1519 = vmul.f32 %v1488, %v1503
    %v1520 = vmul.f32 %v1484, %v1504
    %v1521 = vmul.f32 %v1480, %v1505
    %v1522 = vmul.f32 %v1492, %v1506
    %v1523 = vmul.f32 %v1489, %v1507
    %v1524 = vmul.f32 %v1485, %v1508
    %v1525 = vmul.f32 %v1481, %v1509
    %v1526 = vmul.f32 %v1493, %v1510
    %s1527 = scalar_lea.vmem [#allocation5], 160
    %v1528 = vld [vmem:[%s1527] sm:$0xff]
    %v1529 = vld [vmem:[%s1527 + $0x8] sm:$0xff]
    %v1530 = vld [vmem:[%s1527 + $0x10] sm:$0xff]
    %v1531 = vld [vmem:[%s1527 + $0x18] sm:$0xff]
    %v1533 = vsel %vm185, %v1528, 0
    %v1536 = vsel %vm185, %v1529, 0
    %v1539 = vsel %vm185, %v1530, 0
    %v1542 = vsel %vm185, %v1531, 0
    %1544 = vmatprep.subr.mxu0 %v1512
    %1545 = vmatpush1.msra.mxu0 %v1511
    %1546 = vmatprep.subr.mxu0 %v1516
    %1547 = vmatpush1.msra.mxu0 %v1515
    %1548 = vmatprep.subr.mxu0 %v1520
    %1549 = vmatpush1.msra.mxu0 %v1519
    %1550 = vmatprep.subr.mxu0 %v1524
    %1551 = vmatpush1.msra.mxu0 %v1523
    %1552 = vmatprep.subr.mxu0 0.0
    %1553 = vmatpush1.msra.mxu0 0.0
    %1554 = vmatprep.subr.mxu0 0.0
    %1555 = vmatpush1.msra.mxu0 0.0
    %1556 = vmatprep.subr.mxu0 0.0
    %1557 = vmatpush1.msra.mxu0 0.0
    %1558 = vmatprep.subr.mxu0 0.0
    %1559 = vmatpush1.msra.mxu0 0.0
    %1560 = vmatprep.subr.mxu0 0.0
    %1561 = vmatpush1.msra.mxu0 0.0
    %1562 = vmatprep.subr.mxu0 0.0
    %1563 = vmatpush1.msra.mxu0 0.0
    %1564 = vmatprep.subr.mxu0 0.0
    %1565 = vmatpush1.msra.mxu0 0.0
    %1566 = vmatprep.subr.mxu0 0.0
    %1567 = vmatpush1.msra.mxu0 0.0
    %1568 = vmatprep.subr.mxu0 0.0
    %1569 = vmatpush1.msra.mxu0 0.0
    %1570 = vmatprep.subr.mxu0 0.0
    %1571 = vmatpush1.msra.mxu0 0.0
    %1572 = vmatprep.subr.mxu0 0.0
    %1573 = vmatpush1.msra.mxu0 0.0
    %1574 = vmatprep.subr.mxu0 0.0
    %1575 = vmatpush1.msra.mxu0 0.0
    %1576 = vmatprep.subr.mxu0 0.0
    %1577 = vmatpush1.msra.mxu0 0.0
    %1578 = vmatprep.subr.mxu0 0.0
    %1579 = vmatpush1.msra.mxu0 0.0
    %1580 = vmatprep.subr.mxu0 0.0
    %1581 = vmatpush1.msra.mxu0 0.0
    %1582 = vmatprep.subr.mxu0 0.0
    %1583 = vmatpush1.msra.mxu0 0.0
    %1584 = vmatprep.subr.mxu0 0.0
    %1585 = vmatpush1.msra.mxu0 0.0
    %1586 = vmatprep.subr.mxu0 0.0
    %1587 = vmatpush1.msra.mxu0 0.0
    %1588 = vmatprep.subr.mxu0 0.0
    %1589 = vmatpush1.msra.mxu0 0.0
    %1590 = vmatprep.subr.mxu0 0.0
    %1591 = vmatpush1.msra.mxu0 0.0
    %1592 = vmatprep.subr.mxu0 0.0
    %1593 = vmatpush1.msra.mxu0 0.0
    %1594 = vmatprep.subr.mxu0 0.0
    %1595 = vmatpush1.msra.mxu0 0.0
    %1596 = vmatprep.subr.mxu0 0.0
    %1597 = vmatpush1.msra.mxu0 0.0
    %1598 = vmatprep.subr.mxu0 0.0
    %1599 = vmatpush1.msra.mxu0 0.0
    %1600 = vmatprep.subr.mxu0 0.0
    %1601 = vmatpush1.msra.mxu0 0.0
    %1602 = vmatprep.subr.mxu0 0.0
    %1603 = vmatpush1.msra.mxu0 0.0
    %1604 = vmatprep.subr.mxu0 0.0
    %1605 = vmatpush1.msra.mxu0 0.0
    %1606 = vmatprep.subr.mxu0 0.0
    %1607 = vmatpush1.msra.mxu0 0.0
    %1608 = vmatprep.mubr.f32.mxu0 0.0
    %1609 = vmatmul.mubr.f32.gmra.mrb[0].mxu0 %v1533
    %v1610 = vpop.f32.mrb[0].mxu0
    %v1611 = vadd.f32 0.0, %v1610
    %v1612 = vpop.f32.mrb[0].mxu0
    %v1613 = vadd.f32 0.0, %v1612
    %1614 = vmatprep.mubr.f32.mxu0 0.0
    %1615 = vmatmul.mubr.f32.gmra.mrb[0].mxu0 %v1536
    %v1616 = vpop.f32.mrb[0].mxu0
    %v1617 = vadd.f32 0.0, %v1616
    %v1618 = vpop.f32.mrb[0].mxu0
    %v1619 = vadd.f32 0.0, %v1618
    %1620 = vmatprep.mubr.f32.mxu0 0.0
    %1621 = vmatmul.mubr.f32.gmra.mrb[0].mxu0 %v1539
    %v1622 = vpop.f32.mrb[0].mxu0
    %v1623 = vadd.f32 0.0, %v1622
    %v1624 = vpop.f32.mrb[0].mxu0
    %v1625 = vadd.f32 0.0, %v1624
    %1626 = vmatprep.mubr.f32.mxu0 0.0
    %1627 = vmatmul.mubr.f32.gmra.mrb[0].mxu0 %v1542
    %v1628 = vpop.f32.mrb[0].mxu0
    %v1629 = vadd.f32 0.0, %v1628
    %v1630 = vpop.f32.mrb[0].mxu0
    %v1631 = vadd.f32 0.0, %v1630
    %1632 = vdwg.mxu0
    %1633 = vmatprep.subr.mxu0 %v1514
    %1634 = vmatpush1.msra.mxu0 %v1513
    %1635 = vmatprep.subr.mxu0 %v1518
    %1636 = vmatpush1.msra.mxu0 %v1517
    %1637 = vmatprep.subr.mxu0 %v1522
    %1638 = vmatpush1.msra.mxu0 %v1521
    %1639 = vmatprep.subr.mxu0 %v1526
    %1640 = vmatpush1.msra.mxu0 %v1525
    %1641 = vmatprep.subr.mxu0 0.0
    %1642 = vmatpush1.msra.mxu0 0.0
    %1643 = vmatprep.subr.mxu0 0.0
    %1644 = vmatpush1.msra.mxu0 0.0
    %1645 = vmatprep.subr.mxu0 0.0
    %1646 = vmatpush1.msra.mxu0 0.0
    %1647 = vmatprep.subr.mxu0 0.0
    %1648 = vmatpush1.msra.mxu0 0.0
    %1649 = vmatprep.subr.mxu0 0.0
    %1650 = vmatpush1.msra.mxu0 0.0
    %1651 = vmatprep.subr.mxu0 0.0
    %1652 = vmatpush1.msra.mxu0 0.0
    %1653 = vmatprep.subr.mxu0 0.0
    %1654 = vmatpush1.msra.mxu0 0.0
    %1655 = vmatprep.subr.mxu0 0.0
    %1656 = vmatpush1.msra.mxu0 0.0
    %1657 = vmatprep.subr.mxu0 0.0
    %1658 = vmatpush1.msra.mxu0 0.0
    %1659 = vmatprep.subr.mxu0 0.0
    %1660 = vmatpush1.msra.mxu0 0.0
    %1661 = vmatprep.subr.mxu0 0.0
    %1662 = vmatpush1.msra.mxu0 0.0
    %1663 = vmatprep.subr.mxu0 0.0
    %1664 = vmatpush1.msra.mxu0 0.0
    %1665 = vmatprep.subr.mxu0 0.0
    %1666 = vmatpush1.msra.mxu0 0.0
    %1667 = vmatprep.subr.mxu0 0.0
    %1668 = vmatpush1.msra.mxu0 0.0
    %1669 = vmatprep.subr.mxu0 0.0
    %1670 = vmatpush1.msra.mxu0 0.0
    %1671 = vmatprep.subr.mxu0 0.0
    %1672 = vmatpush1.msra.mxu0 0.0
    %1673 = vmatprep.subr.mxu0 0.0
    %1674 = vmatpush1.msra.mxu0 0.0
    %1675 = vmatprep.subr.mxu0 0.0
    %1676 = vmatpush1.msra.mxu0 0.0
    %1677 = vmatprep.subr.mxu0 0.0
    %1678 = vmatpush1.msra.mxu0 0.0
    %1679 = vmatprep.subr.mxu0 0.0
    %1680 = vmatpush1.msra.mxu0 0.0
    %1681 = vmatprep.subr.mxu0 0.0
    %1682 = vmatpush1.msra.mxu0 0.0
    %1683 = vmatprep.subr.mxu0 0.0
    %1684 = vmatpush1.msra.mxu0 0.0
    %1685 = vmatprep.subr.mxu0 0.0
    %1686 = vmatpush1.msra.mxu0 0.0
    %1687 = vmatprep.subr.mxu0 0.0
    %1688 = vmatpush1.msra.mxu0 0.0
    %1689 = vmatprep.subr.mxu0 0.0
    %1690 = vmatpush1.msra.mxu0 0.0
    %1691 = vmatprep.subr.mxu0 0.0
    %1692 = vmatpush1.msra.mxu0 0.0
    %1693 = vmatprep.subr.mxu0 0.0
    %1694 = vmatpush1.msra.mxu0 0.0
    %1695 = vmatprep.subr.mxu0 0.0
    %1696 = vmatpush1.msra.mxu0 0.0
    %1697 = vmatprep.mubr.f32.mxu0 0.0
    %1698 = vmatmul.mubr.f32.gmra.mrb[0].mxu0 %v1533
    %v1699 = vpop.f32.mrb[0].mxu0
    %v1700 = vadd.f32 0.0, %v1699
    %v1701 = vpop.f32.mrb[0].mxu0
    %v1702 = vadd.f32 0.0, %v1701
    %1703 = vmatprep.mubr.f32.mxu0 0.0
    %1704 = vmatmul.mubr.f32.gmra.mrb[0].mxu0 %v1536
    %v1705 = vpop.f32.mrb[0].mxu0
    %v1706 = vadd.f32 0.0, %v1705
    %v1707 = vpop.f32.mrb[0].mxu0
    %v1708 = vadd.f32 0.0, %v1707
    %1709 = vmatprep.mubr.f32.mxu0 0.0
    %1710 = vmatmul.mubr.f32.gmra.mrb[0].mxu0 %v1539
    %v1711 = vpop.f32.mrb[0].mxu0
    %v1712 = vadd.f32 0.0, %v1711
    %v1713 = vpop.f32.mrb[0].mxu0
    %v1714 = vadd.f32 0.0, %v1713
    %1715 = vmatprep.mubr.f32.mxu0 0.0
    %1716 = vmatmul.mubr.f32.gmra.mrb[0].mxu0 %v1542
    %v1717 = vpop.f32.mrb[0].mxu0
    %v1718 = vadd.f32 0.0, %v1717
    %v1719 = vpop.f32.mrb[0].mxu0
    %v1720 = vadd.f32 0.0, %v1719
    %1721 = vdwg.mxu0
    %v1722 = vadd.f32 %v1429, %v1611
    %v1723 = vadd.f32 %v1430, %v1613
    %v1724 = vadd.f32 %v1431, %v1700
    %v1725 = vadd.f32 %v1432, %v1702
    %v1726 = vadd.f32 %v1433, %v1617
    %v1727 = vadd.f32 %v1434, %v1619
    %v1728 = vadd.f32 %v1435, %v1706
    %v1729 = vadd.f32 %v1436, %v1708
    %v1730 = vadd.f32 %v1437, %v1623
    %v1731 = vadd.f32 %v1438, %v1625
    %v1732 = vadd.f32 %v1439, %v1712
    %v1733 = vadd.f32 %v1440, %v1714
    %v1734 = vadd.f32 %v1441, %v1629
    %v1735 = vadd.f32 %v1442, %v1631
    %v1736 = vadd.f32 %v1443, %v1718
    %v1737 = vadd.f32 %v1444, %v1720
    %1738 = vrot.lane.b32.xlu0 %v77, 113
    %v1739 = vpop.permute.xlu0 %1738
    %1740 = vrot.lane.b32.xlu0 %v81, 113
    %v1741 = vpop.permute.xlu0 %1740
    %1742 = vrot.lane.b32.xlu0 %v85, 113
    %v1743 = vpop.permute.xlu0 %1742
    %1744 = vrot.lane.b32.xlu0 %v89, 113
    %v1745 = vpop.permute.xlu0 %1744
    %1746 = vrot.lane.b32.xlu0 %v78, 113
    %v1747 = vpop.permute.xlu0 %1746
    %1748 = vrot.lane.b32.xlu0 %v82, 113
    %v1749 = vpop.permute.xlu0 %1748
    %1750 = vrot.lane.b32.xlu0 %v86, 113
    %v1751 = vpop.permute.xlu0 %1750
    %1752 = vrot.lane.b32.xlu0 %v90, 113
    %v1753 = vpop.permute.xlu0 %1752
    %1754 = vrot.lane.b32.xlu0 %v79, 113
    %v1755 = vpop.permute.xlu0 %1754
    %1756 = vrot.lane.b32.xlu0 %v83, 113
    %v1757 = vpop.permute.xlu0 %1756
    %1758 = vrot.lane.b32.xlu0 %v87, 113
    %v1759 = vpop.permute.xlu0 %1758
    %1760 = vrot.lane.b32.xlu0 %v91, 113
    %v1761 = vpop.permute.xlu0 %1760
    %1762 = vrot.lane.b32.xlu0 %v80, 113
    %v1763 = vpop.permute.xlu0 %1762
    %1764 = vrot.lane.b32.xlu0 %v84, 113
    %v1765 = vpop.permute.xlu0 %1764
    %1766 = vrot.lane.b32.xlu0 %v88, 113
    %v1767 = vpop.permute.xlu0 %1766
    %1768 = vrot.lane.b32.xlu0 %v92, 113
    %v1769 = vpop.permute.xlu0 %1768
    %vm1770 = vcmp.lt.s32.totalorder %v131, 113
    %v1771 = vsel %vm1770, %v1755, %v1763
    %v1772 = vsel %vm1770, %v1757, %v1765
    %v1773 = vsel %vm1770, %v1759, %v1767
    %v1774 = vsel %vm1770, %v1761, %v1769
    %v1775 = vsel %vm1770, %v1747, %v1755
    %v1776 = vsel %vm1770, %v1749, %v1757
    %v1777 = vsel %vm1770, %v1751, %v1759
    %v1778 = vsel %vm1770, %v1753, %v1761
    %v1779 = vsel %vm1770, %v1739, %v1747
    %v1780 = vsel %vm1770, %v1741, %v1749
    %v1781 = vsel %vm1770, %v1743, %v1751
    %v1782 = vsel %vm1770, %v1745, %v1753
    %v1783 = vsel %vm1770, %v1763, %v1739
    %v1784 = vsel %vm1770, %v1765, %v1741
    %v1785 = vsel %vm1770, %v1767, %v1743
    %v1786 = vsel %vm1770, %v1769, %v1745
    %s1787 = scalar_lea.vmem [#allocation2], 768
    %v1788 = vld [vmem:[%s1787] sm:$0xff]
    %v1789 = vld [vmem:[%s1787 + $0x8] sm:$0xff]
    %v1790 = vld [vmem:[%s1787 + $0x10] sm:$0xff]
    %v1791 = vld [vmem:[%s1787 + $0x18] sm:$0xff]
    %v1792 = vld [vmem:[%s1787 + $0x20] sm:$0xff]
    %v1793 = vld [vmem:[%s1787 + $0x28] sm:$0xff]
    %v1794 = vld [vmem:[%s1787 + $0x30] sm:$0xff]
    %v1795 = vld [vmem:[%s1787 + $0x38] sm:$0xff]
    %v1796 = vld [vmem:[%s1787 + $0x40] sm:$0xff]
    %v1797 = vld [vmem:[%s1787 + $0x48] sm:$0xff]
    %v1798 = vld [vmem:[%s1787 + $0x50] sm:$0xff]
    %v1799 = vld [vmem:[%s1787 + $0x58] sm:$0xff]
    %v1800 = vld [vmem:[%s1787 + $0x60] sm:$0xff]
    %v1801 = vld [vmem:[%s1787 + $0x68] sm:$0xff]
    %v1802 = vld [vmem:[%s1787 + $0x70] sm:$0xff]
    %v1803 = vld [vmem:[%s1787 + $0x78] sm:$0xff]
    %v1804 = vmul.f32 %v1779, %v1788
    %v1805 = vmul.f32 %v1775, %v1789
    %v1806 = vmul.f32 %v1771, %v1790
    %v1807 = vmul.f32 %v1783, %v1791
    %v1808 = vmul.f32 %v1780, %v1792
    %v1809 = vmul.f32 %v1776, %v1793
    %v1810 = vmul.f32 %v1772, %v1794
    %v1811 = vmul.f32 %v1784, %v1795
    %v1812 = vmul.f32 %v1781, %v1796
    %v1813 = vmul.f32 %v1777, %v1797
    %v1814 = vmul.f32 %v1773, %v1798
    %v1815 = vmul.f32 %v1785, %v1799
    %v1816 = vmul.f32 %v1782, %v1800
    %v1817 = vmul.f32 %v1778, %v1801
    %v1818 = vmul.f32 %v1774, %v1802
    %v1819 = vmul.f32 %v1786, %v1803
    %s1820 = scalar_lea.vmem [#allocation5], 192
    %v1821 = vld [vmem:[%s1820] sm:$0xff]
    %v1822 = vld [vmem:[%s1820 + $0x8] sm:$0xff]
    %v1823 = vld [vmem:[%s1820 + $0x10] sm:$0xff]
    %v1824 = vld [vmem:[%s1820 + $0x18] sm:$0xff]
    %v1826 = vsel %vm185, %v1821, 0
    %v1829 = vsel %vm185, %v1822, 0
    %v1832 = vsel %vm185, %v1823, 0
    %v1835 = vsel %vm185, %v1824, 0
    %1837 = vmatprep.subr.mxu0 %v1805
    %1838 = vmatpush1.msra.mxu0 %v1804
    %1839 = vmatprep.subr.mxu0 %v1809
    %1840 = vmatpush1.msra.mxu0 %v1808
    %1841 = vmatprep.subr.mxu0 %v1813
    %1842 = vmatpush1.msra.mxu0 %v1812
    %1843 = vmatprep.subr.mxu0 %v1817
    %1844 = vmatpush1.msra.mxu0 %v1816
    %1845 = vmatprep.subr.mxu0 0.0
    %1846 = vmatpush1.msra.mxu0 0.0
    %1847 = vmatprep.subr.mxu0 0.0
    %1848 = vmatpush1.msra.mxu0 0.0
    %1849 = vmatprep.subr.mxu0 0.0
    %1850 = vmatpush1.msra.mxu0 0.0
    %1851 = vmatprep.subr.mxu0 0.0
    %1852 = vmatpush1.msra.mxu0 0.0
    %1853 = vmatprep.subr.mxu0 0.0
    %1854 = vmatpush1.msra.mxu0 0.0
    %1855 = vmatprep.subr.mxu0 0.0
    %1856 = vmatpush1.msra.mxu0 0.0
    %1857 = vmatprep.subr.mxu0 0.0
    %1858 = vmatpush1.msra.mxu0 0.0
    %1859 = vmatprep.subr.mxu0 0.0
    %1860 = vmatpush1.msra.mxu0 0.0
    %1861 = vmatprep.subr.mxu0 0.0
    %1862 = vmatpush1.msra.mxu0 0.0
    %1863 = vmatprep.subr.mxu0 0.0
    %1864 = vmatpush1.msra.mxu0 0.0
    %1865 = vmatprep.subr.mxu0 0.0
    %1866 = vmatpush1.msra.mxu0 0.0
    %1867 = vmatprep.subr.mxu0 0.0
    %1868 = vmatpush1.msra.mxu0 0.0
    %1869 = vmatprep.subr.mxu0 0.0
    %1870 = vmatpush1.msra.mxu0 0.0
    %1871 = vmatprep.subr.mxu0 0.0
    %1872 = vmatpush1.msra.mxu0 0.0
    %1873 = vmatprep.subr.mxu0 0.0
    %1874 = vmatpush1.msra.mxu0 0.0
    %1875 = vmatprep.subr.mxu0 0.0
    %1876 = vmatpush1.msra.mxu0 0.0
    %1877 = vmatprep.subr.mxu0 0.0
    %1878 = vmatpush1.msra.mxu0 0.0
    %1879 = vmatprep.subr.mxu0 0.0
    %1880 = vmatpush1.msra.mxu0 0.0
    %1881 = vmatprep.subr.mxu0 0.0
    %1882 = vmatpush1.msra.mxu0 0.0
    %1883 = vmatprep.subr.mxu0 0.0
    %1884 = vmatpush1.msra.mxu0 0.0
    %1885 = vmatprep.subr.mxu0 0.0
    %1886 = vmatpush1.msra.mxu0 0.0
    %1887 = vmatprep.subr.mxu0 0.0
    %1888 = vmatpush1.msra.mxu0 0.0
    %1889 = vmatprep.subr.mxu0 0.0
    %1890 = vmatpush1.msra.mxu0 0.0
    %1891 = vmatprep.subr.mxu0 0.0
    %1892 = vmatpush1.msra.mxu0 0.0
    %1893 = vmatprep.subr.mxu0 0.0
    %1894 = vmatpush1.msra.mxu0 0.0
    %1895 = vmatprep.subr.mxu0 0.0
    %1896 = vmatpush1.msra.mxu0 0.0
    %1897 = vmatprep.subr.mxu0 0.0
    %1898 = vmatpush1.msra.mxu0 0.0
    %1899 = vmatprep.subr.mxu0 0.0
    %1900 = vmatpush1.msra.mxu0 0.0
    %1901 = vmatprep.mubr.f32.mxu0 0.0
    %1902 = vmatmul.mubr.f32.gmra.mrb[0].mxu0 %v1826
    %v1903 = vpop.f32.mrb[0].mxu0
    %v1904 = vadd.f32 0.0, %v1903
    %v1905 = vpop.f32.mrb[0].mxu0
    %v1906 = vadd.f32 0.0, %v1905
    %1907 = vmatprep.mubr.f32.mxu0 0.0
    %1908 = vmatmul.mubr.f32.gmra.mrb[0].mxu0 %v1829
    %v1909 = vpop.f32.mrb[0].mxu0
    %v1910 = vadd.f32 0.0, %v1909
    %v1911 = vpop.f32.mrb[0].mxu0
    %v1912 = vadd.f32 0.0, %v1911
    %1913 = vmatprep.mubr.f32.mxu0 0.0
    %1914 = vmatmul.mubr.f32.gmra.mrb[0].mxu0 %v1832
    %v1915 = vpop.f32.mrb[0].mxu0
    %v1916 = vadd.f32 0.0, %v1915
    %v1917 = vpop.f32.mrb[0].mxu0
    %v1918 = vadd.f32 0.0, %v1917
    %1919 = vmatprep.mubr.f32.mxu0 0.0
    %1920 = vmatmul.mubr.f32.gmra.mrb[0].mxu0 %v1835
    %v1921 = vpop.f32.mrb[0].mxu0
    %v1922 = vadd.f32 0.0, %v1921
    %v1923 = vpop.f32.mrb[0].mxu0
    %v1924 = vadd.f32 0.0, %v1923
    %1925 = vdwg.mxu0
    %1926 = vmatprep.subr.mxu0 %v1807
    %1927 = vmatpush1.msra.mxu0 %v1806
    %1928 = vmatprep.subr.mxu0 %v1811
    %1929 = vmatpush1.msra.mxu0 %v1810
    %1930 = vmatprep.subr.mxu0 %v1815
    %1931 = vmatpush1.msra.mxu0 %v1814
    %1932 = vmatprep.subr.mxu0 %v1819
    %1933 = vmatpush1.msra.mxu0 %v1818
    %1934 = vmatprep.subr.mxu0 0.0
    %1935 = vmatpush1.msra.mxu0 0.0
    %1936 = vmatprep.subr.mxu0 0.0
    %1937 = vmatpush1.msra.mxu0 0.0
    %1938 = vmatprep.subr.mxu0 0.0
    %1939 = vmatpush1.msra.mxu0 0.0
    %1940 = vmatprep.subr.mxu0 0.0
    %1941 = vmatpush1.msra.mxu0 0.0
    %1942 = vmatprep.subr.mxu0 0.0
    %1943 = vmatpush1.msra.mxu0 0.0
    %1944 = vmatprep.subr.mxu0 0.0
    %1945 = vmatpush1.msra.mxu0 0.0
    %1946 = vmatprep.subr.mxu0 0.0
    %1947 = vmatpush1.msra.mxu0 0.0
    %1948 = vmatprep.subr.mxu0 0.0
    %1949 = vmatpush1.msra.mxu0 0.0
    %1950 = vmatprep.subr.mxu0 0.0
    %1951 = vmatpush1.msra.mxu0 0.0
    %1952 = vmatprep.subr.mxu0 0.0
    %1953 = vmatpush1.msra.mxu0 0.0
    %1954 = vmatprep.subr.mxu0 0.0
    %1955 = vmatpush1.msra.mxu0 0.0
    %1956 = vmatprep.subr.mxu0 0.0
    %1957 = vmatpush1.msra.mxu0 0.0
    %1958 = vmatprep.subr.mxu0 0.0
    %1959 = vmatpush1.msra.mxu0 0.0
    %1960 = vmatprep.subr.mxu0 0.0
    %1961 = vmatpush1.msra.mxu0 0.0
    %1962 = vmatprep.subr.mxu0 0.0
    %1963 = vmatpush1.msra.mxu0 0.0
    %1964 = vmatprep.subr.mxu0 0.0
    %1965 = vmatpush1.msra.mxu0 0.0
    %1966 = vmatprep.subr.mxu0 0.0
    %1967 = vmatpush1.msra.mxu0 0.0
    %1968 = vmatprep.subr.mxu0 0.0
    %1969 = vmatpush1.msra.mxu0 0.0
    %1970 = vmatprep.subr.mxu0 0.0
    %1971 = vmatpush1.msra.mxu0 0.0
    %1972 = vmatprep.subr.mxu0 0.0
    %1973 = vmatpush1.msra.mxu0 0.0
    %1974 = vmatprep.subr.mxu0 0.0
    %1975 = vmatpush1.msra.mxu0 0.0
    %1976 = vmatprep.subr.mxu0 0.0
    %1977 = vmatpush1.msra.mxu0 0.0
    %1978 = vmatprep.subr.mxu0 0.0
    %1979 = vmatpush1.msra.mxu0 0.0
    %1980 = vmatprep.subr.mxu0 0.0
    %1981 = vmatpush1.msra.mxu0 0.0
    %1982 = vmatprep.subr.mxu0 0.0
    %1983 = vmatpush1.msra.mxu0 0.0
    %1984 = vmatprep.subr.mxu0 0.0
    %1985 = vmatpush1.msra.mxu0 0.0
    %1986 = vmatprep.subr.mxu0 0.0
    %1987 = vmatpush1.msra.mxu0 0.0
    %1988 = vmatprep.subr.mxu0 0.0
    %1989 = vmatpush1.msra.mxu0 0.0
    %1990 = vmatprep.mubr.f32.mxu0 0.0
    %1991 = vmatmul.mubr.f32.gmra.mrb[0].mxu0 %v1826
    %v1992 = vpop.f32.mrb[0].mxu0
    %v1993 = vadd.f32 0.0, %v1992
    %v1994 = vpop.f32.mrb[0].mxu0
    %v1995 = vadd.f32 0.0, %v1994
    %1996 = vmatprep.mubr.f32.mxu0 0.0
    %1997 = vmatmul.mubr.f32.gmra.mrb[0].mxu0 %v1829
    %v1998 = vpop.f32.mrb[0].mxu0
    %v1999 = vadd.f32 0.0, %v1998
    %v2000 = vpop.f32.mrb[0].mxu0
    %v2001 = vadd.f32 0.0, %v2000
    %2002 = vmatprep.mubr.f32.mxu0 0.0
    %2003 = vmatmul.mubr.f32.gmra.mrb[0].mxu0 %v1832
    %v2004 = vpop.f32.mrb[0].mxu0
    %v2005 = vadd.f32 0.0, %v2004
    %v2006 = vpop.f32.mrb[0].mxu0
    %v2007 = vadd.f32 0.0, %v2006
    %2008 = vmatprep.mubr.f32.mxu0 0.0
    %2009 = vmatmul.mubr.f32.gmra.mrb[0].mxu0 %v1835
    %v2010 = vpop.f32.mrb[0].mxu0
    %v2011 = vadd.f32 0.0, %v2010
    %v2012 = vpop.f32.mrb[0].mxu0
    %v2013 = vadd.f32 0.0, %v2012
    %2014 = vdwg.mxu0
    %v2015 = vadd.f32 %v1722, %v1904
    %v2016 = vadd.f32 %v1723, %v1906
    %v2017 = vadd.f32 %v1724, %v1993
    %v2018 = vadd.f32 %v1725, %v1995
    %v2019 = vadd.f32 %v1726, %v1910
    %v2020 = vadd.f32 %v1727, %v1912
    %v2021 = vadd.f32 %v1728, %v1999
    %v2022 = vadd.f32 %v1729, %v2001
    %v2023 = vadd.f32 %v1730, %v1916
    %v2024 = vadd.f32 %v1731, %v1918
    %v2025 = vadd.f32 %v1732, %v2005
    %v2026 = vadd.f32 %v1733, %v2007
    %v2027 = vadd.f32 %v1734, %v1922
    %v2028 = vadd.f32 %v1735, %v1924
    %v2029 = vadd.f32 %v1736, %v2011
    %v2030 = vadd.f32 %v1737, %v2013
    %2031 = vrot.lane.b32.xlu0 %v77, 112
    %v2032 = vpop.permute.xlu0 %2031
    %2033 = vrot.lane.b32.xlu0 %v81, 112
    %v2034 = vpop.permute.xlu0 %2033
    %2035 = vrot.lane.b32.xlu0 %v85, 112
    %v2036 = vpop.permute.xlu0 %2035
    %2037 = vrot.lane.b32.xlu0 %v89, 112
    %v2038 = vpop.permute.xlu0 %2037
    %2039 = vrot.lane.b32.xlu0 %v78, 112
    %v2040 = vpop.permute.xlu0 %2039
    %2041 = vrot.lane.b32.xlu0 %v82, 112
    %v2042 = vpop.permute.xlu0 %2041
    %2043 = vrot.lane.b32.xlu0 %v86, 112
    %v2044 = vpop.permute.xlu0 %2043
    %2045 = vrot.lane.b32.xlu0 %v90, 112
    %v2046 = vpop.permute.xlu0 %2045
    %2047 = vrot.lane.b32.xlu0 %v79, 112
    %v2048 = vpop.permute.xlu0 %2047
    %2049 = vrot.lane.b32.xlu0 %v83, 112
    %v2050 = vpop.permute.xlu0 %2049
    %2051 = vrot.lane.b32.xlu0 %v87, 112
    %v2052 = vpop.permute.xlu0 %2051
    %2053 = vrot.lane.b32.xlu0 %v91, 112
    %v2054 = vpop.permute.xlu0 %2053
    %2055 = vrot.lane.b32.xlu0 %v80, 112
    %v2056 = vpop.permute.xlu0 %2055
    %2057 = vrot.lane.b32.xlu0 %v84, 112
    %v2058 = vpop.permute.xlu0 %2057
    %2059 = vrot.lane.b32.xlu0 %v88, 112
    %v2060 = vpop.permute.xlu0 %2059
    %2061 = vrot.lane.b32.xlu0 %v92, 112
    %v2062 = vpop.permute.xlu0 %2061
    %vm2063 = vcmp.lt.s32.totalorder %v131, 112
    %v2064 = vsel %vm2063, %v2048, %v2056
    %v2065 = vsel %vm2063, %v2050, %v2058
    %v2066 = vsel %vm2063, %v2052, %v2060
    %v2067 = vsel %vm2063, %v2054, %v2062
    %v2068 = vsel %vm2063, %v2040, %v2048
    %v2069 = vsel %vm2063, %v2042, %v2050
    %v2070 = vsel %vm2063, %v2044, %v2052
    %v2071 = vsel %vm2063, %v2046, %v2054
    %v2072 = vsel %vm2063, %v2032, %v2040
    %v2073 = vsel %vm2063, %v2034, %v2042
    %v2074 = vsel %vm2063, %v2036, %v2044
    %v2075 = vsel %vm2063, %v2038, %v2046
    %v2076 = vsel %vm2063, %v2056, %v2032
    %v2077 = vsel %vm2063, %v2058, %v2034
    %v2078 = vsel %vm2063, %v2060, %v2036
    %v2079 = vsel %vm2063, %v2062, %v2038
    %s2080 = scalar_lea.vmem [#allocation2], 896
    %v2081 = vld [vmem:[%s2080] sm:$0xff]
    %v2082 = vld [vmem:[%s2080 + $0x8] sm:$0xff]
    %v2083 = vld [vmem:[%s2080 + $0x10] sm:$0xff]
    %v2084 = vld [vmem:[%s2080 + $0x18] sm:$0xff]
    %v2085 = vld [vmem:[%s2080 + $0x20] sm:$0xff]
    %v2086 = vld [vmem:[%s2080 + $0x28] sm:$0xff]
    %v2087 = vld [vmem:[%s2080 + $0x30] sm:$0xff]
    %v2088 = vld [vmem:[%s2080 + $0x38] sm:$0xff]
    %v2089 = vld [vmem:[%s2080 + $0x40] sm:$0xff]
    %v2090 = vld [vmem:[%s2080 + $0x48] sm:$0xff]
    %v2091 = vld [vmem:[%s2080 + $0x50] sm:$0xff]
    %v2092 = vld [vmem:[%s2080 + $0x58] sm:$0xff]
    %v2093 = vld [vmem:[%s2080 + $0x60] sm:$0xff]
    %v2094 = vld [vmem:[%s2080 + $0x68] sm:$0xff]
    %v2095 = vld [vmem:[%s2080 + $0x70] sm:$0xff]
    %v2096 = vld [vmem:[%s2080 + $0x78] sm:$0xff]
    %v2097 = vmul.f32 %v2072, %v2081
    %v2098 = vmul.f32 %v2068, %v2082
    %v2099 = vmul.f32 %v2064, %v2083
    %v2100 = vmul.f32 %v2076, %v2084
    %v2101 = vmul.f32 %v2073, %v2085
    %v2102 = vmul.f32 %v2069, %v2086
    %v2103 = vmul.f32 %v2065, %v2087
    %v2104 = vmul.f32 %v2077, %v2088
    %v2105 = vmul.f32 %v2074, %v2089
    %v2106 = vmul.f32 %v2070, %v2090
    %v2107 = vmul.f32 %v2066, %v2091
    %v2108 = vmul.f32 %v2078, %v2092
    %v2109 = vmul.f32 %v2075, %v2093
    %v2110 = vmul.f32 %v2071, %v2094
    %v2111 = vmul.f32 %v2067, %v2095
    %v2112 = vmul.f32 %v2079, %v2096
    %s2113 = scalar_lea.vmem [#allocation5], 224
    %v2114 = vld [vmem:[%s2113] sm:$0xff]
    %v2115 = vld [vmem:[%s2113 + $0x8] sm:$0xff]
    %v2116 = vld [vmem:[%s2113 + $0x10] sm:$0xff]
    %v2117 = vld [vmem:[%s2113 + $0x18] sm:$0xff]
    %v2119 = vsel %vm185, %v2114, 0
    %v2122 = vsel %vm185, %v2115, 0
    %v2125 = vsel %vm185, %v2116, 0
    %v2128 = vsel %vm185, %v2117, 0
    %2130 = vmatprep.subr.mxu0 %v2098
    %2131 = vmatpush1.msra.mxu0 %v2097
    %2132 = vmatprep.subr.mxu0 %v2102
    %2133 = vmatpush1.msra.mxu0 %v2101
    %2134 = vmatprep.subr.mxu0 %v2106
    %2135 = vmatpush1.msra.mxu0 %v2105
    %2136 = vmatprep.subr.mxu0 %v2110
    %2137 = vmatpush1.msra.mxu0 %v2109
    %2138 = vmatprep.subr.mxu0 0.0
    %2139 = vmatpush1.msra.mxu0 0.0
    %2140 = vmatprep.subr.mxu0 0.0
    %2141 = vmatpush1.msra.mxu0 0.0
    %2142 = vmatprep.subr.mxu0 0.0
    %2143 = vmatpush1.msra.mxu0 0.0
    %2144 = vmatprep.subr.mxu0 0.0
    %2145 = vmatpush1.msra.mxu0 0.0
    %2146 = vmatprep.subr.mxu0 0.0
    %2147 = vmatpush1.msra.mxu0 0.0
    %2148 = vmatprep.subr.mxu0 0.0
    %2149 = vmatpush1.msra.mxu0 0.0
    %2150 = vmatprep.subr.mxu0 0.0
    %2151 = vmatpush1.msra.mxu0 0.0
    %2152 = vmatprep.subr.mxu0 0.0
    %2153 = vmatpush1.msra.mxu0 0.0
    %2154 = vmatprep.subr.mxu0 0.0
    %2155 = vmatpush1.msra.mxu0 0.0
    %2156 = vmatprep.subr.mxu0 0.0
    %2157 = vmatpush1.msra.mxu0 0.0
    %2158 = vmatprep.subr.mxu0 0.0
    %2159 = vmatpush1.msra.mxu0 0.0
    %2160 = vmatprep.subr.mxu0 0.0
    %2161 = vmatpush1.msra.mxu0 0.0
    %2162 = vmatprep.subr.mxu0 0.0
    %2163 = vmatpush1.msra.mxu0 0.0
    %2164 = vmatprep.subr.mxu0 0.0
    %2165 = vmatpush1.msra.mxu0 0.0
    %2166 = vmatprep.subr.mxu0 0.0
    %2167 = vmatpush1.msra.mxu0 0.0
    %2168 = vmatprep.subr.mxu0 0.0
    %2169 = vmatpush1.msra.mxu0 0.0
    %2170 = vmatprep.subr.mxu0 0.0
    %2171 = vmatpush1.msra.mxu0 0.0
    %2172 = vmatprep.subr.mxu0 0.0
    %2173 = vmatpush1.msra.mxu0 0.0
    %2174 = vmatprep.subr.mxu0 0.0
    %2175 = vmatpush1.msra.mxu0 0.0
    %2176 = vmatprep.subr.mxu0 0.0
    %2177 = vmatpush1.msra.mxu0 0.0
    %2178 = vmatprep.subr.mxu0 0.0
    %2179 = vmatpush1.msra.mxu0 0.0
    %2180 = vmatprep.subr.mxu0 0.0
    %2181 = vmatpush1.msra.mxu0 0.0
    %2182 = vmatprep.subr.mxu0 0.0
    %2183 = vmatpush1.msra.mxu0 0.0
    %2184 = vmatprep.subr.mxu0 0.0
    %2185 = vmatpush1.msra.mxu0 0.0
    %2186 = vmatprep.subr.mxu0 0.0
    %2187 = vmatpush1.msra.mxu0 0.0
    %2188 = vmatprep.subr.mxu0 0.0
    %2189 = vmatpush1.msra.mxu0 0.0
    %2190 = vmatprep.subr.mxu0 0.0
    %2191 = vmatpush1.msra.mxu0 0.0
    %2192 = vmatprep.subr.mxu0 0.0
    %2193 = vmatpush1.msra.mxu0 0.0
    %2194 = vmatprep.mubr.f32.mxu0 0.0
    %2195 = vmatmul.mubr.f32.gmra.mrb[0].mxu0 %v2119
    %v2196 = vpop.f32.mrb[0].mxu0
    %v2197 = vadd.f32 0.0, %v2196
    %v2198 = vpop.f32.mrb[0].mxu0
    %v2199 = vadd.f32 0.0, %v2198
    %2200 = vmatprep.mubr.f32.mxu0 0.0
    %2201 = vmatmul.mubr.f32.gmra.mrb[0].mxu0 %v2122
    %v2202 = vpop.f32.mrb[0].mxu0
    %v2203 = vadd.f32 0.0, %v2202
    %v2204 = vpop.f32.mrb[0].mxu0
    %v2205 = vadd.f32 0.0, %v2204
    %2206 = vmatprep.mubr.f32.mxu0 0.0
    %2207 = vmatmul.mubr.f32.gmra.mrb[0].mxu0 %v2125
    %v2208 = vpop.f32.mrb[0].mxu0
    %v2209 = vadd.f32 0.0, %v2208
    %v2210 = vpop.f32.mrb[0].mxu0
    %v2211 = vadd.f32 0.0, %v2210
    %2212 = vmatprep.mubr.f32.mxu0 0.0
    %2213 = vmatmul.mubr.f32.gmra.mrb[0].mxu0 %v2128
    %v2214 = vpop.f32.mrb[0].mxu0
    %v2215 = vadd.f32 0.0, %v2214
    %v2216 = vpop.f32.mrb[0].mxu0
    %v2217 = vadd.f32 0.0, %v2216
    %2218 = vdwg.mxu0
    %2219 = vmatprep.subr.mxu0 %v2100
    %2220 = vmatpush1.msra.mxu0 %v2099
    %2221 = vmatprep.subr.mxu0 %v2104
    %2222 = vmatpush1.msra.mxu0 %v2103
    %2223 = vmatprep.subr.mxu0 %v2108
    %2224 = vmatpush1.msra.mxu0 %v2107
    %2225 = vmatprep.subr.mxu0 %v2112
    %2226 = vmatpush1.msra.mxu0 %v2111
    %2227 = vmatprep.subr.mxu0 0.0
    %2228 = vmatpush1.msra.mxu0 0.0
    %2229 = vmatprep.subr.mxu0 0.0
    %2230 = vmatpush1.msra.mxu0 0.0
    %2231 = vmatprep.subr.mxu0 0.0
    %2232 = vmatpush1.msra.mxu0 0.0
    %2233 = vmatprep.subr.mxu0 0.0
    %2234 = vmatpush1.msra.mxu0 0.0
    %2235 = vmatprep.subr.mxu0 0.0
    %2236 = vmatpush1.msra.mxu0 0.0
    %2237 = vmatprep.subr.mxu0 0.0
    %2238 = vmatpush1.msra.mxu0 0.0
    %2239 = vmatprep.subr.mxu0 0.0
    %2240 = vmatpush1.msra.mxu0 0.0
    %2241 = vmatprep.subr.mxu0 0.0
    %2242 = vmatpush1.msra.mxu0 0.0
    %2243 = vmatprep.subr.mxu0 0.0
    %2244 = vmatpush1.msra.mxu0 0.0
    %2245 = vmatprep.subr.mxu0 0.0
    %2246 = vmatpush1.msra.mxu0 0.0
    %2247 = vmatprep.subr.mxu0 0.0
    %2248 = vmatpush1.msra.mxu0 0.0
    %2249 = vmatprep.subr.mxu0 0.0
    %2250 = vmatpush1.msra.mxu0 0.0
    %2251 = vmatprep.subr.mxu0 0.0
    %2252 = vmatpush1.msra.mxu0 0.0
    %2253 = vmatprep.subr.mxu0 0.0
    %2254 = vmatpush1.msra.mxu0 0.0
    %2255 = vmatprep.subr.mxu0 0.0
    %2256 = vmatpush1.msra.mxu0 0.0
    %2257 = vmatprep.subr.mxu0 0.0
    %2258 = vmatpush1.msra.mxu0 0.0
    %2259 = vmatprep.subr.mxu0 0.0
    %2260 = vmatpush1.msra.mxu0 0.0
    %2261 = vmatprep.subr.mxu0 0.0
    %2262 = vmatpush1.msra.mxu0 0.0
    %2263 = vmatprep.subr.mxu0 0.0
    %2264 = vmatpush1.msra.mxu0 0.0
    %2265 = vmatprep.subr.mxu0 0.0
    %2266 = vmatpush1.msra.mxu0 0.0
    %2267 = vmatprep.subr.mxu0 0.0
    %2268 = vmatpush1.msra.mxu0 0.0
    %2269 = vmatprep.subr.mxu0 0.0
    %2270 = vmatpush1.msra.mxu0 0.0
    %2271 = vmatprep.subr.mxu0 0.0
    %2272 = vmatpush1.msra.mxu0 0.0
    %2273 = vmatprep.subr.mxu0 0.0
    %2274 = vmatpush1.msra.mxu0 0.0
    %2275 = vmatprep.subr.mxu0 0.0
    %2276 = vmatpush1.msra.mxu0 0.0
    %2277 = vmatprep.subr.mxu0 0.0
    %2278 = vmatpush1.msra.mxu0 0.0
    %2279 = vmatprep.subr.mxu0 0.0
    %2280 = vmatpush1.msra.mxu0 0.0
    %2281 = vmatprep.subr.mxu0 0.0
    %2282 = vmatpush1.msra.mxu0 0.0
    %2283 = vmatprep.mubr.f32.mxu0 0.0
    %2284 = vmatmul.mubr.f32.gmra.mrb[0].mxu0 %v2119
    %v2285 = vpop.f32.mrb[0].mxu0
    %v2286 = vadd.f32 0.0, %v2285
    %v2287 = vpop.f32.mrb[0].mxu0
    %v2288 = vadd.f32 0.0, %v2287
    %2289 = vmatprep.mubr.f32.mxu0 0.0
    %2290 = vmatmul.mubr.f32.gmra.mrb[0].mxu0 %v2122
    %v2291 = vpop.f32.mrb[0].mxu0
    %v2292 = vadd.f32 0.0, %v2291
    %v2293 = vpop.f32.mrb[0].mxu0
    %v2294 = vadd.f32 0.0, %v2293
    %2295 = vmatprep.mubr.f32.mxu0 0.0
    %2296 = vmatmul.mubr.f32.gmra.mrb[0].mxu0 %v2125
    %v2297 = vpop.f32.mrb[0].mxu0
    %v2298 = vadd.f32 0.0, %v2297
    %v2299 = vpop.f32.mrb[0].mxu0
    %v2300 = vadd.f32 0.0, %v2299
    %2301 = vmatprep.mubr.f32.mxu0 0.0
    %2302 = vmatmul.mubr.f32.gmra.mrb[0].mxu0 %v2128
    %v2303 = vpop.f32.mrb[0].mxu0
    %v2304 = vadd.f32 0.0, %v2303
    %v2305 = vpop.f32.mrb[0].mxu0
    %v2306 = vadd.f32 0.0, %v2305
    %2307 = vdwg.mxu0
    %v2308 = vadd.f32 %v2015, %v2197
    %v2309 = vadd.f32 %v2016, %v2199
    %v2310 = vadd.f32 %v2017, %v2286
    %v2311 = vadd.f32 %v2018, %v2288
    %v2312 = vadd.f32 %v2019, %v2203
    %v2313 = vadd.f32 %v2020, %v2205
    %v2314 = vadd.f32 %v2021, %v2292
    %v2315 = vadd.f32 %v2022, %v2294
    %v2316 = vadd.f32 %v2023, %v2209
    %v2317 = vadd.f32 %v2024, %v2211
    %v2318 = vadd.f32 %v2025, %v2298
    %v2319 = vadd.f32 %v2026, %v2300
    %v2320 = vadd.f32 %v2027, %v2215
    %v2321 = vadd.f32 %v2028, %v2217
    %v2322 = vadd.f32 %v2029, %v2304
    %v2323 = vadd.f32 %v2030, %v2306
    %2324 = vrot.lane.b32.xlu0 %v77, 111
    %v2325 = vpop.permute.xlu0 %2324
    %2326 = vrot.lane.b32.xlu0 %v81, 111
    %v2327 = vpop.permute.xlu0 %2326
    %2328 = vrot.lane.b32.xlu0 %v85, 111
    %v2329 = vpop.permute.xlu0 %2328
    %2330 = vrot.lane.b32.xlu0 %v89, 111
    %v2331 = vpop.permute.xlu0 %2330
    %2332 = vrot.lane.b32.xlu0 %v78, 111
    %v2333 = vpop.permute.xlu0 %2332
    %2334 = vrot.lane.b32.xlu0 %v82, 111
    %v2335 = vpop.permute.xlu0 %2334
    %2336 = vrot.lane.b32.xlu0 %v86, 111
    %v2337 = vpop.permute.xlu0 %2336
    %2338 = vrot.lane.b32.xlu0 %v90, 111
    %v2339 = vpop.permute.xlu0 %2338
    %2340 = vrot.lane.b32.xlu0 %v79, 111
    %v2341 = vpop.permute.xlu0 %2340
    %2342 = vrot.lane.b32.xlu0 %v83, 111
    %v2343 = vpop.permute.xlu0 %2342
    %2344 = vrot.lane.b32.xlu0 %v87, 111
    %v2345 = vpop.permute.xlu0 %2344
    %2346 = vrot.lane.b32.xlu0 %v91, 111
    %v2347 = vpop.permute.xlu0 %2346
    %2348 = vrot.lane.b32.xlu0 %v80, 111
    %v2349 = vpop.permute.xlu0 %2348
    %2350 = vrot.lane.b32.xlu0 %v84, 111
    %v2351 = vpop.permute.xlu0 %2350
    %2352 = vrot.lane.b32.xlu0 %v88, 111
    %v2353 = vpop.permute.xlu0 %2352
    %2354 = vrot.lane.b32.xlu0 %v92, 111
    %v2355 = vpop.permute.xlu0 %2354
    %vm2356 = vcmp.lt.s32.totalorder %v131, 111
    %v2357 = vsel %vm2356, %v2341, %v2349
    %v2358 = vsel %vm2356, %v2343, %v2351
    %v2359 = vsel %vm2356, %v2345, %v2353
    %v2360 = vsel %vm2356, %v2347, %v2355
    %v2361 = vsel %vm2356, %v2333, %v2341
    %v2362 = vsel %vm2356, %v2335, %v2343
    %v2363 = vsel %vm2356, %v2337, %v2345
    %v2364 = vsel %vm2356, %v2339, %v2347
    %v2365 = vsel %vm2356, %v2325, %v2333
    %v2366 = vsel %vm2356, %v2327, %v2335
    %v2367 = vsel %vm2356, %v2329, %v2337
    %v2368 = vsel %vm2356, %v2331, %v2339
    %v2369 = vsel %vm2356, %v2349, %v2325
    %v2370 = vsel %vm2356, %v2351, %v2327
    %v2371 = vsel %vm2356, %v2353, %v2329
    %v2372 = vsel %vm2356, %v2355, %v2331
    %s2373 = scalar_lea.vmem [#allocation2], 1024
    %v2374 = vld [vmem:[%s2373] sm:$0xff]
    %v2375 = vld [vmem:[%s2373 + $0x8] sm:$0xff]
    %v2376 = vld [vmem:[%s2373 + $0x10] sm:$0xff]
    %v2377 = vld [vmem:[%s2373 + $0x18] sm:$0xff]
    %v2378 = vld [vmem:[%s2373 + $0x20] sm:$0xff]
    %v2379 = vld [vmem:[%s2373 + $0x28] sm:$0xff]
    %v2380 = vld [vmem:[%s2373 + $0x30] sm:$0xff]
    %v2381 = vld [vmem:[%s2373 + $0x38] sm:$0xff]
    %v2382 = vld [vmem:[%s2373 + $0x40] sm:$0xff]
    %v2383 = vld [vmem:[%s2373 + $0x48] sm:$0xff]
    %v2384 = vld [vmem:[%s2373 + $0x50] sm:$0xff]
    %v2385 = vld [vmem:[%s2373 + $0x58] sm:$0xff]
    %v2386 = vld [vmem:[%s2373 + $0x60] sm:$0xff]
    %v2387 = vld [vmem:[%s2373 + $0x68] sm:$0xff]
    %v2388 = vld [vmem:[%s2373 + $0x70] sm:$0xff]
    %v2389 = vld [vmem:[%s2373 + $0x78] sm:$0xff]
    %v2390 = vmul.f32 %v2365, %v2374
    %v2391 = vmul.f32 %v2361, %v2375
    %v2392 = vmul.f32 %v2357, %v2376
    %v2393 = vmul.f32 %v2369, %v2377
    %v2394 = vmul.f32 %v2366, %v2378
    %v2395 = vmul.f32 %v2362, %v2379
    %v2396 = vmul.f32 %v2358, %v2380
    %v2397 = vmul.f32 %v2370, %v2381
    %v2398 = vmul.f32 %v2367, %v2382
    %v2399 = vmul.f32 %v2363, %v2383
    %v2400 = vmul.f32 %v2359, %v2384
    %v2401 = vmul.f32 %v2371, %v2385
    %v2402 = vmul.f32 %v2368, %v2386
    %v2403 = vmul.f32 %v2364, %v2387
    %v2404 = vmul.f32 %v2360, %v2388
    %v2405 = vmul.f32 %v2372, %v2389
    %s2406 = scalar_lea.vmem [#allocation5], 256
    %v2407 = vld [vmem:[%s2406] sm:$0xff]
    %v2408 = vld [vmem:[%s2406 + $0x8] sm:$0xff]
    %v2409 = vld [vmem:[%s2406 + $0x10] sm:$0xff]
    %v2410 = vld [vmem:[%s2406 + $0x18] sm:$0xff]
    %v2412 = vsel %vm185, %v2407, 0
    %v2415 = vsel %vm185, %v2408, 0
    %v2418 = vsel %vm185, %v2409, 0
    %v2421 = vsel %vm185, %v2410, 0
    %2423 = vmatprep.subr.mxu0 %v2391
    %2424 = vmatpush1.msra.mxu0 %v2390
    %2425 = vmatprep.subr.mxu0 %v2395
    %2426 = vmatpush1.msra.mxu0 %v2394
    %2427 = vmatprep.subr.mxu0 %v2399
    %2428 = vmatpush1.msra.mxu0 %v2398
    %2429 = vmatprep.subr.mxu0 %v2403
    %2430 = vmatpush1.msra.mxu0 %v2402
    %2431 = vmatprep.subr.mxu0 0.0
    %2432 = vmatpush1.msra.mxu0 0.0
    %2433 = vmatprep.subr.mxu0 0.0
    %2434 = vmatpush1.msra.mxu0 0.0
    %2435 = vmatprep.subr.mxu0 0.0
    %2436 = vmatpush1.msra.mxu0 0.0
    %2437 = vmatprep.subr.mxu0 0.0
    %2438 = vmatpush1.msra.mxu0 0.0
    %2439 = vmatprep.subr.mxu0 0.0
    %2440 = vmatpush1.msra.mxu0 0.0
    %2441 = vmatprep.subr.mxu0 0.0
    %2442 = vmatpush1.msra.mxu0 0.0
    %2443 = vmatprep.subr.mxu0 0.0
    %2444 = vmatpush1.msra.mxu0 0.0
    %2445 = vmatprep.subr.mxu0 0.0
    %2446 = vmatpush1.msra.mxu0 0.0
    %2447 = vmatprep.subr.mxu0 0.0
    %2448 = vmatpush1.msra.mxu0 0.0
    %2449 = vmatprep.subr.mxu0 0.0
    %2450 = vmatpush1.msra.mxu0 0.0
    %2451 = vmatprep.subr.mxu0 0.0
    %2452 = vmatpush1.msra.mxu0 0.0
    %2453 = vmatprep.subr.mxu0 0.0
    %2454 = vmatpush1.msra.mxu0 0.0
    %2455 = vmatprep.subr.mxu0 0.0
    %2456 = vmatpush1.msra.mxu0 0.0
    %2457 = vmatprep.subr.mxu0 0.0
    %2458 = vmatpush1.msra.mxu0 0.0
    %2459 = vmatprep.subr.mxu0 0.0
    %2460 = vmatpush1.msra.mxu0 0.0
    %2461 = vmatprep.subr.mxu0 0.0
    %2462 = vmatpush1.msra.mxu0 0.0
    %2463 = vmatprep.subr.mxu0 0.0
    %2464 = vmatpush1.msra.mxu0 0.0
    %2465 = vmatprep.subr.mxu0 0.0
    %2466 = vmatpush1.msra.mxu0 0.0
    %2467 = vmatprep.subr.mxu0 0.0
    %2468 = vmatpush1.msra.mxu0 0.0
    %2469 = vmatprep.subr.mxu0 0.0
    %2470 = vmatpush1.msra.mxu0 0.0
    %2471 = vmatprep.subr.mxu0 0.0
    %2472 = vmatpush1.msra.mxu0 0.0
    %2473 = vmatprep.subr.mxu0 0.0
    %2474 = vmatpush1.msra.mxu0 0.0
    %2475 = vmatprep.subr.mxu0 0.0
    %2476 = vmatpush1.msra.mxu0 0.0
    %2477 = vmatprep.subr.mxu0 0.0
    %2478 = vmatpush1.msra.mxu0 0.0
    %2479 = vmatprep.subr.mxu0 0.0
    %2480 = vmatpush1.msra.mxu0 0.0
    %2481 = vmatprep.subr.mxu0 0.0
    %2482 = vmatpush1.msra.mxu0 0.0
    %2483 = vmatprep.subr.mxu0 0.0
    %2484 = vmatpush1.msra.mxu0 0.0
    %2485 = vmatprep.subr.mxu0 0.0
    %2486 = vmatpush1.msra.mxu0 0.0
    %2487 = vmatprep.mubr.f32.mxu0 0.0
    %2488 = vmatmul.mubr.f32.gmra.mrb[0].mxu0 %v2412
    %v2489 = vpop.f32.mrb[0].mxu0
    %v2490 = vadd.f32 0.0, %v2489
    %v2491 = vpop.f32.mrb[0].mxu0
    %v2492 = vadd.f32 0.0, %v2491
    %2493 = vmatprep.mubr.f32.mxu0 0.0
    %2494 = vmatmul.mubr.f32.gmra.mrb[0].mxu0 %v2415
    %v2495 = vpop.f32.mrb[0].mxu0
    %v2496 = vadd.f32 0.0, %v2495
    %v2497 = vpop.f32.mrb[0].mxu0
    %v2498 = vadd.f32 0.0, %v2497
    %2499 = vmatprep.mubr.f32.mxu0 0.0
    %2500 = vmatmul.mubr.f32.gmra.mrb[0].mxu0 %v2418
    %v2501 = vpop.f32.mrb[0].mxu0
    %v2502 = vadd.f32 0.0, %v2501
    %v2503 = vpop.f32.mrb[0].mxu0
    %v2504 = vadd.f32 0.0, %v2503
    %2505 = vmatprep.mubr.f32.mxu0 0.0
    %2506 = vmatmul.mubr.f32.gmra.mrb[0].mxu0 %v2421
    %v2507 = vpop.f32.mrb[0].mxu0
    %v2508 = vadd.f32 0.0, %v2507
    %v2509 = vpop.f32.mrb[0].mxu0
    %v2510 = vadd.f32 0.0, %v2509
    %2511 = vdwg.mxu0
    %2512 = vmatprep.subr.mxu0 %v2393
    %2513 = vmatpush1.msra.mxu0 %v2392
    %2514 = vmatprep.subr.mxu0 %v2397
    %2515 = vmatpush1.msra.mxu0 %v2396
    %2516 = vmatprep.subr.mxu0 %v2401
    %2517 = vmatpush1.msra.mxu0 %v2400
    %2518 = vmatprep.subr.mxu0 %v2405
    %2519 = vmatpush1.msra.mxu0 %v2404
    %2520 = vmatprep.subr.mxu0 0.0
    %2521 = vmatpush1.msra.mxu0 0.0
    %2522 = vmatprep.subr.mxu0 0.0
    %2523 = vmatpush1.msra.mxu0 0.0
    %2524 = vmatprep.subr.mxu0 0.0
    %2525 = vmatpush1.msra.mxu0 0.0
    %2526 = vmatprep.subr.mxu0 0.0
    %2527 = vmatpush1.msra.mxu0 0.0
    %2528 = vmatprep.subr.mxu0 0.0
    %2529 = vmatpush1.msra.mxu0 0.0
    %2530 = vmatprep.subr.mxu0 0.0
    %2531 = vmatpush1.msra.mxu0 0.0
    %2532 = vmatprep.subr.mxu0 0.0
    %2533 = vmatpush1.msra.mxu0 0.0
    %2534 = vmatprep.subr.mxu0 0.0
    %2535 = vmatpush1.msra.mxu0 0.0
    %2536 = vmatprep.subr.mxu0 0.0
    %2537 = vmatpush1.msra.mxu0 0.0
    %2538 = vmatprep.subr.mxu0 0.0
    %2539 = vmatpush1.msra.mxu0 0.0
    %2540 = vmatprep.subr.mxu0 0.0
    %2541 = vmatpush1.msra.mxu0 0.0
    %2542 = vmatprep.subr.mxu0 0.0
    %2543 = vmatpush1.msra.mxu0 0.0
    %2544 = vmatprep.subr.mxu0 0.0
    %2545 = vmatpush1.msra.mxu0 0.0
    %2546 = vmatprep.subr.mxu0 0.0
    %2547 = vmatpush1.msra.mxu0 0.0
    %2548 = vmatprep.subr.mxu0 0.0
    %2549 = vmatpush1.msra.mxu0 0.0
    %2550 = vmatprep.subr.mxu0 0.0
    %2551 = vmatpush1.msra.mxu0 0.0
    %2552 = vmatprep.subr.mxu0 0.0
    %2553 = vmatpush1.msra.mxu0 0.0
    %2554 = vmatprep.subr.mxu0 0.0
    %2555 = vmatpush1.msra.mxu0 0.0
    %2556 = vmatprep.subr.mxu0 0.0
    %2557 = vmatpush1.msra.mxu0 0.0
    %2558 = vmatprep.subr.mxu0 0.0
    %2559 = vmatpush1.msra.mxu0 0.0
    %2560 = vmatprep.subr.mxu0 0.0
    %2561 = vmatpush1.msra.mxu0 0.0
    %2562 = vmatprep.subr.mxu0 0.0
    %2563 = vmatpush1.msra.mxu0 0.0
    %2564 = vmatprep.subr.mxu0 0.0
    %2565 = vmatpush1.msra.mxu0 0.0
    %2566 = vmatprep.subr.mxu0 0.0
    %2567 = vmatpush1.msra.mxu0 0.0
    %2568 = vmatprep.subr.mxu0 0.0
    %2569 = vmatpush1.msra.mxu0 0.0
    %2570 = vmatprep.subr.mxu0 0.0
    %2571 = vmatpush1.msra.mxu0 0.0
    %2572 = vmatprep.subr.mxu0 0.0
    %2573 = vmatpush1.msra.mxu0 0.0
    %2574 = vmatprep.subr.mxu0 0.0
    %2575 = vmatpush1.msra.mxu0 0.0
    %2576 = vmatprep.mubr.f32.mxu0 0.0
    %2577 = vmatmul.mubr.f32.gmra.mrb[0].mxu0 %v2412
    %v2578 = vpop.f32.mrb[0].mxu0
    %v2579 = vadd.f32 0.0, %v2578
    %v2580 = vpop.f32.mrb[0].mxu0
    %v2581 = vadd.f32 0.0, %v2580
    %2582 = vmatprep.mubr.f32.mxu0 0.0
    %2583 = vmatmul.mubr.f32.gmra.mrb[0].mxu0 %v2415
    %v2584 = vpop.f32.mrb[0].mxu0
    %v2585 = vadd.f32 0.0, %v2584
    %v2586 = vpop.f32.mrb[0].mxu0
    %v2587 = vadd.f32 0.0, %v2586
    %2588 = vmatprep.mubr.f32.mxu0 0.0
    %2589 = vmatmul.mubr.f32.gmra.mrb[0].mxu0 %v2418
    %v2590 = vpop.f32.mrb[0].mxu0
    %v2591 = vadd.f32 0.0, %v2590
    %v2592 = vpop.f32.mrb[0].mxu0
    %v2593 = vadd.f32 0.0, %v2592
    %2594 = vmatprep.mubr.f32.mxu0 0.0
    %2595 = vmatmul.mubr.f32.gmra.mrb[0].mxu0 %v2421
    %v2596 = vpop.f32.mrb[0].mxu0
    %v2597 = vadd.f32 0.0, %v2596
    %v2598 = vpop.f32.mrb[0].mxu0
    %v2599 = vadd.f32 0.0, %v2598
    %2600 = vdwg.mxu0
    %v2601 = vadd.f32 %v2308, %v2490
    %v2602 = vadd.f32 %v2309, %v2492
    %v2603 = vadd.f32 %v2310, %v2579
    %v2604 = vadd.f32 %v2311, %v2581
    %v2605 = vadd.f32 %v2312, %v2496
    %v2606 = vadd.f32 %v2313, %v2498
    %v2607 = vadd.f32 %v2314, %v2585
    %v2608 = vadd.f32 %v2315, %v2587
    %v2609 = vadd.f32 %v2316, %v2502
    %v2610 = vadd.f32 %v2317, %v2504
    %v2611 = vadd.f32 %v2318, %v2591
    %v2612 = vadd.f32 %v2319, %v2593
    %v2613 = vadd.f32 %v2320, %v2508
    %v2614 = vadd.f32 %v2321, %v2510
    %v2615 = vadd.f32 %v2322, %v2597
    %v2616 = vadd.f32 %v2323, %v2599
    %v2617 = vld [vmem:[%s3] sm:$0xff]
    %v2618 = vld [vmem:[%s3 + $0x8] sm:$0xff]
    %v2619 = vld [vmem:[%s3 + $0x10] sm:$0xff]
    %v2620 = vld [vmem:[%s3 + $0x18] sm:$0xff]
    %2622 = vset.pattern.permute.xlu0 0
    %2623 = vperm.xlu0 %2622, %v2617
    %v2624 = vpop.permute.xlu0 %2623
    %2627 = vset.pattern.permute.xlu0 0
    %2628 = vperm.xlu0 %2627, %v2618
    %v2629 = vpop.permute.xlu0 %2628
    %2632 = vset.pattern.permute.xlu0 0
    %2633 = vperm.xlu0 %2632, %v2619
    %v2634 = vpop.permute.xlu0 %2633
    %2637 = vset.pattern.permute.xlu0 0
    %2638 = vperm.xlu0 %2637, %v2620
    %v2639 = vpop.permute.xlu0 %2638
    %v2641 = vadd.f32 %v2601, %v2624
    %v2642 = vadd.f32 %v2602, %v2624
    %v2643 = vadd.f32 %v2603, %v2624
    %v2644 = vadd.f32 %v2604, %v2624
    %v2645 = vadd.f32 %v2605, %v2629
    %v2646 = vadd.f32 %v2606, %v2629
    %v2647 = vadd.f32 %v2607, %v2629
    %v2648 = vadd.f32 %v2608, %v2629
    %v2649 = vadd.f32 %v2609, %v2634
    %v2650 = vadd.f32 %v2610, %v2634
    %v2651 = vadd.f32 %v2611, %v2634
    %v2652 = vadd.f32 %v2612, %v2634
    %v2653 = vadd.f32 %v2613, %v2639
    %v2654 = vadd.f32 %v2614, %v2639
    %v2655 = vadd.f32 %v2615, %v2639
    %v2656 = vadd.f32 %v2616, %v2639
    %v2657 = vmax.f32 %v2641, 0.0
    %v2658 = vmax.f32 %v2642, 0.0
    %v2659 = vmax.f32 %v2643, 0.0
    %v2660 = vmax.f32 %v2644, 0.0
    %v2661 = vmax.f32 %v2645, 0.0
    %v2662 = vmax.f32 %v2646, 0.0
    %v2663 = vmax.f32 %v2647, 0.0
    %v2664 = vmax.f32 %v2648, 0.0
    %v2665 = vmax.f32 %v2649, 0.0
    %v2666 = vmax.f32 %v2650, 0.0
    %v2667 = vmax.f32 %v2651, 0.0
    %v2668 = vmax.f32 %v2652, 0.0
    %v2669 = vmax.f32 %v2653, 0.0
    %v2670 = vmax.f32 %v2654, 0.0
    %v2671 = vmax.f32 %v2655, 0.0
    %v2672 = vmax.f32 %v2656, 0.0
    %s2673 = scalar_lea.vmem [#allocation7], 128
    %v2674 = vld [vmem:[%s2673] sm:$0xff]
    %v2675 = vld [vmem:[%s2673 + $0x8] sm:$0xff]
    %v2676 = vld [vmem:[%s2673 + $0x10] sm:$0xff]
    %v2677 = vld [vmem:[%s2673 + $0x18] sm:$0xff]
    %2678 = vrot.lane.b32.xlu0 %v2657, 17
    %v2679 = vpop.permute.xlu0 %2678
    %2680 = vrot.lane.b32.xlu0 %v2661, 17
    %v2681 = vpop.permute.xlu0 %2680
    %2682 = vrot.lane.b32.xlu0 %v2665, 17
    %v2683 = vpop.permute.xlu0 %2682
    %2684 = vrot.lane.b32.xlu0 %v2669, 17
    %v2685 = vpop.permute.xlu0 %2684
    %2686 = vrot.lane.b32.xlu0 %v2658, 17
    %v2687 = vpop.permute.xlu0 %2686
    %2688 = vrot.lane.b32.xlu0 %v2662, 17
    %v2689 = vpop.permute.xlu0 %2688
    %2690 = vrot.lane.b32.xlu0 %v2666, 17
    %v2691 = vpop.permute.xlu0 %2690
    %2692 = vrot.lane.b32.xlu0 %v2670, 17
    %v2693 = vpop.permute.xlu0 %2692
    %2694 = vrot.lane.b32.xlu0 %v2659, 17
    %v2695 = vpop.permute.xlu0 %2694
    %2696 = vrot.lane.b32.xlu0 %v2663, 17
    %v2697 = vpop.permute.xlu0 %2696
    %2698 = vrot.lane.b32.xlu0 %v2667, 17
    %v2699 = vpop.permute.xlu0 %2698
    %2700 = vrot.lane.b32.xlu0 %v2671, 17
    %v2701 = vpop.permute.xlu0 %2700
    %2702 = vrot.lane.b32.xlu0 %v2660, 17
    %v2703 = vpop.permute.xlu0 %2702
    %2704 = vrot.lane.b32.xlu0 %v2664, 17
    %v2705 = vpop.permute.xlu0 %2704
    %2706 = vrot.lane.b32.xlu0 %v2668, 17
    %v2707 = vpop.permute.xlu0 %2706
    %2708 = vrot.lane.b32.xlu0 %v2672, 17
    %v2709 = vpop.permute.xlu0 %2708
    %v2710 = vsel %vm132, %v2695, %v2703
    %v2711 = vsel %vm132, %v2697, %v2705
    %v2712 = vsel %vm132, %v2699, %v2707
    %v2713 = vsel %vm132, %v2701, %v2709
    %v2714 = vsel %vm132, %v2687, %v2695
    %v2715 = vsel %vm132, %v2689, %v2697
    %v2716 = vsel %vm132, %v2691, %v2699
    %v2717 = vsel %vm132, %v2693, %v2701
    %v2718 = vsel %vm132, %v2679, %v2687
    %v2719 = vsel %vm132, %v2681, %v2689
    %v2720 = vsel %vm132, %v2683, %v2691
    %v2721 = vsel %vm132, %v2685, %v2693
    %v2722 = vsel %vm132, %v2703, %v2679
    %v2723 = vsel %vm132, %v2705, %v2681
    %v2724 = vsel %vm132, %v2707, %v2683
    %v2725 = vsel %vm132, %v2709, %v2685
    %v2726 = vmul.f32 %v2722, %v149
    %v2727 = vmul.f32 %v2718, %v150
    %v2728 = vmul.f32 %v2714, %v151
    %v2729 = vmul.f32 %v2710, %v152
    %v2730 = vmul.f32 %v2723, %v153
    %v2731 = vmul.f32 %v2719, %v154
    %v2732 = vmul.f32 %v2715, %v155
    %v2733 = vmul.f32 %v2711, %v156
    %v2734 = vmul.f32 %v2724, %v157
    %v2735 = vmul.f32 %v2720, %v158
    %v2736 = vmul.f32 %v2716, %v159
    %v2737 = vmul.f32 %v2712, %v160
    %v2738 = vmul.f32 %v2725, %v161
    %v2739 = vmul.f32 %v2721, %v162
    %v2740 = vmul.f32 %v2717, %v163
    %v2741 = vmul.f32 %v2713, %v164
    %v2742 = vld [vmem:[#allocation7] sm:$0xff]
    %v2743 = vld [vmem:[#allocation7 + $0x8] sm:$0xff]
    %v2744 = vld [vmem:[#allocation7 + $0x10] sm:$0xff]
    %v2745 = vld [vmem:[#allocation7 + $0x18] sm:$0xff]
    %v2747 = vsel %vm185, %v2742, 0
    %v2750 = vsel %vm185, %v2743, 0
    %v2753 = vsel %vm185, %v2744, 0
    %v2756 = vsel %vm185, %v2745, 0
    %2758 = vmatprep.subr.mxu0 %v2727
    %2759 = vmatpush1.msra.mxu0 %v2726
    %2760 = vmatprep.subr.mxu0 %v2731
    %2761 = vmatpush1.msra.mxu0 %v2730
    %2762 = vmatprep.subr.mxu0 %v2735
    %2763 = vmatpush1.msra.mxu0 %v2734
    %2764 = vmatprep.subr.mxu0 %v2739
    %2765 = vmatpush1.msra.mxu0 %v2738
    %2766 = vmatprep.subr.mxu0 0.0
    %2767 = vmatpush1.msra.mxu0 0.0
    %2768 = vmatprep.subr.mxu0 0.0
    %2769 = vmatpush1.msra.mxu0 0.0
    %2770 = vmatprep.subr.mxu0 0.0
    %2771 = vmatpush1.msra.mxu0 0.0
    %2772 = vmatprep.subr.mxu0 0.0
    %2773 = vmatpush1.msra.mxu0 0.0
    %2774 = vmatprep.subr.mxu0 0.0
    %2775 = vmatpush1.msra.mxu0 0.0
    %2776 = vmatprep.subr.mxu0 0.0
    %2777 = vmatpush1.msra.mxu0 0.0
    %2778 = vmatprep.subr.mxu0 0.0
    %2779 = vmatpush1.msra.mxu0 0.0
    %2780 = vmatprep.subr.mxu0 0.0
    %2781 = vmatpush1.msra.mxu0 0.0
    %2782 = vmatprep.subr.mxu0 0.0
    %2783 = vmatpush1.msra.mxu0 0.0
    %2784 = vmatprep.subr.mxu0 0.0
    %2785 = vmatpush1.msra.mxu0 0.0
    %2786 = vmatprep.subr.mxu0 0.0
    %2787 = vmatpush1.msra.mxu0 0.0
    %2788 = vmatprep.subr.mxu0 0.0
    %2789 = vmatpush1.msra.mxu0 0.0
    %2790 = vmatprep.subr.mxu0 0.0
    %2791 = vmatpush1.msra.mxu0 0.0
    %2792 = vmatprep.subr.mxu0 0.0
    %2793 = vmatpush1.msra.mxu0 0.0
    %2794 = vmatprep.subr.mxu0 0.0
    %2795 = vmatpush1.msra.mxu0 0.0
    %2796 = vmatprep.subr.mxu0 0.0
    %2797 = vmatpush1.msra.mxu0 0.0
    %2798 = vmatprep.subr.mxu0 0.0
    %2799 = vmatpush1.msra.mxu0 0.0
    %2800 = vmatprep.subr.mxu0 0.0
    %2801 = vmatpush1.msra.mxu0 0.0
    %2802 = vmatprep.subr.mxu0 0.0
    %2803 = vmatpush1.msra.mxu0 0.0
    %2804 = vmatprep.subr.mxu0 0.0
    %2805 = vmatpush1.msra.mxu0 0.0
    %2806 = vmatprep.subr.mxu0 0.0
    %2807 = vmatpush1.msra.mxu0 0.0
    %2808 = vmatprep.subr.mxu0 0.0
    %2809 = vmatpush1.msra.mxu0 0.0
    %2810 = vmatprep.subr.mxu0 0.0
    %2811 = vmatpush1.msra.mxu0 0.0
    %2812 = vmatprep.subr.mxu0 0.0
    %2813 = vmatpush1.msra.mxu0 0.0
    %2814 = vmatprep.subr.mxu0 0.0
    %2815 = vmatpush1.msra.mxu0 0.0
    %2816 = vmatprep.subr.mxu0 0.0
    %2817 = vmatpush1.msra.mxu0 0.0
    %2818 = vmatprep.subr.mxu0 0.0
    %2819 = vmatpush1.msra.mxu0 0.0
    %2820 = vmatprep.subr.mxu0 0.0
    %2821 = vmatpush1.msra.mxu0 0.0
    %2822 = vmatprep.mubr.f32.mxu0 0.0
    %2823 = vmatmul.mubr.f32.gmra.mrb[0].mxu0 %v2747
    %v2824 = vpop.f32.mrb[0].mxu0
    %v2825 = vadd.f32 0.0, %v2824
    %v2826 = vpop.f32.mrb[0].mxu0
    %v2827 = vadd.f32 0.0, %v2826
    %2828 = vmatprep.mubr.f32.mxu0 0.0
    %2829 = vmatmul.mubr.f32.gmra.mrb[0].mxu0 %v2750
    %v2830 = vpop.f32.mrb[0].mxu0
    %v2831 = vadd.f32 0.0, %v2830
    %v2832 = vpop.f32.mrb[0].mxu0
    %v2833 = vadd.f32 0.0, %v2832
    %2834 = vmatprep.mubr.f32.mxu0 0.0
    %2835 = vmatmul.mubr.f32.gmra.mrb[0].mxu0 %v2753
    %v2836 = vpop.f32.mrb[0].mxu0
    %v2837 = vadd.f32 0.0, %v2836
    %v2838 = vpop.f32.mrb[0].mxu0
    %v2839 = vadd.f32 0.0, %v2838
    %2840 = vmatprep.mubr.f32.mxu0 0.0
    %2841 = vmatmul.mubr.f32.gmra.mrb[0].mxu0 %v2756
    %v2842 = vpop.f32.mrb[0].mxu0
    %v2843 = vadd.f32 0.0, %v2842
    %v2844 = vpop.f32.mrb[0].mxu0
    %v2845 = vadd.f32 0.0, %v2844
    %2846 = vdwg.mxu0
    %2847 = vmatprep.subr.mxu0 %v2729
    %2848 = vmatpush1.msra.mxu0 %v2728
    %2849 = vmatprep.subr.mxu0 %v2733
    %2850 = vmatpush1.msra.mxu0 %v2732
    %2851 = vmatprep.subr.mxu0 %v2737
    %2852 = vmatpush1.msra.mxu0 %v2736
    %2853 = vmatprep.subr.mxu0 %v2741
    %2854 = vmatpush1.msra.mxu0 %v2740
    %2855 = vmatprep.subr.mxu0 0.0
    %2856 = vmatpush1.msra.mxu0 0.0
    %2857 = vmatprep.subr.mxu0 0.0
    %2858 = vmatpush1.msra.mxu0 0.0
    %2859 = vmatprep.subr.mxu0 0.0
    %2860 = vmatpush1.msra.mxu0 0.0
    %2861 = vmatprep.subr.mxu0 0.0
    %2862 = vmatpush1.msra.mxu0 0.0
    %2863 = vmatprep.subr.mxu0 0.0
    %2864 = vmatpush1.msra.mxu0 0.0
    %2865 = vmatprep.subr.mxu0 0.0
    %2866 = vmatpush1.msra.mxu0 0.0
    %2867 = vmatprep.subr.mxu0 0.0
    %2868 = vmatpush1.msra.mxu0 0.0
    %2869 = vmatprep.subr.mxu0 0.0
    %2870 = vmatpush1.msra.mxu0 0.0
    %2871 = vmatprep.subr.mxu0 0.0
    %2872 = vmatpush1.msra.mxu0 0.0
    %2873 = vmatprep.subr.mxu0 0.0
    %2874 = vmatpush1.msra.mxu0 0.0
    %2875 = vmatprep.subr.mxu0 0.0
    %2876 = vmatpush1.msra.mxu0 0.0
    %2877 = vmatprep.subr.mxu0 0.0
    %2878 = vmatpush1.msra.mxu0 0.0
    %2879 = vmatprep.subr.mxu0 0.0
    %2880 = vmatpush1.msra.mxu0 0.0
    %2881 = vmatprep.subr.mxu0 0.0
    %2882 = vmatpush1.msra.mxu0 0.0
    %2883 = vmatprep.subr.mxu0 0.0
    %2884 = vmatpush1.msra.mxu0 0.0
    %2885 = vmatprep.subr.mxu0 0.0
    %2886 = vmatpush1.msra.mxu0 0.0
    %2887 = vmatprep.subr.mxu0 0.0
    %2888 = vmatpush1.msra.mxu0 0.0
    %2889 = vmatprep.subr.mxu0 0.0
    %2890 = vmatpush1.msra.mxu0 0.0
    %2891 = vmatprep.subr.mxu0 0.0
    %2892 = vmatpush1.msra.mxu0 0.0
    %2893 = vmatprep.subr.mxu0 0.0
    %2894 = vmatpush1.msra.mxu0 0.0
    %2895 = vmatprep.subr.mxu0 0.0
    %2896 = vmatpush1.msra.mxu0 0.0
    %2897 = vmatprep.subr.mxu0 0.0
    %2898 = vmatpush1.msra.mxu0 0.0
    %2899 = vmatprep.subr.mxu0 0.0
    %2900 = vmatpush1.msra.mxu0 0.0
    %2901 = vmatprep.subr.mxu0 0.0
    %2902 = vmatpush1.msra.mxu0 0.0
    %2903 = vmatprep.subr.mxu0 0.0
    %2904 = vmatpush1.msra.mxu0 0.0
    %2905 = vmatprep.subr.mxu0 0.0
    %2906 = vmatpush1.msra.mxu0 0.0
    %2907 = vmatprep.subr.mxu0 0.0
    %2908 = vmatpush1.msra.mxu0 0.0
    %2909 = vmatprep.subr.mxu0 0.0
    %2910 = vmatpush1.msra.mxu0 0.0
    %2911 = vmatprep.mubr.f32.mxu0 0.0
    %2912 = vmatmul.mubr.f32.gmra.mrb[0].mxu0 %v2747
    %v2913 = vpop.f32.mrb[0].mxu0
    %v2914 = vadd.f32 0.0, %v2913
    %v2915 = vpop.f32.mrb[0].mxu0
    %v2916 = vadd.f32 0.0, %v2915
    %2917 = vmatprep.mubr.f32.mxu0 0.0
    %2918 = vmatmul.mubr.f32.gmra.mrb[0].mxu0 %v2750
    %v2919 = vpop.f32.mrb[0].mxu0
    %v2920 = vadd.f32 0.0, %v2919
    %v2921 = vpop.f32.mrb[0].mxu0
    %v2922 = vadd.f32 0.0, %v2921
    %2923 = vmatprep.mubr.f32.mxu0 0.0
    %2924 = vmatmul.mubr.f32.gmra.mrb[0].mxu0 %v2753
    %v2925 = vpop.f32.mrb[0].mxu0
    %v2926 = vadd.f32 0.0, %v2925
    %v2927 = vpop.f32.mrb[0].mxu0
    %v2928 = vadd.f32 0.0, %v2927
    %2929 = vmatprep.mubr.f32.mxu0 0.0
    %2930 = vmatmul.mubr.f32.gmra.mrb[0].mxu0 %v2756
    %v2931 = vpop.f32.mrb[0].mxu0
    %v2932 = vadd.f32 0.0, %v2931
    %v2933 = vpop.f32.mrb[0].mxu0
    %v2934 = vadd.f32 0.0, %v2933
    %2935 = vdwg.mxu0
    %v2937 = vsel %vm185, %v2674, 0
    %v2940 = vsel %vm185, %v2675, 0
    %v2943 = vsel %vm185, %v2676, 0
    %v2946 = vsel %vm185, %v2677, 0
    %2948 = vmatprep.subr.mxu0 %v2658
    %2949 = vmatpush1.msra.mxu0 %v2657
    %2950 = vmatprep.subr.mxu0 %v2662
    %2951 = vmatpush1.msra.mxu0 %v2661
    %2952 = vmatprep.subr.mxu0 %v2666
    %2953 = vmatpush1.msra.mxu0 %v2665
    %2954 = vmatprep.subr.mxu0 %v2670
    %2955 = vmatpush1.msra.mxu0 %v2669
    %2956 = vmatprep.subr.mxu0 0.0
    %2957 = vmatpush1.msra.mxu0 0.0
    %2958 = vmatprep.subr.mxu0 0.0
    %2959 = vmatpush1.msra.mxu0 0.0
    %2960 = vmatprep.subr.mxu0 0.0
    %2961 = vmatpush1.msra.mxu0 0.0
    %2962 = vmatprep.subr.mxu0 0.0
    %2963 = vmatpush1.msra.mxu0 0.0
    %2964 = vmatprep.subr.mxu0 0.0
    %2965 = vmatpush1.msra.mxu0 0.0
    %2966 = vmatprep.subr.mxu0 0.0
    %2967 = vmatpush1.msra.mxu0 0.0
    %2968 = vmatprep.subr.mxu0 0.0
    %2969 = vmatpush1.msra.mxu0 0.0
    %2970 = vmatprep.subr.mxu0 0.0
    %2971 = vmatpush1.msra.mxu0 0.0
    %2972 = vmatprep.subr.mxu0 0.0
    %2973 = vmatpush1.msra.mxu0 0.0
    %2974 = vmatprep.subr.mxu0 0.0
    %2975 = vmatpush1.msra.mxu0 0.0
    %2976 = vmatprep.subr.mxu0 0.0
    %2977 = vmatpush1.msra.mxu0 0.0
    %2978 = vmatprep.subr.mxu0 0.0
    %2979 = vmatpush1.msra.mxu0 0.0
    %2980 = vmatprep.subr.mxu0 0.0
    %2981 = vmatpush1.msra.mxu0 0.0
    %2982 = vmatprep.subr.mxu0 0.0
    %2983 = vmatpush1.msra.mxu0 0.0
    %2984 = vmatprep.subr.mxu0 0.0
    %2985 = vmatpush1.msra.mxu0 0.0
    %2986 = vmatprep.subr.mxu0 0.0
    %2987 = vmatpush1.msra.mxu0 0.0
    %2988 = vmatprep.subr.mxu0 0.0
    %2989 = vmatpush1.msra.mxu0 0.0
    %2990 = vmatprep.subr.mxu0 0.0
    %2991 = vmatpush1.msra.mxu0 0.0
    %2992 = vmatprep.subr.mxu0 0.0
    %2993 = vmatpush1.msra.mxu0 0.0
    %2994 = vmatprep.subr.mxu0 0.0
    %2995 = vmatpush1.msra.mxu0 0.0
    %2996 = vmatprep.subr.mxu0 0.0
    %2997 = vmatpush1.msra.mxu0 0.0
    %2998 = vmatprep.subr.mxu0 0.0
    %2999 = vmatpush1.msra.mxu0 0.0
    %3000 = vmatprep.subr.mxu0 0.0
    %3001 = vmatpush1.msra.mxu0 0.0
    %3002 = vmatprep.subr.mxu0 0.0
    %3003 = vmatpush1.msra.mxu0 0.0
    %3004 = vmatprep.subr.mxu0 0.0
    %3005 = vmatpush1.msra.mxu0 0.0
    %3006 = vmatprep.subr.mxu0 0.0
    %3007 = vmatpush1.msra.mxu0 0.0
    %3008 = vmatprep.subr.mxu0 0.0
    %3009 = vmatpush1.msra.mxu0 0.0
    %3010 = vmatprep.subr.mxu0 0.0
    %3011 = vmatpush1.msra.mxu0 0.0
    %3012 = vmatprep.mubr.f32.mxu0 0.0
    %3013 = vmatmul.mubr.f32.gmra.mrb[0].mxu0 %v2937
    %v3014 = vpop.f32.mrb[0].mxu0
    %v3015 = vadd.f32 %v2825, %v3014
    %v3016 = vpop.f32.mrb[0].mxu0
    %v3017 = vadd.f32 %v2827, %v3016
    %3018 = vmatprep.mubr.f32.mxu0 0.0
    %3019 = vmatmul.mubr.f32.gmra.mrb[0].mxu0 %v2940
    %v3020 = vpop.f32.mrb[0].mxu0
    %v3021 = vadd.f32 %v2831, %v3020
    %v3022 = vpop.f32.mrb[0].mxu0
    %v3023 = vadd.f32 %v2833, %v3022
    %3024 = vmatprep.mubr.f32.mxu0 0.0
    %3025 = vmatmul.mubr.f32.gmra.mrb[0].mxu0 %v2943
    %v3026 = vpop.f32.mrb[0].mxu0
    %v3027 = vadd.f32 %v2837, %v3026
    %v3028 = vpop.f32.mrb[0].mxu0
    %v3029 = vadd.f32 %v2839, %v3028
    %3030 = vmatprep.mubr.f32.mxu0 0.0
    %3031 = vmatmul.mubr.f32.gmra.mrb[0].mxu0 %v2946
    %v3032 = vpop.f32.mrb[0].mxu0
    %v3033 = vadd.f32 %v2843, %v3032
    %v3034 = vpop.f32.mrb[0].mxu0
    %v3035 = vadd.f32 %v2845, %v3034
    %3036 = vdwg.mxu0
    %3037 = vmatprep.subr.mxu0 %v2660
    %3038 = vmatpush1.msra.mxu0 %v2659
    %3039 = vmatprep.subr.mxu0 %v2664
    %3040 = vmatpush1.msra.mxu0 %v2663
    %3041 = vmatprep.subr.mxu0 %v2668
    %3042 = vmatpush1.msra.mxu0 %v2667
    %3043 = vmatprep.subr.mxu0 %v2672
    %3044 = vmatpush1.msra.mxu0 %v2671
    %3045 = vmatprep.subr.mxu0 0.0
    %3046 = vmatpush1.msra.mxu0 0.0
    %3047 = vmatprep.subr.mxu0 0.0
    %3048 = vmatpush1.msra.mxu0 0.0
    %3049 = vmatprep.subr.mxu0 0.0
    %3050 = vmatpush1.msra.mxu0 0.0
    %3051 = vmatprep.subr.mxu0 0.0
    %3052 = vmatpush1.msra.mxu0 0.0
    %3053 = vmatprep.subr.mxu0 0.0
    %3054 = vmatpush1.msra.mxu0 0.0
    %3055 = vmatprep.subr.mxu0 0.0
    %3056 = vmatpush1.msra.mxu0 0.0
    %3057 = vmatprep.subr.mxu0 0.0
    %3058 = vmatpush1.msra.mxu0 0.0
    %3059 = vmatprep.subr.mxu0 0.0
    %3060 = vmatpush1.msra.mxu0 0.0
    %3061 = vmatprep.subr.mxu0 0.0
    %3062 = vmatpush1.msra.mxu0 0.0
    %3063 = vmatprep.subr.mxu0 0.0
    %3064 = vmatpush1.msra.mxu0 0.0
    %3065 = vmatprep.subr.mxu0 0.0
    %3066 = vmatpush1.msra.mxu0 0.0
    %3067 = vmatprep.subr.mxu0 0.0
    %3068 = vmatpush1.msra.mxu0 0.0
    %3069 = vmatprep.subr.mxu0 0.0
    %3070 = vmatpush1.msra.mxu0 0.0
    %3071 = vmatprep.subr.mxu0 0.0
    %3072 = vmatpush1.msra.mxu0 0.0
    %3073 = vmatprep.subr.mxu0 0.0
    %3074 = vmatpush1.msra.mxu0 0.0
    %3075 = vmatprep.subr.mxu0 0.0
    %3076 = vmatpush1.msra.mxu0 0.0
    %3077 = vmatprep.subr.mxu0 0.0
    %3078 = vmatpush1.msra.mxu0 0.0
    %3079 = vmatprep.subr.mxu0 0.0
    %3080 = vmatpush1.msra.mxu0 0.0
    %3081 = vmatprep.subr.mxu0 0.0
    %3082 = vmatpush1.msra.mxu0 0.0
    %3083 = vmatprep.subr.mxu0 0.0
    %3084 = vmatpush1.msra.mxu0 0.0
    %3085 = vmatprep.subr.mxu0 0.0
    %3086 = vmatpush1.msra.mxu0 0.0
    %3087 = vmatprep.subr.mxu0 0.0
    %3088 = vmatpush1.msra.mxu0 0.0
    %3089 = vmatprep.subr.mxu0 0.0
    %3090 = vmatpush1.msra.mxu0 0.0
    %3091 = vmatprep.subr.mxu0 0.0
    %3092 = vmatpush1.msra.mxu0 0.0
    %3093 = vmatprep.subr.mxu0 0.0
    %3094 = vmatpush1.msra.mxu0 0.0
    %3095 = vmatprep.subr.mxu0 0.0
    %3096 = vmatpush1.msra.mxu0 0.0
    %3097 = vmatprep.subr.mxu0 0.0
    %3098 = vmatpush1.msra.mxu0 0.0
    %3099 = vmatprep.subr.mxu0 0.0
    %3100 = vmatpush1.msra.mxu0 0.0
    %3101 = vmatprep.mubr.f32.mxu0 0.0
    %3102 = vmatmul.mubr.f32.gmra.mrb[0].mxu0 %v2937
    %v3103 = vpop.f32.mrb[0].mxu0
    %v3104 = vadd.f32 %v2914, %v3103
    %v3105 = vpop.f32.mrb[0].mxu0
    %v3106 = vadd.f32 %v2916, %v3105
    %3107 = vmatprep.mubr.f32.mxu0 0.0
    %3108 = vmatmul.mubr.f32.gmra.mrb[0].mxu0 %v2940
    %v3109 = vpop.f32.mrb[0].mxu0
    %v3110 = vadd.f32 %v2920, %v3109
    %v3111 = vpop.f32.mrb[0].mxu0
    %v3112 = vadd.f32 %v2922, %v3111
    %3113 = vmatprep.mubr.f32.mxu0 0.0
    %3114 = vmatmul.mubr.f32.gmra.mrb[0].mxu0 %v2943
    %v3115 = vpop.f32.mrb[0].mxu0
    %v3116 = vadd.f32 %v2926, %v3115
    %v3117 = vpop.f32.mrb[0].mxu0
    %v3118 = vadd.f32 %v2928, %v3117
    %3119 = vmatprep.mubr.f32.mxu0 0.0
    %3120 = vmatmul.mubr.f32.gmra.mrb[0].mxu0 %v2946
    %v3121 = vpop.f32.mrb[0].mxu0
    %v3122 = vadd.f32 %v2932, %v3121
    %v3123 = vpop.f32.mrb[0].mxu0
    %v3124 = vadd.f32 %v2934, %v3123
    %3125 = vdwg.mxu0
    %3126 = vrot.lane.b32.xlu0 %v2657, 16
    %v3127 = vpop.permute.xlu0 %3126
    %3128 = vrot.lane.b32.xlu0 %v2661, 16
    %v3129 = vpop.permute.xlu0 %3128
    %3130 = vrot.lane.b32.xlu0 %v2665, 16
    %v3131 = vpop.permute.xlu0 %3130
    %3132 = vrot.lane.b32.xlu0 %v2669, 16
    %v3133 = vpop.permute.xlu0 %3132
    %3134 = vrot.lane.b32.xlu0 %v2658, 16
    %v3135 = vpop.permute.xlu0 %3134
    %3136 = vrot.lane.b32.xlu0 %v2662, 16
    %v3137 = vpop.permute.xlu0 %3136
    %3138 = vrot.lane.b32.xlu0 %v2666, 16
    %v3139 = vpop.permute.xlu0 %3138
    %3140 = vrot.lane.b32.xlu0 %v2670, 16
    %v3141 = vpop.permute.xlu0 %3140
    %3142 = vrot.lane.b32.xlu0 %v2659, 16
    %v3143 = vpop.permute.xlu0 %3142
    %3144 = vrot.lane.b32.xlu0 %v2663, 16
    %v3145 = vpop.permute.xlu0 %3144
    %3146 = vrot.lane.b32.xlu0 %v2667, 16
    %v3147 = vpop.permute.xlu0 %3146
    %3148 = vrot.lane.b32.xlu0 %v2671, 16
    %v3149 = vpop.permute.xlu0 %3148
    %3150 = vrot.lane.b32.xlu0 %v2660, 16
    %v3151 = vpop.permute.xlu0 %3150
    %3152 = vrot.lane.b32.xlu0 %v2664, 16
    %v3153 = vpop.permute.xlu0 %3152
    %3154 = vrot.lane.b32.xlu0 %v2668, 16
    %v3155 = vpop.permute.xlu0 %3154
    %3156 = vrot.lane.b32.xlu0 %v2672, 16
    %v3157 = vpop.permute.xlu0 %3156
    %v3158 = vsel %vm598, %v3143, %v3151
    %v3159 = vsel %vm598, %v3145, %v3153
    %v3160 = vsel %vm598, %v3147, %v3155
    %v3161 = vsel %vm598, %v3149, %v3157
    %v3162 = vsel %vm598, %v3135, %v3143
    %v3163 = vsel %vm598, %v3137, %v3145
    %v3164 = vsel %vm598, %v3139, %v3147
    %v3165 = vsel %vm598, %v3141, %v3149
    %v3166 = vsel %vm598, %v3127, %v3135
    %v3167 = vsel %vm598, %v3129, %v3137
    %v3168 = vsel %vm598, %v3131, %v3139
    %v3169 = vsel %vm598, %v3133, %v3141
    %v3170 = vsel %vm598, %v3151, %v3127
    %v3171 = vsel %vm598, %v3153, %v3129
    %v3172 = vsel %vm598, %v3155, %v3131
    %v3173 = vsel %vm598, %v3157, %v3133
    %v3174 = vmul.f32 %v3170, %v616
    %v3175 = vmul.f32 %v3166, %v617
    %v3176 = vmul.f32 %v3162, %v618
    %v3177 = vmul.f32 %v3158, %v619
    %v3178 = vmul.f32 %v3171, %v620
    %v3179 = vmul.f32 %v3167, %v621
    %v3180 = vmul.f32 %v3163, %v622
    %v3181 = vmul.f32 %v3159, %v623
    %v3182 = vmul.f32 %v3172, %v624
    %v3183 = vmul.f32 %v3168, %v625
    %v3184 = vmul.f32 %v3164, %v626
    %v3185 = vmul.f32 %v3160, %v627
    %v3186 = vmul.f32 %v3173, %v628
    %v3187 = vmul.f32 %v3169, %v629
    %v3188 = vmul.f32 %v3165, %v630
    %v3189 = vmul.f32 %v3161, %v631
    %s3190 = scalar_lea.vmem [#allocation7], 32
    %v3191 = vld [vmem:[%s3190] sm:$0xff]
    %v3192 = vld [vmem:[%s3190 + $0x8] sm:$0xff]
    %v3193 = vld [vmem:[%s3190 + $0x10] sm:$0xff]
    %v3194 = vld [vmem:[%s3190 + $0x18] sm:$0xff]
    %v3196 = vsel %vm185, %v3191, 0
    %v3199 = vsel %vm185, %v3192, 0
    %v3202 = vsel %vm185, %v3193, 0
    %v3205 = vsel %vm185, %v3194, 0
    %3207 = vmatprep.subr.mxu0 %v3175
    %3208 = vmatpush1.msra.mxu0 %v3174
    %3209 = vmatprep.subr.mxu0 %v3179
    %3210 = vmatpush1.msra.mxu0 %v3178
    %3211 = vmatprep.subr.mxu0 %v3183
    %3212 = vmatpush1.msra.mxu0 %v3182
    %3213 = vmatprep.subr.mxu0 %v3187
    %3214 = vmatpush1.msra.mxu0 %v3186
    %3215 = vmatprep.subr.mxu0 0.0
    %3216 = vmatpush1.msra.mxu0 0.0
    %3217 = vmatprep.subr.mxu0 0.0
    %3218 = vmatpush1.msra.mxu0 0.0
    %3219 = vmatprep.subr.mxu0 0.0
    %3220 = vmatpush1.msra.mxu0 0.0
    %3221 = vmatprep.subr.mxu0 0.0
    %3222 = vmatpush1.msra.mxu0 0.0
    %3223 = vmatprep.subr.mxu0 0.0
    %3224 = vmatpush1.msra.mxu0 0.0
    %3225 = vmatprep.subr.mxu0 0.0
    %3226 = vmatpush1.msra.mxu0 0.0
    %3227 = vmatprep.subr.mxu0 0.0
    %3228 = vmatpush1.msra.mxu0 0.0
    %3229 = vmatprep.subr.mxu0 0.0
    %3230 = vmatpush1.msra.mxu0 0.0
    %3231 = vmatprep.subr.mxu0 0.0
    %3232 = vmatpush1.msra.mxu0 0.0
    %3233 = vmatprep.subr.mxu0 0.0
    %3234 = vmatpush1.msra.mxu0 0.0
    %3235 = vmatprep.subr.mxu0 0.0
    %3236 = vmatpush1.msra.mxu0 0.0
    %3237 = vmatprep.subr.mxu0 0.0
    %3238 = vmatpush1.msra.mxu0 0.0
    %3239 = vmatprep.subr.mxu0 0.0
    %3240 = vmatpush1.msra.mxu0 0.0
    %3241 = vmatprep.subr.mxu0 0.0
    %3242 = vmatpush1.msra.mxu0 0.0
    %3243 = vmatprep.subr.mxu0 0.0
    %3244 = vmatpush1.msra.mxu0 0.0
    %3245 = vmatprep.subr.mxu0 0.0
    %3246 = vmatpush1.msra.mxu0 0.0
    %3247 = vmatprep.subr.mxu0 0.0
    %3248 = vmatpush1.msra.mxu0 0.0
    %3249 = vmatprep.subr.mxu0 0.0
    %3250 = vmatpush1.msra.mxu0 0.0
    %3251 = vmatprep.subr.mxu0 0.0
    %3252 = vmatpush1.msra.mxu0 0.0
    %3253 = vmatprep.subr.mxu0 0.0
    %3254 = vmatpush1.msra.mxu0 0.0
    %3255 = vmatprep.subr.mxu0 0.0
    %3256 = vmatpush1.msra.mxu0 0.0
    %3257 = vmatprep.subr.mxu0 0.0
    %3258 = vmatpush1.msra.mxu0 0.0
    %3259 = vmatprep.subr.mxu0 0.0
    %3260 = vmatpush1.msra.mxu0 0.0
    %3261 = vmatprep.subr.mxu0 0.0
    %3262 = vmatpush1.msra.mxu0 0.0
    %3263 = vmatprep.subr.mxu0 0.0
    %3264 = vmatpush1.msra.mxu0 0.0
    %3265 = vmatprep.subr.mxu0 0.0
    %3266 = vmatpush1.msra.mxu0 0.0
    %3267 = vmatprep.subr.mxu0 0.0
    %3268 = vmatpush1.msra.mxu0 0.0
    %3269 = vmatprep.subr.mxu0 0.0
    %3270 = vmatpush1.msra.mxu0 0.0
    %3271 = vmatprep.mubr.f32.mxu0 0.0
    %3272 = vmatmul.mubr.f32.gmra.mrb[0].mxu0 %v3196
    %v3273 = vpop.f32.mrb[0].mxu0
    %v3274 = vadd.f32 0.0, %v3273
    %v3275 = vpop.f32.mrb[0].mxu0
    %v3276 = vadd.f32 0.0, %v3275
    %3277 = vmatprep.mubr.f32.mxu0 0.0
    %3278 = vmatmul.mubr.f32.gmra.mrb[0].mxu0 %v3199
    %v3279 = vpop.f32.mrb[0].mxu0
    %v3280 = vadd.f32 0.0, %v3279
    %v3281 = vpop.f32.mrb[0].mxu0
    %v3282 = vadd.f32 0.0, %v3281
    %3283 = vmatprep.mubr.f32.mxu0 0.0
    %3284 = vmatmul.mubr.f32.gmra.mrb[0].mxu0 %v3202
    %v3285 = vpop.f32.mrb[0].mxu0
    %v3286 = vadd.f32 0.0, %v3285
    %v3287 = vpop.f32.mrb[0].mxu0
    %v3288 = vadd.f32 0.0, %v3287
    %3289 = vmatprep.mubr.f32.mxu0 0.0
    %3290 = vmatmul.mubr.f32.gmra.mrb[0].mxu0 %v3205
    %v3291 = vpop.f32.mrb[0].mxu0
    %v3292 = vadd.f32 0.0, %v3291
    %v3293 = vpop.f32.mrb[0].mxu0
    %v3294 = vadd.f32 0.0, %v3293
    %3295 = vdwg.mxu0
    %3296 = vmatprep.subr.mxu0 %v3177
    %3297 = vmatpush1.msra.mxu0 %v3176
    %3298 = vmatprep.subr.mxu0 %v3181
    %3299 = vmatpush1.msra.mxu0 %v3180
    %3300 = vmatprep.subr.mxu0 %v3185
    %3301 = vmatpush1.msra.mxu0 %v3184
    %3302 = vmatprep.subr.mxu0 %v3189
    %3303 = vmatpush1.msra.mxu0 %v3188
    %3304 = vmatprep.subr.mxu0 0.0
    %3305 = vmatpush1.msra.mxu0 0.0
    %3306 = vmatprep.subr.mxu0 0.0
    %3307 = vmatpush1.msra.mxu0 0.0
    %3308 = vmatprep.subr.mxu0 0.0
    %3309 = vmatpush1.msra.mxu0 0.0
    %3310 = vmatprep.subr.mxu0 0.0
    %3311 = vmatpush1.msra.mxu0 0.0
    %3312 = vmatprep.subr.mxu0 0.0
    %3313 = vmatpush1.msra.mxu0 0.0
    %3314 = vmatprep.subr.mxu0 0.0
    %3315 = vmatpush1.msra.mxu0 0.0
    %3316 = vmatprep.subr.mxu0 0.0
    %3317 = vmatpush1.msra.mxu0 0.0
    %3318 = vmatprep.subr.mxu0 0.0
    %3319 = vmatpush1.msra.mxu0 0.0
    %3320 = vmatprep.subr.mxu0 0.0
    %3321 = vmatpush1.msra.mxu0 0.0
    %3322 = vmatprep.subr.mxu0 0.0
    %3323 = vmatpush1.msra.mxu0 0.0
    %3324 = vmatprep.subr.mxu0 0.0
    %3325 = vmatpush1.msra.mxu0 0.0
    %3326 = vmatprep.subr.mxu0 0.0
    %3327 = vmatpush1.msra.mxu0 0.0
    %3328 = vmatprep.subr.mxu0 0.0
    %3329 = vmatpush1.msra.mxu0 0.0
    %3330 = vmatprep.subr.mxu0 0.0
    %3331 = vmatpush1.msra.mxu0 0.0
    %3332 = vmatprep.subr.mxu0 0.0
    %3333 = vmatpush1.msra.mxu0 0.0
    %3334 = vmatprep.subr.mxu0 0.0
    %3335 = vmatpush1.msra.mxu0 0.0
    %3336 = vmatprep.subr.mxu0 0.0
    %3337 = vmatpush1.msra.mxu0 0.0
    %3338 = vmatprep.subr.mxu0 0.0
    %3339 = vmatpush1.msra.mxu0 0.0
    %3340 = vmatprep.subr.mxu0 0.0
    %3341 = vmatpush1.msra.mxu0 0.0
    %3342 = vmatprep.subr.mxu0 0.0
    %3343 = vmatpush1.msra.mxu0 0.0
    %3344 = vmatprep.subr.mxu0 0.0
    %3345 = vmatpush1.msra.mxu0 0.0
    %3346 = vmatprep.subr.mxu0 0.0
    %3347 = vmatpush1.msra.mxu0 0.0
    %3348 = vmatprep.subr.mxu0 0.0
    %3349 = vmatpush1.msra.mxu0 0.0
    %3350 = vmatprep.subr.mxu0 0.0
    %3351 = vmatpush1.msra.mxu0 0.0
    %3352 = vmatprep.subr.mxu0 0.0
    %3353 = vmatpush1.msra.mxu0 0.0
    %3354 = vmatprep.subr.mxu0 0.0
    %3355 = vmatpush1.msra.mxu0 0.0
    %3356 = vmatprep.subr.mxu0 0.0
    %3357 = vmatpush1.msra.mxu0 0.0
    %3358 = vmatprep.subr.mxu0 0.0
    %3359 = vmatpush1.msra.mxu0 0.0
    %3360 = vmatprep.mubr.f32.mxu0 0.0
    %3361 = vmatmul.mubr.f32.gmra.mrb[0].mxu0 %v3196
    %v3362 = vpop.f32.mrb[0].mxu0
    %v3363 = vadd.f32 0.0, %v3362
    %v3364 = vpop.f32.mrb[0].mxu0
    %v3365 = vadd.f32 0.0, %v3364
    %3366 = vmatprep.mubr.f32.mxu0 0.0
    %3367 = vmatmul.mubr.f32.gmra.mrb[0].mxu0 %v3199
    %v3368 = vpop.f32.mrb[0].mxu0
    %v3369 = vadd.f32 0.0, %v3368
    %v3370 = vpop.f32.mrb[0].mxu0
    %v3371 = vadd.f32 0.0, %v3370
    %3372 = vmatprep.mubr.f32.mxu0 0.0
    %3373 = vmatmul.mubr.f32.gmra.mrb[0].mxu0 %v3202
    %v3374 = vpop.f32.mrb[0].mxu0
    %v3375 = vadd.f32 0.0, %v3374
    %v3376 = vpop.f32.mrb[0].mxu0
    %v3377 = vadd.f32 0.0, %v3376
    %3378 = vmatprep.mubr.f32.mxu0 0.0
    %3379 = vmatmul.mubr.f32.gmra.mrb[0].mxu0 %v3205
    %v3380 = vpop.f32.mrb[0].mxu0
    %v3381 = vadd.f32 0.0, %v3380
    %v3382 = vpop.f32.mrb[0].mxu0
    %v3383 = vadd.f32 0.0, %v3382
    %3384 = vdwg.mxu0
    %v3385 = vadd.f32 %v3015, %v3274
    %v3386 = vadd.f32 %v3017, %v3276
    %v3387 = vadd.f32 %v3104, %v3363
    %v3388 = vadd.f32 %v3106, %v3365
    %v3389 = vadd.f32 %v3021, %v3280
    %v3390 = vadd.f32 %v3023, %v3282
    %v3391 = vadd.f32 %v3110, %v3369
    %v3392 = vadd.f32 %v3112, %v3371
    %v3393 = vadd.f32 %v3027, %v3286
    %v3394 = vadd.f32 %v3029, %v3288
    %v3395 = vadd.f32 %v3116, %v3375
    %v3396 = vadd.f32 %v3118, %v3377
    %v3397 = vadd.f32 %v3033, %v3292
    %v3398 = vadd.f32 %v3035, %v3294
    %v3399 = vadd.f32 %v3122, %v3381
    %v3400 = vadd.f32 %v3124, %v3383
    %3401 = vrot.lane.b32.xlu0 %v2657, 15
    %v3402 = vpop.permute.xlu0 %3401
    %3403 = vrot.lane.b32.xlu0 %v2661, 15
    %v3404 = vpop.permute.xlu0 %3403
    %3405 = vrot.lane.b32.xlu0 %v2665, 15
    %v3406 = vpop.permute.xlu0 %3405
    %3407 = vrot.lane.b32.xlu0 %v2669, 15
    %v3408 = vpop.permute.xlu0 %3407
    %3409 = vrot.lane.b32.xlu0 %v2658, 15
    %v3410 = vpop.permute.xlu0 %3409
    %3411 = vrot.lane.b32.xlu0 %v2662, 15
    %v3412 = vpop.permute.xlu0 %3411
    %3413 = vrot.lane.b32.xlu0 %v2666, 15
    %v3414 = vpop.permute.xlu0 %3413
    %3415 = vrot.lane.b32.xlu0 %v2670, 15
    %v3416 = vpop.permute.xlu0 %3415
    %3417 = vrot.lane.b32.xlu0 %v2659, 15
    %v3418 = vpop.permute.xlu0 %3417
    %3419 = vrot.lane.b32.xlu0 %v2663, 15
    %v3420 = vpop.permute.xlu0 %3419
    %3421 = vrot.lane.b32.xlu0 %v2667, 15
    %v3422 = vpop.permute.xlu0 %3421
    %3423 = vrot.lane.b32.xlu0 %v2671, 15
    %v3424 = vpop.permute.xlu0 %3423
    %3425 = vrot.lane.b32.xlu0 %v2660, 15
    %v3426 = vpop.permute.xlu0 %3425
    %3427 = vrot.lane.b32.xlu0 %v2664, 15
    %v3428 = vpop.permute.xlu0 %3427
    %3429 = vrot.lane.b32.xlu0 %v2668, 15
    %v3430 = vpop.permute.xlu0 %3429
    %3431 = vrot.lane.b32.xlu0 %v2672, 15
    %v3432 = vpop.permute.xlu0 %3431
    %v3433 = vsel %vm891, %v3418, %v3426
    %v3434 = vsel %vm891, %v3420, %v3428
    %v3435 = vsel %vm891, %v3422, %v3430
    %v3436 = vsel %vm891, %v3424, %v3432
    %v3437 = vsel %vm891, %v3410, %v3418
    %v3438 = vsel %vm891, %v3412, %v3420
    %v3439 = vsel %vm891, %v3414, %v3422
    %v3440 = vsel %vm891, %v3416, %v3424
    %v3441 = vsel %vm891, %v3402, %v3410
    %v3442 = vsel %vm891, %v3404, %v3412
    %v3443 = vsel %vm891, %v3406, %v3414
    %v3444 = vsel %vm891, %v3408, %v3416
    %v3445 = vsel %vm891, %v3426, %v3402
    %v3446 = vsel %vm891, %v3428, %v3404
    %v3447 = vsel %vm891, %v3430, %v3406
    %v3448 = vsel %vm891, %v3432, %v3408
    %v3449 = vmul.f32 %v3445, %v909
    %v3450 = vmul.f32 %v3441, %v910
    %v3451 = vmul.f32 %v3437, %v911
    %v3452 = vmul.f32 %v3433, %v912
    %v3453 = vmul.f32 %v3446, %v913
    %v3454 = vmul.f32 %v3442, %v914
    %v3455 = vmul.f32 %v3438, %v915
    %v3456 = vmul.f32 %v3434, %v916
    %v3457 = vmul.f32 %v3447, %v917
    %v3458 = vmul.f32 %v3443, %v918
    %v3459 = vmul.f32 %v3439, %v919
    %v3460 = vmul.f32 %v3435, %v920
    %v3461 = vmul.f32 %v3448, %v921
    %v3462 = vmul.f32 %v3444, %v922
    %v3463 = vmul.f32 %v3440, %v923
    %v3464 = vmul.f32 %v3436, %v924
    %s3465 = scalar_lea.vmem [#allocation7], 64
    %v3466 = vld [vmem:[%s3465] sm:$0xff]
    %v3467 = vld [vmem:[%s3465 + $0x8] sm:$0xff]
    %v3468 = vld [vmem:[%s3465 + $0x10] sm:$0xff]
    %v3469 = vld [vmem:[%s3465 + $0x18] sm:$0xff]
    %v3471 = vsel %vm185, %v3466, 0
    %v3474 = vsel %vm185, %v3467, 0
    %v3477 = vsel %vm185, %v3468, 0
    %v3480 = vsel %vm185, %v3469, 0
    %3482 = vmatprep.subr.mxu0 %v3450
    %3483 = vmatpush1.msra.mxu0 %v3449
    %3484 = vmatprep.subr.mxu0 %v3454
    %3485 = vmatpush1.msra.mxu0 %v3453
    %3486 = vmatprep.subr.mxu0 %v3458
    %3487 = vmatpush1.msra.mxu0 %v3457
    %3488 = vmatprep.subr.mxu0 %v3462
    %3489 = vmatpush1.msra.mxu0 %v3461
    %3490 = vmatprep.subr.mxu0 0.0
    %3491 = vmatpush1.msra.mxu0 0.0
    %3492 = vmatprep.subr.mxu0 0.0
    %3493 = vmatpush1.msra.mxu0 0.0
    %3494 = vmatprep.subr.mxu0 0.0
    %3495 = vmatpush1.msra.mxu0 0.0
    %3496 = vmatprep.subr.mxu0 0.0
    %3497 = vmatpush1.msra.mxu0 0.0
    %3498 = vmatprep.subr.mxu0 0.0
    %3499 = vmatpush1.msra.mxu0 0.0
    %3500 = vmatprep.subr.mxu0 0.0
    %3501 = vmatpush1.msra.mxu0 0.0
    %3502 = vmatprep.subr.mxu0 0.0
    %3503 = vmatpush1.msra.mxu0 0.0
    %3504 = vmatprep.subr.mxu0 0.0
    %3505 = vmatpush1.msra.mxu0 0.0
    %3506 = vmatprep.subr.mxu0 0.0
    %3507 = vmatpush1.msra.mxu0 0.0
    %3508 = vmatprep.subr.mxu0 0.0
    %3509 = vmatpush1.msra.mxu0 0.0
    %3510 = vmatprep.subr.mxu0 0.0
    %3511 = vmatpush1.msra.mxu0 0.0
    %3512 = vmatprep.subr.mxu0 0.0
    %3513 = vmatpush1.msra.mxu0 0.0
    %3514 = vmatprep.subr.mxu0 0.0
    %3515 = vmatpush1.msra.mxu0 0.0
    %3516 = vmatprep.subr.mxu0 0.0
    %3517 = vmatpush1.msra.mxu0 0.0
    %3518 = vmatprep.subr.mxu0 0.0
    %3519 = vmatpush1.msra.mxu0 0.0
    %3520 = vmatprep.subr.mxu0 0.0
    %3521 = vmatpush1.msra.mxu0 0.0
    %3522 = vmatprep.subr.mxu0 0.0
    %3523 = vmatpush1.msra.mxu0 0.0
    %3524 = vmatprep.subr.mxu0 0.0
    %3525 = vmatpush1.msra.mxu0 0.0
    %3526 = vmatprep.subr.mxu0 0.0
    %3527 = vmatpush1.msra.mxu0 0.0
    %3528 = vmatprep.subr.mxu0 0.0
    %3529 = vmatpush1.msra.mxu0 0.0
    %3530 = vmatprep.subr.mxu0 0.0
    %3531 = vmatpush1.msra.mxu0 0.0
    %3532 = vmatprep.subr.mxu0 0.0
    %3533 = vmatpush1.msra.mxu0 0.0
    %3534 = vmatprep.subr.mxu0 0.0
    %3535 = vmatpush1.msra.mxu0 0.0
    %3536 = vmatprep.subr.mxu0 0.0
    %3537 = vmatpush1.msra.mxu0 0.0
    %3538 = vmatprep.subr.mxu0 0.0
    %3539 = vmatpush1.msra.mxu0 0.0
    %3540 = vmatprep.subr.mxu0 0.0
    %3541 = vmatpush1.msra.mxu0 0.0
    %3542 = vmatprep.subr.mxu0 0.0
    %3543 = vmatpush1.msra.mxu0 0.0
    %3544 = vmatprep.subr.mxu0 0.0
    %3545 = vmatpush1.msra.mxu0 0.0
    %3546 = vmatprep.mubr.f32.mxu0 0.0
    %3547 = vmatmul.mubr.f32.gmra.mrb[0].mxu0 %v3471
    %v3548 = vpop.f32.mrb[0].mxu0
    %v3549 = vadd.f32 0.0, %v3548
    %v3550 = vpop.f32.mrb[0].mxu0
    %v3551 = vadd.f32 0.0, %v3550
    %3552 = vmatprep.mubr.f32.mxu0 0.0
    %3553 = vmatmul.mubr.f32.gmra.mrb[0].mxu0 %v3474
    %v3554 = vpop.f32.mrb[0].mxu0
    %v3555 = vadd.f32 0.0, %v3554
    %v3556 = vpop.f32.mrb[0].mxu0
    %v3557 = vadd.f32 0.0, %v3556
    %3558 = vmatprep.mubr.f32.mxu0 0.0
    %3559 = vmatmul.mubr.f32.gmra.mrb[0].mxu0 %v3477
    %v3560 = vpop.f32.mrb[0].mxu0
    %v3561 = vadd.f32 0.0, %v3560
    %v3562 = vpop.f32.mrb[0].mxu0
    %v3563 = vadd.f32 0.0, %v3562
    %3564 = vmatprep.mubr.f32.mxu0 0.0
    %3565 = vmatmul.mubr.f32.gmra.mrb[0].mxu0 %v3480
    %v3566 = vpop.f32.mrb[0].mxu0
    %v3567 = vadd.f32 0.0, %v3566
    %v3568 = vpop.f32.mrb[0].mxu0
    %v3569 = vadd.f32 0.0, %v3568
    %3570 = vdwg.mxu0
    %3571 = vmatprep.subr.mxu0 %v3452
    %3572 = vmatpush1.msra.mxu0 %v3451
    %3573 = vmatprep.subr.mxu0 %v3456
    %3574 = vmatpush1.msra.mxu0 %v3455
    %3575 = vmatprep.subr.mxu0 %v3460
    %3576 = vmatpush1.msra.mxu0 %v3459
    %3577 = vmatprep.subr.mxu0 %v3464
    %3578 = vmatpush1.msra.mxu0 %v3463
    %3579 = vmatprep.subr.mxu0 0.0
    %3580 = vmatpush1.msra.mxu0 0.0
    %3581 = vmatprep.subr.mxu0 0.0
    %3582 = vmatpush1.msra.mxu0 0.0
    %3583 = vmatprep.subr.mxu0 0.0
    %3584 = vmatpush1.msra.mxu0 0.0
    %3585 = vmatprep.subr.mxu0 0.0
    %3586 = vmatpush1.msra.mxu0 0.0
    %3587 = vmatprep.subr.mxu0 0.0
    %3588 = vmatpush1.msra.mxu0 0.0
    %3589 = vmatprep.subr.mxu0 0.0
    %3590 = vmatpush1.msra.mxu0 0.0
    %3591 = vmatprep.subr.mxu0 0.0
    %3592 = vmatpush1.msra.mxu0 0.0
    %3593 = vmatprep.subr.mxu0 0.0
    %3594 = vmatpush1.msra.mxu0 0.0
    %3595 = vmatprep.subr.mxu0 0.0
    %3596 = vmatpush1.msra.mxu0 0.0
    %3597 = vmatprep.subr.mxu0 0.0
    %3598 = vmatpush1.msra.mxu0 0.0
    %3599 = vmatprep.subr.mxu0 0.0
    %3600 = vmatpush1.msra.mxu0 0.0
    %3601 = vmatprep.subr.mxu0 0.0
    %3602 = vmatpush1.msra.mxu0 0.0
    %3603 = vmatprep.subr.mxu0 0.0
    %3604 = vmatpush1.msra.mxu0 0.0
    %3605 = vmatprep.subr.mxu0 0.0
    %3606 = vmatpush1.msra.mxu0 0.0
    %3607 = vmatprep.subr.mxu0 0.0
    %3608 = vmatpush1.msra.mxu0 0.0
    %3609 = vmatprep.subr.mxu0 0.0
    %3610 = vmatpush1.msra.mxu0 0.0
    %3611 = vmatprep.subr.mxu0 0.0
    %3612 = vmatpush1.msra.mxu0 0.0
    %3613 = vmatprep.subr.mxu0 0.0
    %3614 = vmatpush1.msra.mxu0 0.0
    %3615 = vmatprep.subr.mxu0 0.0
    %3616 = vmatpush1.msra.mxu0 0.0
    %3617 = vmatprep.subr.mxu0 0.0
    %3618 = vmatpush1.msra.mxu0 0.0
    %3619 = vmatprep.subr.mxu0 0.0
    %3620 = vmatpush1.msra.mxu0 0.0
    %3621 = vmatprep.subr.mxu0 0.0
    %3622 = vmatpush1.msra.mxu0 0.0
    %3623 = vmatprep.subr.mxu0 0.0
    %3624 = vmatpush1.msra.mxu0 0.0
    %3625 = vmatprep.subr.mxu0 0.0
    %3626 = vmatpush1.msra.mxu0 0.0
    %3627 = vmatprep.subr.mxu0 0.0
    %3628 = vmatpush1.msra.mxu0 0.0
    %3629 = vmatprep.subr.mxu0 0.0
    %3630 = vmatpush1.msra.mxu0 0.0
    %3631 = vmatprep.subr.mxu0 0.0
    %3632 = vmatpush1.msra.mxu0 0.0
    %3633 = vmatprep.subr.mxu0 0.0
    %3634 = vmatpush1.msra.mxu0 0.0
    %3635 = vmatprep.mubr.f32.mxu0 0.0
    %3636 = vmatmul.mubr.f32.gmra.mrb[0].mxu0 %v3471
    %v3637 = vpop.f32.mrb[0].mxu0
    %v3638 = vadd.f32 0.0, %v3637
    %v3639 = vpop.f32.mrb[0].mxu0
    %v3640 = vadd.f32 0.0, %v3639
    %3641 = vmatprep.mubr.f32.mxu0 0.0
    %3642 = vmatmul.mubr.f32.gmra.mrb[0].mxu0 %v3474
    %v3643 = vpop.f32.mrb[0].mxu0
    %v3644 = vadd.f32 0.0, %v3643
    %v3645 = vpop.f32.mrb[0].mxu0
    %v3646 = vadd.f32 0.0, %v3645
    %3647 = vmatprep.mubr.f32.mxu0 0.0
    %3648 = vmatmul.mubr.f32.gmra.mrb[0].mxu0 %v3477
    %v3649 = vpop.f32.mrb[0].mxu0
    %v3650 = vadd.f32 0.0, %v3649
    %v3651 = vpop.f32.mrb[0].mxu0
    %v3652 = vadd.f32 0.0, %v3651
    %3653 = vmatprep.mubr.f32.mxu0 0.0
    %3654 = vmatmul.mubr.f32.gmra.mrb[0].mxu0 %v3480
    %v3655 = vpop.f32.mrb[0].mxu0
    %v3656 = vadd.f32 0.0, %v3655
    %v3657 = vpop.f32.mrb[0].mxu0
    %v3658 = vadd.f32 0.0, %v3657
    %3659 = vdwg.mxu0
    %v3660 = vadd.f32 %v3385, %v3549
    %v3661 = vadd.f32 %v3386, %v3551
    %v3662 = vadd.f32 %v3387, %v3638
    %v3663 = vadd.f32 %v3388, %v3640
    %v3664 = vadd.f32 %v3389, %v3555
    %v3665 = vadd.f32 %v3390, %v3557
    %v3666 = vadd.f32 %v3391, %v3644
    %v3667 = vadd.f32 %v3392, %v3646
    %v3668 = vadd.f32 %v3393, %v3561
    %v3669 = vadd.f32 %v3394, %v3563
    %v3670 = vadd.f32 %v3395, %v3650
    %v3671 = vadd.f32 %v3396, %v3652
    %v3672 = vadd.f32 %v3397, %v3567
    %v3673 = vadd.f32 %v3398, %v3569
    %v3674 = vadd.f32 %v3399, %v3656
    %v3675 = vadd.f32 %v3400, %v3658
    %3676 = vrot.lane.b32.xlu0 %v2657, 1
    %v3677 = vpop.permute.xlu0 %3676
    %3678 = vrot.lane.b32.xlu0 %v2661, 1
    %v3679 = vpop.permute.xlu0 %3678
    %3680 = vrot.lane.b32.xlu0 %v2665, 1
    %v3681 = vpop.permute.xlu0 %3680
    %3682 = vrot.lane.b32.xlu0 %v2669, 1
    %v3683 = vpop.permute.xlu0 %3682
    %3684 = vrot.lane.b32.xlu0 %v2658, 1
    %v3685 = vpop.permute.xlu0 %3684
    %3686 = vrot.lane.b32.xlu0 %v2662, 1
    %v3687 = vpop.permute.xlu0 %3686
    %3688 = vrot.lane.b32.xlu0 %v2666, 1
    %v3689 = vpop.permute.xlu0 %3688
    %3690 = vrot.lane.b32.xlu0 %v2670, 1
    %v3691 = vpop.permute.xlu0 %3690
    %3692 = vrot.lane.b32.xlu0 %v2659, 1
    %v3693 = vpop.permute.xlu0 %3692
    %3694 = vrot.lane.b32.xlu0 %v2663, 1
    %v3695 = vpop.permute.xlu0 %3694
    %3696 = vrot.lane.b32.xlu0 %v2667, 1
    %v3697 = vpop.permute.xlu0 %3696
    %3698 = vrot.lane.b32.xlu0 %v2671, 1
    %v3699 = vpop.permute.xlu0 %3698
    %3700 = vrot.lane.b32.xlu0 %v2660, 1
    %v3701 = vpop.permute.xlu0 %3700
    %3702 = vrot.lane.b32.xlu0 %v2664, 1
    %v3703 = vpop.permute.xlu0 %3702
    %3704 = vrot.lane.b32.xlu0 %v2668, 1
    %v3705 = vpop.permute.xlu0 %3704
    %3706 = vrot.lane.b32.xlu0 %v2672, 1
    %v3707 = vpop.permute.xlu0 %3706
    %v3708 = vsel %vm1184, %v3693, %v3701
    %v3709 = vsel %vm1184, %v3695, %v3703
    %v3710 = vsel %vm1184, %v3697, %v3705
    %v3711 = vsel %vm1184, %v3699, %v3707
    %v3712 = vsel %vm1184, %v3685, %v3693
    %v3713 = vsel %vm1184, %v3687, %v3695
    %v3714 = vsel %vm1184, %v3689, %v3697
    %v3715 = vsel %vm1184, %v3691, %v3699
    %v3716 = vsel %vm1184, %v3677, %v3685
    %v3717 = vsel %vm1184, %v3679, %v3687
    %v3718 = vsel %vm1184, %v3681, %v3689
    %v3719 = vsel %vm1184, %v3683, %v3691
    %v3720 = vsel %vm1184, %v3701, %v3677
    %v3721 = vsel %vm1184, %v3703, %v3679
    %v3722 = vsel %vm1184, %v3705, %v3681
    %v3723 = vsel %vm1184, %v3707, %v3683
    %v3724 = vmul.f32 %v3720, %v1202
    %v3725 = vmul.f32 %v3716, %v1203
    %v3726 = vmul.f32 %v3712, %v1204
    %v3727 = vmul.f32 %v3708, %v1205
    %v3728 = vmul.f32 %v3721, %v1206
    %v3729 = vmul.f32 %v3717, %v1207
    %v3730 = vmul.f32 %v3713, %v1208
    %v3731 = vmul.f32 %v3709, %v1209
    %v3732 = vmul.f32 %v3722, %v1210
    %v3733 = vmul.f32 %v3718, %v1211
    %v3734 = vmul.f32 %v3714, %v1212
    %v3735 = vmul.f32 %v3710, %v1213
    %v3736 = vmul.f32 %v3723, %v1214
    %v3737 = vmul.f32 %v3719, %v1215
    %v3738 = vmul.f32 %v3715, %v1216
    %v3739 = vmul.f32 %v3711, %v1217
    %s3740 = scalar_lea.vmem [#allocation7], 96
    %v3741 = vld [vmem:[%s3740] sm:$0xff]
    %v3742 = vld [vmem:[%s3740 + $0x8] sm:$0xff]
    %v3743 = vld [vmem:[%s3740 + $0x10] sm:$0xff]
    %v3744 = vld [vmem:[%s3740 + $0x18] sm:$0xff]
    %v3746 = vsel %vm185, %v3741, 0
    %v3749 = vsel %vm185, %v3742, 0
    %v3752 = vsel %vm185, %v3743, 0
    %v3755 = vsel %vm185, %v3744, 0
    %3757 = vmatprep.subr.mxu0 %v3725
    %3758 = vmatpush1.msra.mxu0 %v3724
    %3759 = vmatprep.subr.mxu0 %v3729
    %3760 = vmatpush1.msra.mxu0 %v3728
    %3761 = vmatprep.subr.mxu0 %v3733
    %3762 = vmatpush1.msra.mxu0 %v3732
    %3763 = vmatprep.subr.mxu0 %v3737
    %3764 = vmatpush1.msra.mxu0 %v3736
    %3765 = vmatprep.subr.mxu0 0.0
    %3766 = vmatpush1.msra.mxu0 0.0
    %3767 = vmatprep.subr.mxu0 0.0
    %3768 = vmatpush1.msra.mxu0 0.0
    %3769 = vmatprep.subr.mxu0 0.0
    %3770 = vmatpush1.msra.mxu0 0.0
    %3771 = vmatprep.subr.mxu0 0.0
    %3772 = vmatpush1.msra.mxu0 0.0
    %3773 = vmatprep.subr.mxu0 0.0
    %3774 = vmatpush1.msra.mxu0 0.0
    %3775 = vmatprep.subr.mxu0 0.0
    %3776 = vmatpush1.msra.mxu0 0.0
    %3777 = vmatprep.subr.mxu0 0.0
    %3778 = vmatpush1.msra.mxu0 0.0
    %3779 = vmatprep.subr.mxu0 0.0
    %3780 = vmatpush1.msra.mxu0 0.0
    %3781 = vmatprep.subr.mxu0 0.0
    %3782 = vmatpush1.msra.mxu0 0.0
    %3783 = vmatprep.subr.mxu0 0.0
    %3784 = vmatpush1.msra.mxu0 0.0
    %3785 = vmatprep.subr.mxu0 0.0
    %3786 = vmatpush1.msra.mxu0 0.0
    %3787 = vmatprep.subr.mxu0 0.0
    %3788 = vmatpush1.msra.mxu0 0.0
    %3789 = vmatprep.subr.mxu0 0.0
    %3790 = vmatpush1.msra.mxu0 0.0
    %3791 = vmatprep.subr.mxu0 0.0
    %3792 = vmatpush1.msra.mxu0 0.0
    %3793 = vmatprep.subr.mxu0 0.0
    %3794 = vmatpush1.msra.mxu0 0.0
    %3795 = vmatprep.subr.mxu0 0.0
    %3796 = vmatpush1.msra.mxu0 0.0
    %3797 = vmatprep.subr.mxu0 0.0
    %3798 = vmatpush1.msra.mxu0 0.0
    %3799 = vmatprep.subr.mxu0 0.0
    %3800 = vmatpush1.msra.mxu0 0.0
    %3801 = vmatprep.subr.mxu0 0.0
    %3802 = vmatpush1.msra.mxu0 0.0
    %3803 = vmatprep.subr.mxu0 0.0
    %3804 = vmatpush1.msra.mxu0 0.0
    %3805 = vmatprep.subr.mxu0 0.0
    %3806 = vmatpush1.msra.mxu0 0.0
    %3807 = vmatprep.subr.mxu0 0.0
    %3808 = vmatpush1.msra.mxu0 0.0
    %3809 = vmatprep.subr.mxu0 0.0
    %3810 = vmatpush1.msra.mxu0 0.0
    %3811 = vmatprep.subr.mxu0 0.0
    %3812 = vmatpush1.msra.mxu0 0.0
    %3813 = vmatprep.subr.mxu0 0.0
    %3814 = vmatpush1.msra.mxu0 0.0
    %3815 = vmatprep.subr.mxu0 0.0
    %3816 = vmatpush1.msra.mxu0 0.0
    %3817 = vmatprep.subr.mxu0 0.0
    %3818 = vmatpush1.msra.mxu0 0.0
    %3819 = vmatprep.subr.mxu0 0.0
    %3820 = vmatpush1.msra.mxu0 0.0
    %3821 = vmatprep.mubr.f32.mxu0 0.0
    %3822 = vmatmul.mubr.f32.gmra.mrb[0].mxu0 %v3746
    %v3823 = vpop.f32.mrb[0].mxu0
    %v3824 = vadd.f32 0.0, %v3823
    %v3825 = vpop.f32.mrb[0].mxu0
    %v3826 = vadd.f32 0.0, %v3825
    %3827 = vmatprep.mubr.f32.mxu0 0.0
    %3828 = vmatmul.mubr.f32.gmra.mrb[0].mxu0 %v3749
    %v3829 = vpop.f32.mrb[0].mxu0
    %v3830 = vadd.f32 0.0, %v3829
    %v3831 = vpop.f32.mrb[0].mxu0
    %v3832 = vadd.f32 0.0, %v3831
    %3833 = vmatprep.mubr.f32.mxu0 0.0
    %3834 = vmatmul.mubr.f32.gmra.mrb[0].mxu0 %v3752
    %v3835 = vpop.f32.mrb[0].mxu0
    %v3836 = vadd.f32 0.0, %v3835
    %v3837 = vpop.f32.mrb[0].mxu0
    %v3838 = vadd.f32 0.0, %v3837
    %3839 = vmatprep.mubr.f32.mxu0 0.0
    %3840 = vmatmul.mubr.f32.gmra.mrb[0].mxu0 %v3755
    %v3841 = vpop.f32.mrb[0].mxu0
    %v3842 = vadd.f32 0.0, %v3841
    %v3843 = vpop.f32.mrb[0].mxu0
    %v3844 = vadd.f32 0.0, %v3843
    %3845 = vdwg.mxu0
    %3846 = vmatprep.subr.mxu0 %v3727
    %3847 = vmatpush1.msra.mxu0 %v3726
    %3848 = vmatprep.subr.mxu0 %v3731
    %3849 = vmatpush1.msra.mxu0 %v3730
    %3850 = vmatprep.subr.mxu0 %v3735
    %3851 = vmatpush1.msra.mxu0 %v3734
    %3852 = vmatprep.subr.mxu0 %v3739
    %3853 = vmatpush1.msra.mxu0 %v3738
    %3854 = vmatprep.subr.mxu0 0.0
    %3855 = vmatpush1.msra.mxu0 0.0
    %3856 = vmatprep.subr.mxu0 0.0
    %3857 = vmatpush1.msra.mxu0 0.0
    %3858 = vmatprep.subr.mxu0 0.0
    %3859 = vmatpush1.msra.mxu0 0.0
    %3860 = vmatprep.subr.mxu0 0.0
    %3861 = vmatpush1.msra.mxu0 0.0
    %3862 = vmatprep.subr.mxu0 0.0
    %3863 = vmatpush1.msra.mxu0 0.0
    %3864 = vmatprep.subr.mxu0 0.0
    %3865 = vmatpush1.msra.mxu0 0.0
    %3866 = vmatprep.subr.mxu0 0.0
    %3867 = vmatpush1.msra.mxu0 0.0
    %3868 = vmatprep.subr.mxu0 0.0
    %3869 = vmatpush1.msra.mxu0 0.0
    %3870 = vmatprep.subr.mxu0 0.0
    %3871 = vmatpush1.msra.mxu0 0.0
    %3872 = vmatprep.subr.mxu0 0.0
    %3873 = vmatpush1.msra.mxu0 0.0
    %3874 = vmatprep.subr.mxu0 0.0
    %3875 = vmatpush1.msra.mxu0 0.0
    %3876 = vmatprep.subr.mxu0 0.0
    %3877 = vmatpush1.msra.mxu0 0.0
    %3878 = vmatprep.subr.mxu0 0.0
    %3879 = vmatpush1.msra.mxu0 0.0
    %3880 = vmatprep.subr.mxu0 0.0
    %3881 = vmatpush1.msra.mxu0 0.0
    %3882 = vmatprep.subr.mxu0 0.0
    %3883 = vmatpush1.msra.mxu0 0.0
    %3884 = vmatprep.subr.mxu0 0.0
    %3885 = vmatpush1.msra.mxu0 0.0
    %3886 = vmatprep.subr.mxu0 0.0
    %3887 = vmatpush1.msra.mxu0 0.0
    %3888 = vmatprep.subr.mxu0 0.0
    %3889 = vmatpush1.msra.mxu0 0.0
    %3890 = vmatprep.subr.mxu0 0.0
    %3891 = vmatpush1.msra.mxu0 0.0
    %3892 = vmatprep.subr.mxu0 0.0
    %3893 = vmatpush1.msra.mxu0 0.0
    %3894 = vmatprep.subr.mxu0 0.0
    %3895 = vmatpush1.msra.mxu0 0.0
    %3896 = vmatprep.subr.mxu0 0.0
    %3897 = vmatpush1.msra.mxu0 0.0
    %3898 = vmatprep.subr.mxu0 0.0
    %3899 = vmatpush1.msra.mxu0 0.0
    %3900 = vmatprep.subr.mxu0 0.0
    %3901 = vmatpush1.msra.mxu0 0.0
    %3902 = vmatprep.subr.mxu0 0.0
    %3903 = vmatpush1.msra.mxu0 0.0
    %3904 = vmatprep.subr.mxu0 0.0
    %3905 = vmatpush1.msra.mxu0 0.0
    %3906 = vmatprep.subr.mxu0 0.0
    %3907 = vmatpush1.msra.mxu0 0.0
    %3908 = vmatprep.subr.mxu0 0.0
    %3909 = vmatpush1.msra.mxu0 0.0
    %3910 = vmatprep.mubr.f32.mxu0 0.0
    %3911 = vmatmul.mubr.f32.gmra.mrb[0].mxu0 %v3746
    %v3912 = vpop.f32.mrb[0].mxu0
    %v3913 = vadd.f32 0.0, %v3912
    %v3914 = vpop.f32.mrb[0].mxu0
    %v3915 = vadd.f32 0.0, %v3914
    %3916 = vmatprep.mubr.f32.mxu0 0.0
    %3917 = vmatmul.mubr.f32.gmra.mrb[0].mxu0 %v3749
    %v3918 = vpop.f32.mrb[0].mxu0
    %v3919 = vadd.f32 0.0, %v3918
    %v3920 = vpop.f32.mrb[0].mxu0
    %v3921 = vadd.f32 0.0, %v3920
    %3922 = vmatprep.mubr.f32.mxu0 0.0
    %3923 = vmatmul.mubr.f32.gmra.mrb[0].mxu0 %v3752
    %v3924 = vpop.f32.mrb[0].mxu0
    %v3925 = vadd.f32 0.0, %v3924
    %v3926 = vpop.f32.mrb[0].mxu0
    %v3927 = vadd.f32 0.0, %v3926
    %3928 = vmatprep.mubr.f32.mxu0 0.0
    %3929 = vmatmul.mubr.f32.gmra.mrb[0].mxu0 %v3755
    %v3930 = vpop.f32.mrb[0].mxu0
    %v3931 = vadd.f32 0.0, %v3930
    %v3932 = vpop.f32.mrb[0].mxu0
    %v3933 = vadd.f32 0.0, %v3932
    %3934 = vdwg.mxu0
    %v3935 = vadd.f32 %v3660, %v3824
    %v3936 = vadd.f32 %v3661, %v3826
    %v3937 = vadd.f32 %v3662, %v3913
    %v3938 = vadd.f32 %v3663, %v3915
    %v3939 = vadd.f32 %v3664, %v3830
    %v3940 = vadd.f32 %v3665, %v3832
    %v3941 = vadd.f32 %v3666, %v3919
    %v3942 = vadd.f32 %v3667, %v3921
    %v3943 = vadd.f32 %v3668, %v3836
    %v3944 = vadd.f32 %v3669, %v3838
    %v3945 = vadd.f32 %v3670, %v3925
    %v3946 = vadd.f32 %v3671, %v3927
    %v3947 = vadd.f32 %v3672, %v3842
    %v3948 = vadd.f32 %v3673, %v3844
    %v3949 = vadd.f32 %v3674, %v3931
    %v3950 = vadd.f32 %v3675, %v3933
    %3951 = vrot.lane.b32.xlu0 %v2657, 127
    %v3952 = vpop.permute.xlu0 %3951
    %3953 = vrot.lane.b32.xlu0 %v2661, 127
    %v3954 = vpop.permute.xlu0 %3953
    %3955 = vrot.lane.b32.xlu0 %v2665, 127
    %v3956 = vpop.permute.xlu0 %3955
    %3957 = vrot.lane.b32.xlu0 %v2669, 127
    %v3958 = vpop.permute.xlu0 %3957
    %3959 = vrot.lane.b32.xlu0 %v2658, 127
    %v3960 = vpop.permute.xlu0 %3959
    %3961 = vrot.lane.b32.xlu0 %v2662, 127
    %v3962 = vpop.permute.xlu0 %3961
    %3963 = vrot.lane.b32.xlu0 %v2666, 127
    %v3964 = vpop.permute.xlu0 %3963
    %3965 = vrot.lane.b32.xlu0 %v2670, 127
    %v3966 = vpop.permute.xlu0 %3965
    %3967 = vrot.lane.b32.xlu0 %v2659, 127
    %v3968 = vpop.permute.xlu0 %3967
    %3969 = vrot.lane.b32.xlu0 %v2663, 127
    %v3970 = vpop.permute.xlu0 %3969
    %3971 = vrot.lane.b32.xlu0 %v2667, 127
    %v3972 = vpop.permute.xlu0 %3971
    %3973 = vrot.lane.b32.xlu0 %v2671, 127
    %v3974 = vpop.permute.xlu0 %3973
    %3975 = vrot.lane.b32.xlu0 %v2660, 127
    %v3976 = vpop.permute.xlu0 %3975
    %3977 = vrot.lane.b32.xlu0 %v2664, 127
    %v3978 = vpop.permute.xlu0 %3977
    %3979 = vrot.lane.b32.xlu0 %v2668, 127
    %v3980 = vpop.permute.xlu0 %3979
    %3981 = vrot.lane.b32.xlu0 %v2672, 127
    %v3982 = vpop.permute.xlu0 %3981
    %v3983 = vsel %vm1477, %v3968, %v3976
    %v3984 = vsel %vm1477, %v3970, %v3978
    %v3985 = vsel %vm1477, %v3972, %v3980
    %v3986 = vsel %vm1477, %v3974, %v3982
    %v3987 = vsel %vm1477, %v3960, %v3968
    %v3988 = vsel %vm1477, %v3962, %v3970
    %v3989 = vsel %vm1477, %v3964, %v3972
    %v3990 = vsel %vm1477, %v3966, %v3974
    %v3991 = vsel %vm1477, %v3952, %v3960
    %v3992 = vsel %vm1477, %v3954, %v3962
    %v3993 = vsel %vm1477, %v3956, %v3964
    %v3994 = vsel %vm1477, %v3958, %v3966
    %v3995 = vsel %vm1477, %v3976, %v3952
    %v3996 = vsel %vm1477, %v3978, %v3954
    %v3997 = vsel %vm1477, %v3980, %v3956
    %v3998 = vsel %vm1477, %v3982, %v3958
    %v3999 = vmul.f32 %v3991, %v1495
    %v4000 = vmul.f32 %v3987, %v1496
    %v4001 = vmul.f32 %v3983, %v1497
    %v4002 = vmul.f32 %v3995, %v1498
    %v4003 = vmul.f32 %v3992, %v1499
    %v4004 = vmul.f32 %v3988, %v1500
    %v4005 = vmul.f32 %v3984, %v1501
    %v4006 = vmul.f32 %v3996, %v1502
    %v4007 = vmul.f32 %v3993, %v1503
    %v4008 = vmul.f32 %v3989, %v1504
    %v4009 = vmul.f32 %v3985, %v1505
    %v4010 = vmul.f32 %v3997, %v1506
    %v4011 = vmul.f32 %v3994, %v1507
    %v4012 = vmul.f32 %v3990, %v1508
    %v4013 = vmul.f32 %v3986, %v1509
    %v4014 = vmul.f32 %v3998, %v1510
    %s4015 = scalar_lea.vmem [#allocation7], 160
    %v4016 = vld [vmem:[%s4015] sm:$0xff]
    %v4017 = vld [vmem:[%s4015 + $0x8] sm:$0xff]
    %v4018 = vld [vmem:[%s4015 + $0x10] sm:$0xff]
    %v4019 = vld [vmem:[%s4015 + $0x18] sm:$0xff]
    %v4021 = vsel %vm185, %v4016, 0
    %v4024 = vsel %vm185, %v4017, 0
    %v4027 = vsel %vm185, %v4018, 0
    %v4030 = vsel %vm185, %v4019, 0
    %4032 = vmatprep.subr.mxu0 %v4000
    %4033 = vmatpush1.msra.mxu0 %v3999
    %4034 = vmatprep.subr.mxu0 %v4004
    %4035 = vmatpush1.msra.mxu0 %v4003
    %4036 = vmatprep.subr.mxu0 %v4008
    %4037 = vmatpush1.msra.mxu0 %v4007
    %4038 = vmatprep.subr.mxu0 %v4012
    %4039 = vmatpush1.msra.mxu0 %v4011
    %4040 = vmatprep.subr.mxu0 0.0
    %4041 = vmatpush1.msra.mxu0 0.0
    %4042 = vmatprep.subr.mxu0 0.0
    %4043 = vmatpush1.msra.mxu0 0.0
    %4044 = vmatprep.subr.mxu0 0.0
    %4045 = vmatpush1.msra.mxu0 0.0
    %4046 = vmatprep.subr.mxu0 0.0
    %4047 = vmatpush1.msra.mxu0 0.0
    %4048 = vmatprep.subr.mxu0 0.0
    %4049 = vmatpush1.msra.mxu0 0.0
    %4050 = vmatprep.subr.mxu0 0.0
    %4051 = vmatpush1.msra.mxu0 0.0
    %4052 = vmatprep.subr.mxu0 0.0
    %4053 = vmatpush1.msra.mxu0 0.0
    %4054 = vmatprep.subr.mxu0 0.0
    %4055 = vmatpush1.msra.mxu0 0.0
    %4056 = vmatprep.subr.mxu0 0.0
    %4057 = vmatpush1.msra.mxu0 0.0
    %4058 = vmatprep.subr.mxu0 0.0
    %4059 = vmatpush1.msra.mxu0 0.0
    %4060 = vmatprep.subr.mxu0 0.0
    %4061 = vmatpush1.msra.mxu0 0.0
    %4062 = vmatprep.subr.mxu0 0.0
    %4063 = vmatpush1.msra.mxu0 0.0
    %4064 = vmatprep.subr.mxu0 0.0
    %4065 = vmatpush1.msra.mxu0 0.0
    %4066 = vmatprep.subr.mxu0 0.0
    %4067 = vmatpush1.msra.mxu0 0.0
    %4068 = vmatprep.subr.mxu0 0.0
    %4069 = vmatpush1.msra.mxu0 0.0
    %4070 = vmatprep.subr.mxu0 0.0
    %4071 = vmatpush1.msra.mxu0 0.0
    %4072 = vmatprep.subr.mxu0 0.0
    %4073 = vmatpush1.msra.mxu0 0.0
    %4074 = vmatprep.subr.mxu0 0.0
    %4075 = vmatpush1.msra.mxu0 0.0
    %4076 = vmatprep.subr.mxu0 0.0
    %4077 = vmatpush1.msra.mxu0 0.0
    %4078 = vmatprep.subr.mxu0 0.0
    %4079 = vmatpush1.msra.mxu0 0.0
    %4080 = vmatprep.subr.mxu0 0.0
    %4081 = vmatpush1.msra.mxu0 0.0
    %4082 = vmatprep.subr.mxu0 0.0
    %4083 = vmatpush1.msra.mxu0 0.0
    %4084 = vmatprep.subr.mxu0 0.0
    %4085 = vmatpush1.msra.mxu0 0.0
    %4086 = vmatprep.subr.mxu0 0.0
    %4087 = vmatpush1.msra.mxu0 0.0
    %4088 = vmatprep.subr.mxu0 0.0
    %4089 = vmatpush1.msra.mxu0 0.0
    %4090 = vmatprep.subr.mxu0 0.0
    %4091 = vmatpush1.msra.mxu0 0.0
    %4092 = vmatprep.subr.mxu0 0.0
    %4093 = vmatpush1.msra.mxu0 0.0
    %4094 = vmatprep.subr.mxu0 0.0
    %4095 = vmatpush1.msra.mxu0 0.0
    %4096 = vmatprep.mubr.f32.mxu0 0.0
    %4097 = vmatmul.mubr.f32.gmra.mrb[0].mxu0 %v4021
    %v4098 = vpop.f32.mrb[0].mxu0
    %v4099 = vadd.f32 0.0, %v4098
    %v4100 = vpop.f32.mrb[0].mxu0
    %v4101 = vadd.f32 0.0, %v4100
    %4102 = vmatprep.mubr.f32.mxu0 0.0
    %4103 = vmatmul.mubr.f32.gmra.mrb[0].mxu0 %v4024
    %v4104 = vpop.f32.mrb[0].mxu0
    %v4105 = vadd.f32 0.0, %v4104
    %v4106 = vpop.f32.mrb[0].mxu0
    %v4107 = vadd.f32 0.0, %v4106
    %4108 = vmatprep.mubr.f32.mxu0 0.0
    %4109 = vmatmul.mubr.f32.gmra.mrb[0].mxu0 %v4027
    %v4110 = vpop.f32.mrb[0].mxu0
    %v4111 = vadd.f32 0.0, %v4110
    %v4112 = vpop.f32.mrb[0].mxu0
    %v4113 = vadd.f32 0.0, %v4112
    %4114 = vmatprep.mubr.f32.mxu0 0.0
    %4115 = vmatmul.mubr.f32.gmra.mrb[0].mxu0 %v4030
    %v4116 = vpop.f32.mrb[0].mxu0
    %v4117 = vadd.f32 0.0, %v4116
    %v4118 = vpop.f32.mrb[0].mxu0
    %v4119 = vadd.f32 0.0, %v4118
    %4120 = vdwg.mxu0
    %4121 = vmatprep.subr.mxu0 %v4002
    %4122 = vmatpush1.msra.mxu0 %v4001
    %4123 = vmatprep.subr.mxu0 %v4006
    %4124 = vmatpush1.msra.mxu0 %v4005
    %4125 = vmatprep.subr.mxu0 %v4010
    %4126 = vmatpush1.msra.mxu0 %v4009
    %4127 = vmatprep.subr.mxu0 %v4014
    %4128 = vmatpush1.msra.mxu0 %v4013
    %4129 = vmatprep.subr.mxu0 0.0
    %4130 = vmatpush1.msra.mxu0 0.0
    %4131 = vmatprep.subr.mxu0 0.0
    %4132 = vmatpush1.msra.mxu0 0.0
    %4133 = vmatprep.subr.mxu0 0.0
    %4134 = vmatpush1.msra.mxu0 0.0
    %4135 = vmatprep.subr.mxu0 0.0
    %4136 = vmatpush1.msra.mxu0 0.0
    %4137 = vmatprep.subr.mxu0 0.0
    %4138 = vmatpush1.msra.mxu0 0.0
    %4139 = vmatprep.subr.mxu0 0.0
    %4140 = vmatpush1.msra.mxu0 0.0
    %4141 = vmatprep.subr.mxu0 0.0
    %4142 = vmatpush1.msra.mxu0 0.0
    %4143 = vmatprep.subr.mxu0 0.0
    %4144 = vmatpush1.msra.mxu0 0.0
    %4145 = vmatprep.subr.mxu0 0.0
    %4146 = vmatpush1.msra.mxu0 0.0
    %4147 = vmatprep.subr.mxu0 0.0
    %4148 = vmatpush1.msra.mxu0 0.0
    %4149 = vmatprep.subr.mxu0 0.0
    %4150 = vmatpush1.msra.mxu0 0.0
    %4151 = vmatprep.subr.mxu0 0.0
    %4152 = vmatpush1.msra.mxu0 0.0
    %4153 = vmatprep.subr.mxu0 0.0
    %4154 = vmatpush1.msra.mxu0 0.0
    %4155 = vmatprep.subr.mxu0 0.0
    %4156 = vmatpush1.msra.mxu0 0.0
    %4157 = vmatprep.subr.mxu0 0.0
    %4158 = vmatpush1.msra.mxu0 0.0
    %4159 = vmatprep.subr.mxu0 0.0
    %4160 = vmatpush1.msra.mxu0 0.0
    %4161 = vmatprep.subr.mxu0 0.0
    %4162 = vmatpush1.msra.mxu0 0.0
    %4163 = vmatprep.subr.mxu0 0.0
    %4164 = vmatpush1.msra.mxu0 0.0
    %4165 = vmatprep.subr.mxu0 0.0
    %4166 = vmatpush1.msra.mxu0 0.0
    %4167 = vmatprep.subr.mxu0 0.0
    %4168 = vmatpush1.msra.mxu0 0.0
    %4169 = vmatprep.subr.mxu0 0.0
    %4170 = vmatpush1.msra.mxu0 0.0
    %4171 = vmatprep.subr.mxu0 0.0
    %4172 = vmatpush1.msra.mxu0 0.0
    %4173 = vmatprep.subr.mxu0 0.0
    %4174 = vmatpush1.msra.mxu0 0.0
    %4175 = vmatprep.subr.mxu0 0.0
    %4176 = vmatpush1.msra.mxu0 0.0
    %4177 = vmatprep.subr.mxu0 0.0
    %4178 = vmatpush1.msra.mxu0 0.0
    %4179 = vmatprep.subr.mxu0 0.0
    %4180 = vmatpush1.msra.mxu0 0.0
    %4181 = vmatprep.subr.mxu0 0.0
    %4182 = vmatpush1.msra.mxu0 0.0
    %4183 = vmatprep.subr.mxu0 0.0
    %4184 = vmatpush1.msra.mxu0 0.0
    %4185 = vmatprep.mubr.f32.mxu0 0.0
    %4186 = vmatmul.mubr.f32.gmra.mrb[0].mxu0 %v4021
    %v4187 = vpop.f32.mrb[0].mxu0
    %v4188 = vadd.f32 0.0, %v4187
    %v4189 = vpop.f32.mrb[0].mxu0
    %v4190 = vadd.f32 0.0, %v4189
    %4191 = vmatprep.mubr.f32.mxu0 0.0
    %4192 = vmatmul.mubr.f32.gmra.mrb[0].mxu0 %v4024
    %v4193 = vpop.f32.mrb[0].mxu0
    %v4194 = vadd.f32 0.0, %v4193
    %v4195 = vpop.f32.mrb[0].mxu0
    %v4196 = vadd.f32 0.0, %v4195
    %4197 = vmatprep.mubr.f32.mxu0 0.0
    %4198 = vmatmul.mubr.f32.gmra.mrb[0].mxu0 %v4027
    %v4199 = vpop.f32.mrb[0].mxu0
    %v4200 = vadd.f32 0.0, %v4199
    %v4201 = vpop.f32.mrb[0].mxu0
    %v4202 = vadd.f32 0.0, %v4201
    %4203 = vmatprep.mubr.f32.mxu0 0.0
    %4204 = vmatmul.mubr.f32.gmra.mrb[0].mxu0 %v4030
    %v4205 = vpop.f32.mrb[0].mxu0
    %v4206 = vadd.f32 0.0, %v4205
    %v4207 = vpop.f32.mrb[0].mxu0
    %v4208 = vadd.f32 0.0, %v4207
    %4209 = vdwg.mxu0
    %v4210 = vadd.f32 %v3935, %v4099
    %v4211 = vadd.f32 %v3936, %v4101
    %v4212 = vadd.f32 %v3937, %v4188
    %v4213 = vadd.f32 %v3938, %v4190
    %v4214 = vadd.f32 %v3939, %v4105
    %v4215 = vadd.f32 %v3940, %v4107
    %v4216 = vadd.f32 %v3941, %v4194
    %v4217 = vadd.f32 %v3942, %v4196
    %v4218 = vadd.f32 %v3943, %v4111
    %v4219 = vadd.f32 %v3944, %v4113
    %v4220 = vadd.f32 %v3945, %v4200
    %v4221 = vadd.f32 %v3946, %v4202
    %v4222 = vadd.f32 %v3947, %v4117
    %v4223 = vadd.f32 %v3948, %v4119
    %v4224 = vadd.f32 %v3949, %v4206
    %v4225 = vadd.f32 %v3950, %v4208
    %4226 = vrot.lane.b32.xlu0 %v2657, 113
    %v4227 = vpop.permute.xlu0 %4226
    %4228 = vrot.lane.b32.xlu0 %v2661, 113
    %v4229 = vpop.permute.xlu0 %4228
    %4230 = vrot.lane.b32.xlu0 %v2665, 113
    %v4231 = vpop.permute.xlu0 %4230
    %4232 = vrot.lane.b32.xlu0 %v2669, 113
    %v4233 = vpop.permute.xlu0 %4232
    %4234 = vrot.lane.b32.xlu0 %v2658, 113
    %v4235 = vpop.permute.xlu0 %4234
    %4236 = vrot.lane.b32.xlu0 %v2662, 113
    %v4237 = vpop.permute.xlu0 %4236
    %4238 = vrot.lane.b32.xlu0 %v2666, 113
    %v4239 = vpop.permute.xlu0 %4238
    %4240 = vrot.lane.b32.xlu0 %v2670, 113
    %v4241 = vpop.permute.xlu0 %4240
    %4242 = vrot.lane.b32.xlu0 %v2659, 113
    %v4243 = vpop.permute.xlu0 %4242
    %4244 = vrot.lane.b32.xlu0 %v2663, 113
    %v4245 = vpop.permute.xlu0 %4244
    %4246 = vrot.lane.b32.xlu0 %v2667, 113
    %v4247 = vpop.permute.xlu0 %4246
    %4248 = vrot.lane.b32.xlu0 %v2671, 113
    %v4249 = vpop.permute.xlu0 %4248
    %4250 = vrot.lane.b32.xlu0 %v2660, 113
    %v4251 = vpop.permute.xlu0 %4250
    %4252 = vrot.lane.b32.xlu0 %v2664, 113
    %v4253 = vpop.permute.xlu0 %4252
    %4254 = vrot.lane.b32.xlu0 %v2668, 113
    %v4255 = vpop.permute.xlu0 %4254
    %4256 = vrot.lane.b32.xlu0 %v2672, 113
    %v4257 = vpop.permute.xlu0 %4256
    %v4258 = vsel %vm1770, %v4243, %v4251
    %v4259 = vsel %vm1770, %v4245, %v4253
    %v4260 = vsel %vm1770, %v4247, %v4255
    %v4261 = vsel %vm1770, %v4249, %v4257
    %v4262 = vsel %vm1770, %v4235, %v4243
    %v4263 = vsel %vm1770, %v4237, %v4245
    %v4264 = vsel %vm1770, %v4239, %v4247
    %v4265 = vsel %vm1770, %v4241, %v4249
    %v4266 = vsel %vm1770, %v4227, %v4235
    %v4267 = vsel %vm1770, %v4229, %v4237
    %v4268 = vsel %vm1770, %v4231, %v4239
    %v4269 = vsel %vm1770, %v4233, %v4241
    %v4270 = vsel %vm1770, %v4251, %v4227
    %v4271 = vsel %vm1770, %v4253, %v4229
    %v4272 = vsel %vm1770, %v4255, %v4231
    %v4273 = vsel %vm1770, %v4257, %v4233
    %v4274 = vmul.f32 %v4266, %v1788
    %v4275 = vmul.f32 %v4262, %v1789
    %v4276 = vmul.f32 %v4258, %v1790
    %v4277 = vmul.f32 %v4270, %v1791
    %v4278 = vmul.f32 %v4267, %v1792
    %v4279 = vmul.f32 %v4263, %v1793
    %v4280 = vmul.f32 %v4259, %v1794
    %v4281 = vmul.f32 %v4271, %v1795
    %v4282 = vmul.f32 %v4268, %v1796
    %v4283 = vmul.f32 %v4264, %v1797
    %v4284 = vmul.f32 %v4260, %v1798
    %v4285 = vmul.f32 %v4272, %v1799
    %v4286 = vmul.f32 %v4269, %v1800
    %v4287 = vmul.f32 %v4265, %v1801
    %v4288 = vmul.f32 %v4261, %v1802
    %v4289 = vmul.f32 %v4273, %v1803
    %s4290 = scalar_lea.vmem [#allocation7], 192
    %v4291 = vld [vmem:[%s4290] sm:$0xff]
    %v4292 = vld [vmem:[%s4290 + $0x8] sm:$0xff]
    %v4293 = vld [vmem:[%s4290 + $0x10] sm:$0xff]
    %v4294 = vld [vmem:[%s4290 + $0x18] sm:$0xff]
    %v4296 = vsel %vm185, %v4291, 0
    %v4299 = vsel %vm185, %v4292, 0
    %v4302 = vsel %vm185, %v4293, 0
    %v4305 = vsel %vm185, %v4294, 0
    %4307 = vmatprep.subr.mxu0 %v4275
    %4308 = vmatpush1.msra.mxu0 %v4274
    %4309 = vmatprep.subr.mxu0 %v4279
    %4310 = vmatpush1.msra.mxu0 %v4278
    %4311 = vmatprep.subr.mxu0 %v4283
    %4312 = vmatpush1.msra.mxu0 %v4282
    %4313 = vmatprep.subr.mxu0 %v4287
    %4314 = vmatpush1.msra.mxu0 %v4286
    %4315 = vmatprep.subr.mxu0 0.0
    %4316 = vmatpush1.msra.mxu0 0.0
    %4317 = vmatprep.subr.mxu0 0.0
    %4318 = vmatpush1.msra.mxu0 0.0
    %4319 = vmatprep.subr.mxu0 0.0
    %4320 = vmatpush1.msra.mxu0 0.0
    %4321 = vmatprep.subr.mxu0 0.0
    %4322 = vmatpush1.msra.mxu0 0.0
    %4323 = vmatprep.subr.mxu0 0.0
    %4324 = vmatpush1.msra.mxu0 0.0
    %4325 = vmatprep.subr.mxu0 0.0
    %4326 = vmatpush1.msra.mxu0 0.0
    %4327 = vmatprep.subr.mxu0 0.0
    %4328 = vmatpush1.msra.mxu0 0.0
    %4329 = vmatprep.subr.mxu0 0.0
    %4330 = vmatpush1.msra.mxu0 0.0
    %4331 = vmatprep.subr.mxu0 0.0
    %4332 = vmatpush1.msra.mxu0 0.0
    %4333 = vmatprep.subr.mxu0 0.0
    %4334 = vmatpush1.msra.mxu0 0.0
    %4335 = vmatprep.subr.mxu0 0.0
    %4336 = vmatpush1.msra.mxu0 0.0
    %4337 = vmatprep.subr.mxu0 0.0
    %4338 = vmatpush1.msra.mxu0 0.0
    %4339 = vmatprep.subr.mxu0 0.0
    %4340 = vmatpush1.msra.mxu0 0.0
    %4341 = vmatprep.subr.mxu0 0.0
    %4342 = vmatpush1.msra.mxu0 0.0
    %4343 = vmatprep.subr.mxu0 0.0
    %4344 = vmatpush1.msra.mxu0 0.0
    %4345 = vmatprep.subr.mxu0 0.0
    %4346 = vmatpush1.msra.mxu0 0.0
    %4347 = vmatprep.subr.mxu0 0.0
    %4348 = vmatpush1.msra.mxu0 0.0
    %4349 = vmatprep.subr.mxu0 0.0
    %4350 = vmatpush1.msra.mxu0 0.0
    %4351 = vmatprep.subr.mxu0 0.0
    %4352 = vmatpush1.msra.mxu0 0.0
    %4353 = vmatprep.subr.mxu0 0.0
    %4354 = vmatpush1.msra.mxu0 0.0
    %4355 = vmatprep.subr.mxu0 0.0
    %4356 = vmatpush1.msra.mxu0 0.0
    %4357 = vmatprep.subr.mxu0 0.0
    %4358 = vmatpush1.msra.mxu0 0.0
    %4359 = vmatprep.subr.mxu0 0.0
    %4360 = vmatpush1.msra.mxu0 0.0
    %4361 = vmatprep.subr.mxu0 0.0
    %4362 = vmatpush1.msra.mxu0 0.0
    %4363 = vmatprep.subr.mxu0 0.0
    %4364 = vmatpush1.msra.mxu0 0.0
    %4365 = vmatprep.subr.mxu0 0.0
    %4366 = vmatpush1.msra.mxu0 0.0
    %4367 = vmatprep.subr.mxu0 0.0
    %4368 = vmatpush1.msra.mxu0 0.0
    %4369 = vmatprep.subr.mxu0 0.0
    %4370 = vmatpush1.msra.mxu0 0.0
    %4371 = vmatprep.mubr.f32.mxu0 0.0
    %4372 = vmatmul.mubr.f32.gmra.mrb[0].mxu0 %v4296
    %v4373 = vpop.f32.mrb[0].mxu0
    %v4374 = vadd.f32 0.0, %v4373
    %v4375 = vpop.f32.mrb[0].mxu0
    %v4376 = vadd.f32 0.0, %v4375
    %4377 = vmatprep.mubr.f32.mxu0 0.0
    %4378 = vmatmul.mubr.f32.gmra.mrb[0].mxu0 %v4299
    %v4379 = vpop.f32.mrb[0].mxu0
    %v4380 = vadd.f32 0.0, %v4379
    %v4381 = vpop.f32.mrb[0].mxu0
    %v4382 = vadd.f32 0.0, %v4381
    %4383 = vmatprep.mubr.f32.mxu0 0.0
    %4384 = vmatmul.mubr.f32.gmra.mrb[0].mxu0 %v4302
    %v4385 = vpop.f32.mrb[0].mxu0
    %v4386 = vadd.f32 0.0, %v4385
    %v4387 = vpop.f32.mrb[0].mxu0
    %v4388 = vadd.f32 0.0, %v4387
    %4389 = vmatprep.mubr.f32.mxu0 0.0
    %4390 = vmatmul.mubr.f32.gmra.mrb[0].mxu0 %v4305
    %v4391 = vpop.f32.mrb[0].mxu0
    %v4392 = vadd.f32 0.0, %v4391
    %v4393 = vpop.f32.mrb[0].mxu0
    %v4394 = vadd.f32 0.0, %v4393
    %4395 = vdwg.mxu0
    %4396 = vmatprep.subr.mxu0 %v4277
    %4397 = vmatpush1.msra.mxu0 %v4276
    %4398 = vmatprep.subr.mxu0 %v4281
    %4399 = vmatpush1.msra.mxu0 %v4280
    %4400 = vmatprep.subr.mxu0 %v4285
    %4401 = vmatpush1.msra.mxu0 %v4284
    %4402 = vmatprep.subr.mxu0 %v4289
    %4403 = vmatpush1.msra.mxu0 %v4288
    %4404 = vmatprep.subr.mxu0 0.0
    %4405 = vmatpush1.msra.mxu0 0.0
    %4406 = vmatprep.subr.mxu0 0.0
    %4407 = vmatpush1.msra.mxu0 0.0
    %4408 = vmatprep.subr.mxu0 0.0
    %4409 = vmatpush1.msra.mxu0 0.0
    %4410 = vmatprep.subr.mxu0 0.0
    %4411 = vmatpush1.msra.mxu0 0.0
    %4412 = vmatprep.subr.mxu0 0.0
    %4413 = vmatpush1.msra.mxu0 0.0
    %4414 = vmatprep.subr.mxu0 0.0
    %4415 = vmatpush1.msra.mxu0 0.0
    %4416 = vmatprep.subr.mxu0 0.0
    %4417 = vmatpush1.msra.mxu0 0.0
    %4418 = vmatprep.subr.mxu0 0.0
    %4419 = vmatpush1.msra.mxu0 0.0
    %4420 = vmatprep.subr.mxu0 0.0
    %4421 = vmatpush1.msra.mxu0 0.0
    %4422 = vmatprep.subr.mxu0 0.0
    %4423 = vmatpush1.msra.mxu0 0.0
    %4424 = vmatprep.subr.mxu0 0.0
    %4425 = vmatpush1.msra.mxu0 0.0
    %4426 = vmatprep.subr.mxu0 0.0
    %4427 = vmatpush1.msra.mxu0 0.0
    %4428 = vmatprep.subr.mxu0 0.0
    %4429 = vmatpush1.msra.mxu0 0.0
    %4430 = vmatprep.subr.mxu0 0.0
    %4431 = vmatpush1.msra.mxu0 0.0
    %4432 = vmatprep.subr.mxu0 0.0
    %4433 = vmatpush1.msra.mxu0 0.0
    %4434 = vmatprep.subr.mxu0 0.0
    %4435 = vmatpush1.msra.mxu0 0.0
    %4436 = vmatprep.subr.mxu0 0.0
    %4437 = vmatpush1.msra.mxu0 0.0
    %4438 = vmatprep.subr.mxu0 0.0
    %4439 = vmatpush1.msra.mxu0 0.0
    %4440 = vmatprep.subr.mxu0 0.0
    %4441 = vmatpush1.msra.mxu0 0.0
    %4442 = vmatprep.subr.mxu0 0.0
    %4443 = vmatpush1.msra.mxu0 0.0
    %4444 = vmatprep.subr.mxu0 0.0
    %4445 = vmatpush1.msra.mxu0 0.0
    %4446 = vmatprep.subr.mxu0 0.0
    %4447 = vmatpush1.msra.mxu0 0.0
    %4448 = vmatprep.subr.mxu0 0.0
    %4449 = vmatpush1.msra.mxu0 0.0
    %4450 = vmatprep.subr.mxu0 0.0
    %4451 = vmatpush1.msra.mxu0 0.0
    %4452 = vmatprep.subr.mxu0 0.0
    %4453 = vmatpush1.msra.mxu0 0.0
    %4454 = vmatprep.subr.mxu0 0.0
    %4455 = vmatpush1.msra.mxu0 0.0
    %4456 = vmatprep.subr.mxu0 0.0
    %4457 = vmatpush1.msra.mxu0 0.0
    %4458 = vmatprep.subr.mxu0 0.0
    %4459 = vmatpush1.msra.mxu0 0.0
    %4460 = vmatprep.mubr.f32.mxu0 0.0
    %4461 = vmatmul.mubr.f32.gmra.mrb[0].mxu0 %v4296
    %v4462 = vpop.f32.mrb[0].mxu0
    %v4463 = vadd.f32 0.0, %v4462
    %v4464 = vpop.f32.mrb[0].mxu0
    %v4465 = vadd.f32 0.0, %v4464
    %4466 = vmatprep.mubr.f32.mxu0 0.0
    %4467 = vmatmul.mubr.f32.gmra.mrb[0].mxu0 %v4299
    %v4468 = vpop.f32.mrb[0].mxu0
    %v4469 = vadd.f32 0.0, %v4468
    %v4470 = vpop.f32.mrb[0].mxu0
    %v4471 = vadd.f32 0.0, %v4470
    %4472 = vmatprep.mubr.f32.mxu0 0.0
    %4473 = vmatmul.mubr.f32.gmra.mrb[0].mxu0 %v4302
    %v4474 = vpop.f32.mrb[0].mxu0
    %v4475 = vadd.f32 0.0, %v4474
    %v4476 = vpop.f32.mrb[0].mxu0
    %v4477 = vadd.f32 0.0, %v4476
    %4478 = vmatprep.mubr.f32.mxu0 0.0
    %4479 = vmatmul.mubr.f32.gmra.mrb[0].mxu0 %v4305
    %v4480 = vpop.f32.mrb[0].mxu0
    %v4481 = vadd.f32 0.0, %v4480
    %v4482 = vpop.f32.mrb[0].mxu0
    %v4483 = vadd.f32 0.0, %v4482
    %4484 = vdwg.mxu0
    %v4485 = vadd.f32 %v4210, %v4374
    %v4486 = vadd.f32 %v4211, %v4376
    %v4487 = vadd.f32 %v4212, %v4463
    %v4488 = vadd.f32 %v4213, %v4465
    %v4489 = vadd.f32 %v4214, %v4380
    %v4490 = vadd.f32 %v4215, %v4382
    %v4491 = vadd.f32 %v4216, %v4469
    %v4492 = vadd.f32 %v4217, %v4471
    %v4493 = vadd.f32 %v4218, %v4386
    %v4494 = vadd.f32 %v4219, %v4388
    %v4495 = vadd.f32 %v4220, %v4475
    %v4496 = vadd.f32 %v4221, %v4477
    %v4497 = vadd.f32 %v4222, %v4392
    %v4498 = vadd.f32 %v4223, %v4394
    %v4499 = vadd.f32 %v4224, %v4481
    %v4500 = vadd.f32 %v4225, %v4483
    %4501 = vrot.lane.b32.xlu0 %v2657, 112
    %v4502 = vpop.permute.xlu0 %4501
    %4503 = vrot.lane.b32.xlu0 %v2661, 112
    %v4504 = vpop.permute.xlu0 %4503
    %4505 = vrot.lane.b32.xlu0 %v2665, 112
    %v4506 = vpop.permute.xlu0 %4505
    %4507 = vrot.lane.b32.xlu0 %v2669, 112
    %v4508 = vpop.permute.xlu0 %4507
    %4509 = vrot.lane.b32.xlu0 %v2658, 112
    %v4510 = vpop.permute.xlu0 %4509
    %4511 = vrot.lane.b32.xlu0 %v2662, 112
    %v4512 = vpop.permute.xlu0 %4511
    %4513 = vrot.lane.b32.xlu0 %v2666, 112
    %v4514 = vpop.permute.xlu0 %4513
    %4515 = vrot.lane.b32.xlu0 %v2670, 112
    %v4516 = vpop.permute.xlu0 %4515
    %4517 = vrot.lane.b32.xlu0 %v2659, 112
    %v4518 = vpop.permute.xlu0 %4517
    %4519 = vrot.lane.b32.xlu0 %v2663, 112
    %v4520 = vpop.permute.xlu0 %4519
    %4521 = vrot.lane.b32.xlu0 %v2667, 112
    %v4522 = vpop.permute.xlu0 %4521
    %4523 = vrot.lane.b32.xlu0 %v2671, 112
    %v4524 = vpop.permute.xlu0 %4523
    %4525 = vrot.lane.b32.xlu0 %v2660, 112
    %v4526 = vpop.permute.xlu0 %4525
    %4527 = vrot.lane.b32.xlu0 %v2664, 112
    %v4528 = vpop.permute.xlu0 %4527
    %4529 = vrot.lane.b32.xlu0 %v2668, 112
    %v4530 = vpop.permute.xlu0 %4529
    %4531 = vrot.lane.b32.xlu0 %v2672, 112
    %v4532 = vpop.permute.xlu0 %4531
    %v4533 = vsel %vm2063, %v4518, %v4526
    %v4534 = vsel %vm2063, %v4520, %v4528
    %v4535 = vsel %vm2063, %v4522, %v4530
    %v4536 = vsel %vm2063, %v4524, %v4532
    %v4537 = vsel %vm2063, %v4510, %v4518
    %v4538 = vsel %vm2063, %v4512, %v4520
    %v4539 = vsel %vm2063, %v4514, %v4522
    %v4540 = vsel %vm2063, %v4516, %v4524
    %v4541 = vsel %vm2063, %v4502, %v4510
    %v4542 = vsel %vm2063, %v4504, %v4512
    %v4543 = vsel %vm2063, %v4506, %v4514
    %v4544 = vsel %vm2063, %v4508, %v4516
    %v4545 = vsel %vm2063, %v4526, %v4502
    %v4546 = vsel %vm2063, %v4528, %v4504
    %v4547 = vsel %vm2063, %v4530, %v4506
    %v4548 = vsel %vm2063, %v4532, %v4508
    %v4549 = vmul.f32 %v4541, %v2081
    %v4550 = vmul.f32 %v4537, %v2082
    %v4551 = vmul.f32 %v4533, %v2083
    %v4552 = vmul.f32 %v4545, %v2084
    %v4553 = vmul.f32 %v4542, %v2085
    %v4554 = vmul.f32 %v4538, %v2086
    %v4555 = vmul.f32 %v4534, %v2087
    %v4556 = vmul.f32 %v4546, %v2088
    %v4557 = vmul.f32 %v4543, %v2089
    %v4558 = vmul.f32 %v4539, %v2090
    %v4559 = vmul.f32 %v4535, %v2091
    %v4560 = vmul.f32 %v4547, %v2092
    %v4561 = vmul.f32 %v4544, %v2093
    %v4562 = vmul.f32 %v4540, %v2094
    %v4563 = vmul.f32 %v4536, %v2095
    %v4564 = vmul.f32 %v4548, %v2096
    %s4565 = scalar_lea.vmem [#allocation7], 224
    %v4566 = vld [vmem:[%s4565] sm:$0xff]
    %v4567 = vld [vmem:[%s4565 + $0x8] sm:$0xff]
    %v4568 = vld [vmem:[%s4565 + $0x10] sm:$0xff]
    %v4569 = vld [vmem:[%s4565 + $0x18] sm:$0xff]
    %v4571 = vsel %vm185, %v4566, 0
    %v4574 = vsel %vm185, %v4567, 0
    %v4577 = vsel %vm185, %v4568, 0
    %v4580 = vsel %vm185, %v4569, 0
    %4582 = vmatprep.subr.mxu0 %v4550
    %4583 = vmatpush1.msra.mxu0 %v4549
    %4584 = vmatprep.subr.mxu0 %v4554
    %4585 = vmatpush1.msra.mxu0 %v4553
    %4586 = vmatprep.subr.mxu0 %v4558
    %4587 = vmatpush1.msra.mxu0 %v4557
    %4588 = vmatprep.subr.mxu0 %v4562
    %4589 = vmatpush1.msra.mxu0 %v4561
    %4590 = vmatprep.subr.mxu0 0.0
    %4591 = vmatpush1.msra.mxu0 0.0
    %4592 = vmatprep.subr.mxu0 0.0
    %4593 = vmatpush1.msra.mxu0 0.0
    %4594 = vmatprep.subr.mxu0 0.0
    %4595 = vmatpush1.msra.mxu0 0.0
    %4596 = vmatprep.subr.mxu0 0.0
    %4597 = vmatpush1.msra.mxu0 0.0
    %4598 = vmatprep.subr.mxu0 0.0
    %4599 = vmatpush1.msra.mxu0 0.0
    %4600 = vmatprep.subr.mxu0 0.0
    %4601 = vmatpush1.msra.mxu0 0.0
    %4602 = vmatprep.subr.mxu0 0.0
    %4603 = vmatpush1.msra.mxu0 0.0
    %4604 = vmatprep.subr.mxu0 0.0
    %4605 = vmatpush1.msra.mxu0 0.0
    %4606 = vmatprep.subr.mxu0 0.0
    %4607 = vmatpush1.msra.mxu0 0.0
    %4608 = vmatprep.subr.mxu0 0.0
    %4609 = vmatpush1.msra.mxu0 0.0
    %4610 = vmatprep.subr.mxu0 0.0
    %4611 = vmatpush1.msra.mxu0 0.0
    %4612 = vmatprep.subr.mxu0 0.0
    %4613 = vmatpush1.msra.mxu0 0.0
    %4614 = vmatprep.subr.mxu0 0.0
    %4615 = vmatpush1.msra.mxu0 0.0
    %4616 = vmatprep.subr.mxu0 0.0
    %4617 = vmatpush1.msra.mxu0 0.0
    %4618 = vmatprep.subr.mxu0 0.0
    %4619 = vmatpush1.msra.mxu0 0.0
    %4620 = vmatprep.subr.mxu0 0.0
    %4621 = vmatpush1.msra.mxu0 0.0
    %4622 = vmatprep.subr.mxu0 0.0
    %4623 = vmatpush1.msra.mxu0 0.0
    %4624 = vmatprep.subr.mxu0 0.0
    %4625 = vmatpush1.msra.mxu0 0.0
    %4626 = vmatprep.subr.mxu0 0.0
    %4627 = vmatpush1.msra.mxu0 0.0
    %4628 = vmatprep.subr.mxu0 0.0
    %4629 = vmatpush1.msra.mxu0 0.0
    %4630 = vmatprep.subr.mxu0 0.0
    %4631 = vmatpush1.msra.mxu0 0.0
    %4632 = vmatprep.subr.mxu0 0.0
    %4633 = vmatpush1.msra.mxu0 0.0
    %4634 = vmatprep.subr.mxu0 0.0
    %4635 = vmatpush1.msra.mxu0 0.0
    %4636 = vmatprep.subr.mxu0 0.0
    %4637 = vmatpush1.msra.mxu0 0.0
    %4638 = vmatprep.subr.mxu0 0.0
    %4639 = vmatpush1.msra.mxu0 0.0
    %4640 = vmatprep.subr.mxu0 0.0
    %4641 = vmatpush1.msra.mxu0 0.0
    %4642 = vmatprep.subr.mxu0 0.0
    %4643 = vmatpush1.msra.mxu0 0.0
    %4644 = vmatprep.subr.mxu0 0.0
    %4645 = vmatpush1.msra.mxu0 0.0
    %4646 = vmatprep.mubr.f32.mxu0 0.0
    %4647 = vmatmul.mubr.f32.gmra.mrb[0].mxu0 %v4571
    %v4648 = vpop.f32.mrb[0].mxu0
    %v4649 = vadd.f32 0.0, %v4648
    %v4650 = vpop.f32.mrb[0].mxu0
    %v4651 = vadd.f32 0.0, %v4650
    %4652 = vmatprep.mubr.f32.mxu0 0.0
    %4653 = vmatmul.mubr.f32.gmra.mrb[0].mxu0 %v4574
    %v4654 = vpop.f32.mrb[0].mxu0
    %v4655 = vadd.f32 0.0, %v4654
    %v4656 = vpop.f32.mrb[0].mxu0
    %v4657 = vadd.f32 0.0, %v4656
    %4658 = vmatprep.mubr.f32.mxu0 0.0
    %4659 = vmatmul.mubr.f32.gmra.mrb[0].mxu0 %v4577
    %v4660 = vpop.f32.mrb[0].mxu0
    %v4661 = vadd.f32 0.0, %v4660
    %v4662 = vpop.f32.mrb[0].mxu0
    %v4663 = vadd.f32 0.0, %v4662
    %4664 = vmatprep.mubr.f32.mxu0 0.0
    %4665 = vmatmul.mubr.f32.gmra.mrb[0].mxu0 %v4580
    %v4666 = vpop.f32.mrb[0].mxu0
    %v4667 = vadd.f32 0.0, %v4666
    %v4668 = vpop.f32.mrb[0].mxu0
    %v4669 = vadd.f32 0.0, %v4668
    %4670 = vdwg.mxu0
    %4671 = vmatprep.subr.mxu0 %v4552
    %4672 = vmatpush1.msra.mxu0 %v4551
    %4673 = vmatprep.subr.mxu0 %v4556
    %4674 = vmatpush1.msra.mxu0 %v4555
    %4675 = vmatprep.subr.mxu0 %v4560
    %4676 = vmatpush1.msra.mxu0 %v4559
    %4677 = vmatprep.subr.mxu0 %v4564
    %4678 = vmatpush1.msra.mxu0 %v4563
    %4679 = vmatprep.subr.mxu0 0.0
    %4680 = vmatpush1.msra.mxu0 0.0
    %4681 = vmatprep.subr.mxu0 0.0
    %4682 = vmatpush1.msra.mxu0 0.0
    %4683 = vmatprep.subr.mxu0 0.0
    %4684 = vmatpush1.msra.mxu0 0.0
    %4685 = vmatprep.subr.mxu0 0.0
    %4686 = vmatpush1.msra.mxu0 0.0
    %4687 = vmatprep.subr.mxu0 0.0
    %4688 = vmatpush1.msra.mxu0 0.0
    %4689 = vmatprep.subr.mxu0 0.0
    %4690 = vmatpush1.msra.mxu0 0.0
    %4691 = vmatprep.subr.mxu0 0.0
    %4692 = vmatpush1.msra.mxu0 0.0
    %4693 = vmatprep.subr.mxu0 0.0
    %4694 = vmatpush1.msra.mxu0 0.0
    %4695 = vmatprep.subr.mxu0 0.0
    %4696 = vmatpush1.msra.mxu0 0.0
    %4697 = vmatprep.subr.mxu0 0.0
    %4698 = vmatpush1.msra.mxu0 0.0
    %4699 = vmatprep.subr.mxu0 0.0
    %4700 = vmatpush1.msra.mxu0 0.0
    %4701 = vmatprep.subr.mxu0 0.0
    %4702 = vmatpush1.msra.mxu0 0.0
    %4703 = vmatprep.subr.mxu0 0.0
    %4704 = vmatpush1.msra.mxu0 0.0
    %4705 = vmatprep.subr.mxu0 0.0
    %4706 = vmatpush1.msra.mxu0 0.0
    %4707 = vmatprep.subr.mxu0 0.0
    %4708 = vmatpush1.msra.mxu0 0.0
    %4709 = vmatprep.subr.mxu0 0.0
    %4710 = vmatpush1.msra.mxu0 0.0
    %4711 = vmatprep.subr.mxu0 0.0
    %4712 = vmatpush1.msra.mxu0 0.0
    %4713 = vmatprep.subr.mxu0 0.0
    %4714 = vmatpush1.msra.mxu0 0.0
    %4715 = vmatprep.subr.mxu0 0.0
    %4716 = vmatpush1.msra.mxu0 0.0
    %4717 = vmatprep.subr.mxu0 0.0
    %4718 = vmatpush1.msra.mxu0 0.0
    %4719 = vmatprep.subr.mxu0 0.0
    %4720 = vmatpush1.msra.mxu0 0.0
    %4721 = vmatprep.subr.mxu0 0.0
    %4722 = vmatpush1.msra.mxu0 0.0
    %4723 = vmatprep.subr.mxu0 0.0
    %4724 = vmatpush1.msra.mxu0 0.0
    %4725 = vmatprep.subr.mxu0 0.0
    %4726 = vmatpush1.msra.mxu0 0.0
    %4727 = vmatprep.subr.mxu0 0.0
    %4728 = vmatpush1.msra.mxu0 0.0
    %4729 = vmatprep.subr.mxu0 0.0
    %4730 = vmatpush1.msra.mxu0 0.0
    %4731 = vmatprep.subr.mxu0 0.0
    %4732 = vmatpush1.msra.mxu0 0.0
    %4733 = vmatprep.subr.mxu0 0.0
    %4734 = vmatpush1.msra.mxu0 0.0
    %4735 = vmatprep.mubr.f32.mxu0 0.0
    %4736 = vmatmul.mubr.f32.gmra.mrb[0].mxu0 %v4571
    %v4737 = vpop.f32.mrb[0].mxu0
    %v4738 = vadd.f32 0.0, %v4737
    %v4739 = vpop.f32.mrb[0].mxu0
    %v4740 = vadd.f32 0.0, %v4739
    %4741 = vmatprep.mubr.f32.mxu0 0.0
    %4742 = vmatmul.mubr.f32.gmra.mrb[0].mxu0 %v4574
    %v4743 = vpop.f32.mrb[0].mxu0
    %v4744 = vadd.f32 0.0, %v4743
    %v4745 = vpop.f32.mrb[0].mxu0
    %v4746 = vadd.f32 0.0, %v4745
    %4747 = vmatprep.mubr.f32.mxu0 0.0
    %4748 = vmatmul.mubr.f32.gmra.mrb[0].mxu0 %v4577
    %v4749 = vpop.f32.mrb[0].mxu0
    %v4750 = vadd.f32 0.0, %v4749
    %v4751 = vpop.f32.mrb[0].mxu0
    %v4752 = vadd.f32 0.0, %v4751
    %4753 = vmatprep.mubr.f32.mxu0 0.0
    %4754 = vmatmul.mubr.f32.gmra.mrb[0].mxu0 %v4580
    %v4755 = vpop.f32.mrb[0].mxu0
    %v4756 = vadd.f32 0.0, %v4755
    %v4757 = vpop.f32.mrb[0].mxu0
    %v4758 = vadd.f32 0.0, %v4757
    %4759 = vdwg.mxu0
    %v4760 = vadd.f32 %v4485, %v4649
    %v4761 = vadd.f32 %v4486, %v4651
    %v4762 = vadd.f32 %v4487, %v4738
    %v4763 = vadd.f32 %v4488, %v4740
    %v4764 = vadd.f32 %v4489, %v4655
    %v4765 = vadd.f32 %v4490, %v4657
    %v4766 = vadd.f32 %v4491, %v4744
    %v4767 = vadd.f32 %v4492, %v4746
    %v4768 = vadd.f32 %v4493, %v4661
    %v4769 = vadd.f32 %v4494, %v4663
    %v4770 = vadd.f32 %v4495, %v4750
    %v4771 = vadd.f32 %v4496, %v4752
    %v4772 = vadd.f32 %v4497, %v4667
    %v4773 = vadd.f32 %v4498, %v4669
    %v4774 = vadd.f32 %v4499, %v4756
    %v4775 = vadd.f32 %v4500, %v4758
    %4776 = vrot.lane.b32.xlu0 %v2657, 111
    %v4777 = vpop.permute.xlu0 %4776
    %4778 = vrot.lane.b32.xlu0 %v2661, 111
    %v4779 = vpop.permute.xlu0 %4778
    %4780 = vrot.lane.b32.xlu0 %v2665, 111
    %v4781 = vpop.permute.xlu0 %4780
    %4782 = vrot.lane.b32.xlu0 %v2669, 111
    %v4783 = vpop.permute.xlu0 %4782
    %4784 = vrot.lane.b32.xlu0 %v2658, 111
    %v4785 = vpop.permute.xlu0 %4784
    %4786 = vrot.lane.b32.xlu0 %v2662, 111
    %v4787 = vpop.permute.xlu0 %4786
    %4788 = vrot.lane.b32.xlu0 %v2666, 111
    %v4789 = vpop.permute.xlu0 %4788
    %4790 = vrot.lane.b32.xlu0 %v2670, 111
    %v4791 = vpop.permute.xlu0 %4790
    %4792 = vrot.lane.b32.xlu0 %v2659, 111
    %v4793 = vpop.permute.xlu0 %4792
    %4794 = vrot.lane.b32.xlu0 %v2663, 111
    %v4795 = vpop.permute.xlu0 %4794
    %4796 = vrot.lane.b32.xlu0 %v2667, 111
    %v4797 = vpop.permute.xlu0 %4796
    %4798 = vrot.lane.b32.xlu0 %v2671, 111
    %v4799 = vpop.permute.xlu0 %4798
    %4800 = vrot.lane.b32.xlu0 %v2660, 111
    %v4801 = vpop.permute.xlu0 %4800
    %4802 = vrot.lane.b32.xlu0 %v2664, 111
    %v4803 = vpop.permute.xlu0 %4802
    %4804 = vrot.lane.b32.xlu0 %v2668, 111
    %v4805 = vpop.permute.xlu0 %4804
    %4806 = vrot.lane.b32.xlu0 %v2672, 111
    %v4807 = vpop.permute.xlu0 %4806
    %v4808 = vsel %vm2356, %v4793, %v4801
    %v4809 = vsel %vm2356, %v4795, %v4803
    %v4810 = vsel %vm2356, %v4797, %v4805
    %v4811 = vsel %vm2356, %v4799, %v4807
    %v4812 = vsel %vm2356, %v4785, %v4793
    %v4813 = vsel %vm2356, %v4787, %v4795
    %v4814 = vsel %vm2356, %v4789, %v4797
    %v4815 = vsel %vm2356, %v4791, %v4799
    %v4816 = vsel %vm2356, %v4777, %v4785
    %v4817 = vsel %vm2356, %v4779, %v4787
    %v4818 = vsel %vm2356, %v4781, %v4789
    %v4819 = vsel %vm2356, %v4783, %v4791
    %v4820 = vsel %vm2356, %v4801, %v4777
    %v4821 = vsel %vm2356, %v4803, %v4779
    %v4822 = vsel %vm2356, %v4805, %v4781
    %v4823 = vsel %vm2356, %v4807, %v4783
    %v4824 = vmul.f32 %v4816, %v2374
    %v4825 = vmul.f32 %v4812, %v2375
    %v4826 = vmul.f32 %v4808, %v2376
    %v4827 = vmul.f32 %v4820, %v2377
    %v4828 = vmul.f32 %v4817, %v2378
    %v4829 = vmul.f32 %v4813, %v2379
    %v4830 = vmul.f32 %v4809, %v2380
    %v4831 = vmul.f32 %v4821, %v2381
    %v4832 = vmul.f32 %v4818, %v2382
    %v4833 = vmul.f32 %v4814, %v2383
    %v4834 = vmul.f32 %v4810, %v2384
    %v4835 = vmul.f32 %v4822, %v2385
    %v4836 = vmul.f32 %v4819, %v2386
    %v4837 = vmul.f32 %v4815, %v2387
    %v4838 = vmul.f32 %v4811, %v2388
    %v4839 = vmul.f32 %v4823, %v2389
    %s4840 = scalar_lea.vmem [#allocation7], 256
    %v4841 = vld [vmem:[%s4840] sm:$0xff]
    %v4842 = vld [vmem:[%s4840 + $0x8] sm:$0xff]
    %v4843 = vld [vmem:[%s4840 + $0x10] sm:$0xff]
    %v4844 = vld [vmem:[%s4840 + $0x18] sm:$0xff]
    %v4846 = vsel %vm185, %v4841, 0
    %v4849 = vsel %vm185, %v4842, 0
    %v4852 = vsel %vm185, %v4843, 0
    %v4855 = vsel %vm185, %v4844, 0
    %4857 = vmatprep.subr.mxu0 %v4825
    %4858 = vmatpush1.msra.mxu0 %v4824
    %4859 = vmatprep.subr.mxu0 %v4829
    %4860 = vmatpush1.msra.mxu0 %v4828
    %4861 = vmatprep.subr.mxu0 %v4833
    %4862 = vmatpush1.msra.mxu0 %v4832
    %4863 = vmatprep.subr.mxu0 %v4837
    %4864 = vmatpush1.msra.mxu0 %v4836
    %4865 = vmatprep.subr.mxu0 0.0
    %4866 = vmatpush1.msra.mxu0 0.0
    %4867 = vmatprep.subr.mxu0 0.0
    %4868 = vmatpush1.msra.mxu0 0.0
    %4869 = vmatprep.subr.mxu0 0.0
    %4870 = vmatpush1.msra.mxu0 0.0
    %4871 = vmatprep.subr.mxu0 0.0
    %4872 = vmatpush1.msra.mxu0 0.0
    %4873 = vmatprep.subr.mxu0 0.0
    %4874 = vmatpush1.msra.mxu0 0.0
    %4875 = vmatprep.subr.mxu0 0.0
    %4876 = vmatpush1.msra.mxu0 0.0
    %4877 = vmatprep.subr.mxu0 0.0
    %4878 = vmatpush1.msra.mxu0 0.0
    %4879 = vmatprep.subr.mxu0 0.0
    %4880 = vmatpush1.msra.mxu0 0.0
    %4881 = vmatprep.subr.mxu0 0.0
    %4882 = vmatpush1.msra.mxu0 0.0
    %4883 = vmatprep.subr.mxu0 0.0
    %4884 = vmatpush1.msra.mxu0 0.0
    %4885 = vmatprep.subr.mxu0 0.0
    %4886 = vmatpush1.msra.mxu0 0.0
    %4887 = vmatprep.subr.mxu0 0.0
    %4888 = vmatpush1.msra.mxu0 0.0
    %4889 = vmatprep.subr.mxu0 0.0
    %4890 = vmatpush1.msra.mxu0 0.0
    %4891 = vmatprep.subr.mxu0 0.0
    %4892 = vmatpush1.msra.mxu0 0.0
    %4893 = vmatprep.subr.mxu0 0.0
    %4894 = vmatpush1.msra.mxu0 0.0
    %4895 = vmatprep.subr.mxu0 0.0
    %4896 = vmatpush1.msra.mxu0 0.0
    %4897 = vmatprep.subr.mxu0 0.0
    %4898 = vmatpush1.msra.mxu0 0.0
    %4899 = vmatprep.subr.mxu0 0.0
    %4900 = vmatpush1.msra.mxu0 0.0
    %4901 = vmatprep.subr.mxu0 0.0
    %4902 = vmatpush1.msra.mxu0 0.0
    %4903 = vmatprep.subr.mxu0 0.0
    %4904 = vmatpush1.msra.mxu0 0.0
    %4905 = vmatprep.subr.mxu0 0.0
    %4906 = vmatpush1.msra.mxu0 0.0
    %4907 = vmatprep.subr.mxu0 0.0
    %4908 = vmatpush1.msra.mxu0 0.0
    %4909 = vmatprep.subr.mxu0 0.0
    %4910 = vmatpush1.msra.mxu0 0.0
    %4911 = vmatprep.subr.mxu0 0.0
    %4912 = vmatpush1.msra.mxu0 0.0
    %4913 = vmatprep.subr.mxu0 0.0
    %4914 = vmatpush1.msra.mxu0 0.0
    %4915 = vmatprep.subr.mxu0 0.0
    %4916 = vmatpush1.msra.mxu0 0.0
    %4917 = vmatprep.subr.mxu0 0.0
    %4918 = vmatpush1.msra.mxu0 0.0
    %4919 = vmatprep.subr.mxu0 0.0
    %4920 = vmatpush1.msra.mxu0 0.0
    %4921 = vmatprep.mubr.f32.mxu0 0.0
    %4922 = vmatmul.mubr.f32.gmra.mrb[0].mxu0 %v4846
    %v4923 = vpop.f32.mrb[0].mxu0
    %v4924 = vadd.f32 0.0, %v4923
    %v4925 = vpop.f32.mrb[0].mxu0
    %v4926 = vadd.f32 0.0, %v4925
    %4927 = vmatprep.mubr.f32.mxu0 0.0
    %4928 = vmatmul.mubr.f32.gmra.mrb[0].mxu0 %v4849
    %v4929 = vpop.f32.mrb[0].mxu0
    %v4930 = vadd.f32 0.0, %v4929
    %v4931 = vpop.f32.mrb[0].mxu0
    %v4932 = vadd.f32 0.0, %v4931
    %4933 = vmatprep.mubr.f32.mxu0 0.0
    %4934 = vmatmul.mubr.f32.gmra.mrb[0].mxu0 %v4852
    %v4935 = vpop.f32.mrb[0].mxu0
    %v4936 = vadd.f32 0.0, %v4935
    %v4937 = vpop.f32.mrb[0].mxu0
    %v4938 = vadd.f32 0.0, %v4937
    %4939 = vmatprep.mubr.f32.mxu0 0.0
    %4940 = vmatmul.mubr.f32.gmra.mrb[0].mxu0 %v4855
    %v4941 = vpop.f32.mrb[0].mxu0
    %v4942 = vadd.f32 0.0, %v4941
    %v4943 = vpop.f32.mrb[0].mxu0
    %v4944 = vadd.f32 0.0, %v4943
    %4945 = vdwg.mxu0
    %4946 = vmatprep.subr.mxu0 %v4827
    %4947 = vmatpush1.msra.mxu0 %v4826
    %4948 = vmatprep.subr.mxu0 %v4831
    %4949 = vmatpush1.msra.mxu0 %v4830
    %4950 = vmatprep.subr.mxu0 %v4835
    %4951 = vmatpush1.msra.mxu0 %v4834
    %4952 = vmatprep.subr.mxu0 %v4839
    %4953 = vmatpush1.msra.mxu0 %v4838
    %4954 = vmatprep.subr.mxu0 0.0
    %4955 = vmatpush1.msra.mxu0 0.0
    %4956 = vmatprep.subr.mxu0 0.0
    %4957 = vmatpush1.msra.mxu0 0.0
    %4958 = vmatprep.subr.mxu0 0.0
    %4959 = vmatpush1.msra.mxu0 0.0
    %4960 = vmatprep.subr.mxu0 0.0
    %4961 = vmatpush1.msra.mxu0 0.0
    %4962 = vmatprep.subr.mxu0 0.0
    %4963 = vmatpush1.msra.mxu0 0.0
    %4964 = vmatprep.subr.mxu0 0.0
    %4965 = vmatpush1.msra.mxu0 0.0
    %4966 = vmatprep.subr.mxu0 0.0
    %4967 = vmatpush1.msra.mxu0 0.0
    %4968 = vmatprep.subr.mxu0 0.0
    %4969 = vmatpush1.msra.mxu0 0.0
    %4970 = vmatprep.subr.mxu0 0.0
    %4971 = vmatpush1.msra.mxu0 0.0
    %4972 = vmatprep.subr.mxu0 0.0
    %4973 = vmatpush1.msra.mxu0 0.0
    %4974 = vmatprep.subr.mxu0 0.0
    %4975 = vmatpush1.msra.mxu0 0.0
    %4976 = vmatprep.subr.mxu0 0.0
    %4977 = vmatpush1.msra.mxu0 0.0
    %4978 = vmatprep.subr.mxu0 0.0
    %4979 = vmatpush1.msra.mxu0 0.0
    %4980 = vmatprep.subr.mxu0 0.0
    %4981 = vmatpush1.msra.mxu0 0.0
    %4982 = vmatprep.subr.mxu0 0.0
    %4983 = vmatpush1.msra.mxu0 0.0
    %4984 = vmatprep.subr.mxu0 0.0
    %4985 = vmatpush1.msra.mxu0 0.0
    %4986 = vmatprep.subr.mxu0 0.0
    %4987 = vmatpush1.msra.mxu0 0.0
    %4988 = vmatprep.subr.mxu0 0.0
    %4989 = vmatpush1.msra.mxu0 0.0
    %4990 = vmatprep.subr.mxu0 0.0
    %4991 = vmatpush1.msra.mxu0 0.0
    %4992 = vmatprep.subr.mxu0 0.0
    %4993 = vmatpush1.msra.mxu0 0.0
    %4994 = vmatprep.subr.mxu0 0.0
    %4995 = vmatpush1.msra.mxu0 0.0
    %4996 = vmatprep.subr.mxu0 0.0
    %4997 = vmatpush1.msra.mxu0 0.0
    %4998 = vmatprep.subr.mxu0 0.0
    %4999 = vmatpush1.msra.mxu0 0.0
    %5000 = vmatprep.subr.mxu0 0.0
    %5001 = vmatpush1.msra.mxu0 0.0
    %5002 = vmatprep.subr.mxu0 0.0
    %5003 = vmatpush1.msra.mxu0 0.0
    %5004 = vmatprep.subr.mxu0 0.0
    %5005 = vmatpush1.msra.mxu0 0.0
    %5006 = vmatprep.subr.mxu0 0.0
    %5007 = vmatpush1.msra.mxu0 0.0
    %5008 = vmatprep.subr.mxu0 0.0
    %5009 = vmatpush1.msra.mxu0 0.0
    %5010 = vmatprep.mubr.f32.mxu0 0.0
    %5011 = vmatmul.mubr.f32.gmra.mrb[0].mxu0 %v4846
    %v5012 = vpop.f32.mrb[0].mxu0
    %v5013 = vadd.f32 0.0, %v5012
    %v5014 = vpop.f32.mrb[0].mxu0
    %v5015 = vadd.f32 0.0, %v5014
    %5016 = vmatprep.mubr.f32.mxu0 0.0
    %5017 = vmatmul.mubr.f32.gmra.mrb[0].mxu0 %v4849
    %v5018 = vpop.f32.mrb[0].mxu0
    %v5019 = vadd.f32 0.0, %v5018
    %v5020 = vpop.f32.mrb[0].mxu0
    %v5021 = vadd.f32 0.0, %v5020
    %5022 = vmatprep.mubr.f32.mxu0 0.0
    %5023 = vmatmul.mubr.f32.gmra.mrb[0].mxu0 %v4852
    %v5024 = vpop.f32.mrb[0].mxu0
    %v5025 = vadd.f32 0.0, %v5024
    %v5026 = vpop.f32.mrb[0].mxu0
    %v5027 = vadd.f32 0.0, %v5026
    %5028 = vmatprep.mubr.f32.mxu0 0.0
    %5029 = vmatmul.mubr.f32.gmra.mrb[0].mxu0 %v4855
    %v5030 = vpop.f32.mrb[0].mxu0
    %v5031 = vadd.f32 0.0, %v5030
    %v5032 = vpop.f32.mrb[0].mxu0
    %v5033 = vadd.f32 0.0, %v5032
    %5034 = vdwg.mxu0
    %v5035 = vadd.f32 %v4760, %v4924
    %v5036 = vadd.f32 %v4761, %v4926
    %v5037 = vadd.f32 %v4762, %v5013
    %v5038 = vadd.f32 %v4763, %v5015
    %v5039 = vadd.f32 %v4764, %v4930
    %v5040 = vadd.f32 %v4765, %v4932
    %v5041 = vadd.f32 %v4766, %v5019
    %v5042 = vadd.f32 %v4767, %v5021
    %v5043 = vadd.f32 %v4768, %v4936
    %v5044 = vadd.f32 %v4769, %v4938
    %v5045 = vadd.f32 %v4770, %v5025
    %v5046 = vadd.f32 %v4771, %v5027
    %v5047 = vadd.f32 %v4772, %v4942
    %v5048 = vadd.f32 %v4773, %v4944
    %v5049 = vadd.f32 %v4774, %v5031
    %v5050 = vadd.f32 %v4775, %v5033
    %v5051 = vld [vmem:[%s5] sm:$0xff]
    %v5052 = vld [vmem:[%s5 + $0x8] sm:$0xff]
    %v5053 = vld [vmem:[%s5 + $0x10] sm:$0xff]
    %v5054 = vld [vmem:[%s5 + $0x18] sm:$0xff]
    %5056 = vset.pattern.permute.xlu0 0
    %5057 = vperm.xlu0 %5056, %v5051
    %v5058 = vpop.permute.xlu0 %5057
    %5061 = vset.pattern.permute.xlu0 0
    %5062 = vperm.xlu0 %5061, %v5052
    %v5063 = vpop.permute.xlu0 %5062
    %5066 = vset.pattern.permute.xlu0 0
    %5067 = vperm.xlu0 %5066, %v5053
    %v5068 = vpop.permute.xlu0 %5067
    %5071 = vset.pattern.permute.xlu0 0
    %5072 = vperm.xlu0 %5071, %v5054
    %v5073 = vpop.permute.xlu0 %5072
    %v5075 = vadd.f32 %v5035, %v5058
    %v5076 = vadd.f32 %v5036, %v5058
    %v5077 = vadd.f32 %v5037, %v5058
    %v5078 = vadd.f32 %v5038, %v5058
    %v5079 = vadd.f32 %v5039, %v5063
    %v5080 = vadd.f32 %v5040, %v5063
    %v5081 = vadd.f32 %v5041, %v5063
    %v5082 = vadd.f32 %v5042, %v5063
    %v5083 = vadd.f32 %v5043, %v5068
    %v5084 = vadd.f32 %v5044, %v5068
    %v5085 = vadd.f32 %v5045, %v5068
    %v5086 = vadd.f32 %v5046, %v5068
    %v5087 = vadd.f32 %v5047, %v5073
    %v5088 = vadd.f32 %v5048, %v5073
    %v5089 = vadd.f32 %v5049, %v5073
    %v5090 = vadd.f32 %v5050, %v5073
    %v5091 = vadd.f32 %v5075, %v77
    %v5092 = vadd.f32 %v5076, %v78
    %v5093 = vadd.f32 %v5077, %v79
    %v5094 = vadd.f32 %v5078, %v80
    %v5095 = vadd.f32 %v5079, %v81
    %v5096 = vadd.f32 %v5080, %v82
    %v5097 = vadd.f32 %v5081, %v83
    %v5098 = vadd.f32 %v5082, %v84
    %v5099 = vadd.f32 %v5083, %v85
    %v5100 = vadd.f32 %v5084, %v86
    %v5101 = vadd.f32 %v5085, %v87
    %v5102 = vadd.f32 %v5086, %v88
    %v5103 = vadd.f32 %v5087, %v89
    %v5104 = vadd.f32 %v5088, %v90
    %v5105 = vadd.f32 %v5089, %v91
    %v5106 = vadd.f32 %v5090, %v92
    %v5107 = vmax.f32 %v5091, 0.0
    %v5108 = vmax.f32 %v5092, 0.0
    %v5109 = vmax.f32 %v5093, 0.0
    %v5110 = vmax.f32 %v5094, 0.0
    %v5111 = vmax.f32 %v5095, 0.0
    %v5112 = vmax.f32 %v5096, 0.0
    %v5113 = vmax.f32 %v5097, 0.0
    %v5114 = vmax.f32 %v5098, 0.0
    %v5115 = vmax.f32 %v5099, 0.0
    %v5116 = vmax.f32 %v5100, 0.0
    %v5117 = vmax.f32 %v5101, 0.0
    %v5118 = vmax.f32 %v5102, 0.0
    %v5119 = vmax.f32 %v5103, 0.0
    %v5120 = vmax.f32 %v5104, 0.0
    %v5121 = vmax.f32 %v5105, 0.0
    %v5122 = vmax.f32 %v5106, 0.0
    %v5123 = vadd.f32 %v5107, %v5108
    %5124 = vadd.xlane.f32.xlu0 %v5123
    %v5125 = vpop.xlane.xlu0 %5124
    %v5126 = vadd.f32 %v5111, %v5112
    %5127 = vadd.xlane.f32.xlu0 %v5126
    %v5128 = vpop.xlane.xlu0 %5127
    %v5129 = vadd.f32 %v5115, %v5116
    %5130 = vadd.xlane.f32.xlu0 %v5129
    %v5131 = vpop.xlane.xlu0 %5130
    %v5132 = vadd.f32 %v5119, %v5120
    %5133 = vadd.xlane.f32.xlu0 %v5132
    %v5134 = vpop.xlane.xlu0 %5133
    %v5135 = vrcp.pop 256.0
    %v5136 = vmul.f32 %v5125, %v5135
    %v5137 = vmul.f32 %v5128, %v5135
    %v5138 = vmul.f32 %v5131, %v5135
    %v5139 = vmul.f32 %v5134, %v5135
    %v5140 = vld [vmem:[%s6] sm:$0xff]
    %v5141 = vld [vmem:[%s6 + $0x8] sm:$0xff]
    %v5142 = vld [vmem:[%s6 + $0x10] sm:$0xff]
    %v5143 = vld [vmem:[%s6 + $0x18] sm:$0xff]
    %v5144 = vmul.f32 %v5140, %v5136
    %v5145 = vmul.f32 %v5141, %v5137
    %v5146 = vmul.f32 %v5142, %v5138
    %v5147 = vmul.f32 %v5143, %v5139
    %vm5148 = vcmask 15360
    %v5149 = vsel %vm5148, %v5144, 0.0
    %v5150 = vsel %vm5148, %v5145, 0.0
    %v5151 = vadd.f32 %v5149, %v5150
    %v5152 = vsel %vm5148, %v5146, 0.0
    %v5153 = vadd.f32 %v5151, %v5152
    %v5154 = vsel %vm5148, %v5147, 0.0
    %v5155 = vadd.f32 %v5153, %v5154
    %v5156 = vrot.slane %v5155, 4
    %v5157 = vadd.f32 %v5155, %v5156
    %v5158 = vrot.slane %v5157, 2
    %v5159 = vadd.f32 %v5157, %v5158
    %v5160 = vrot.slane %v5159, 1
    %v5161 = vadd.f32 %v5159, %v5160
    %v5162 = vld [vmem:[%s7] sm:$0x1]
    %v5163 = vadd.f32 %v5161, %v5162
    %v5164 = vmax.f32 %v5163, 0.0
    %v5165 = vld [vmem:[%s8] sm:$0xff]
    %v5166 = vld [vmem:[%s8 + $0x8] sm:$0xff]
    %v5167 = vld [vmem:[%s8 + $0x10] sm:$0xff]
    %v5168 = vld [vmem:[%s8 + $0x18] sm:$0xff]
    %v5169 = vlaneseq
    %v5170 = vshrl.u32 %v5169, 7
    %v5171 = vsub.s32 0, %v5170
    %v5172 = vrot.slane %v5164, %v5171
    %v5173 = vmul.f32 %v5165, %v5172
    %v5174 = vmul.f32 %v5166, %v5172
    %v5175 = vmul.f32 %v5167, %v5172
    %v5176 = vmul.f32 %v5168, %v5172
    %v5177 = vsel %vm5148, %v5173, 0.0
    %5178 = vadd.xlane.f32.xlu0 %v5177
    %v5179 = vpop.xlane.xlu0 %5178
    %v5180 = vsel %vm5148, %v5174, 0.0
    %5181 = vadd.xlane.f32.xlu0 %v5180
    %v5182 = vpop.xlane.xlu0 %5181
    %v5183 = vsel %vm5148, %v5175, 0.0
    %5184 = vadd.xlane.f32.xlu0 %v5183
    %v5185 = vpop.xlane.xlu0 %5184
    %v5186 = vsel %vm5148, %v5176, 0.0
    %5187 = vadd.xlane.f32.xlu0 %v5186
    %v5188 = vpop.xlane.xlu0 %5187
    %v5189 = vld [vmem:[%s9] sm:$0xff]
    %v5190 = vld [vmem:[%s9 + $0x8] sm:$0xff]
    %v5191 = vld [vmem:[%s9 + $0x10] sm:$0xff]
    %v5192 = vld [vmem:[%s9 + $0x18] sm:$0xff]
    %v5193 = vadd.f32 %v5179, %v5189
    %v5194 = vadd.f32 %v5182, %v5190
    %v5195 = vadd.f32 %v5185, %v5191
    %v5196 = vadd.f32 %v5188, %v5192
    %v5197 = vxor.u32 %v5193, 2147483648
    %v5198 = vxor.u32 %v5194, 2147483648
    %v5199 = vxor.u32 %v5195, 2147483648
    %v5200 = vxor.u32 %v5196, 2147483648
    %v5201 = vmul.f32 %v5197, 1.442695
    %v5202 = vpow.pop %v5201
    %v5203 = vmul.f32 %v5198, 1.442695
    %v5204 = vpow.pop %v5203
    %v5205 = vmul.f32 %v5199, 1.442695
    %v5206 = vpow.pop %v5205
    %v5207 = vmul.f32 %v5200, 1.442695
    %v5208 = vpow.pop %v5207
    %v5209 = vadd.f32 %v5202, 1.0
    %v5210 = vadd.f32 %v5204, 1.0
    %v5211 = vadd.f32 %v5206, 1.0
    %v5212 = vadd.f32 %v5208, 1.0
    %v5213 = vrcp.pop %v5209
    %v5214 = vmul.f32 1.0, %v5213
    %v5215 = vrcp.pop %v5210
    %v5216 = vmul.f32 1.0, %v5215
    %v5217 = vrcp.pop %v5211
    %v5218 = vmul.f32 1.0, %v5217
    %v5219 = vrcp.pop %v5212
    %v5220 = vmul.f32 1.0, %v5219
    %5222 = vset.pattern.permute.xlu0 0
    %5223 = vperm.xlu0 %5222, %v5214
    %v5224 = vpop.permute.xlu0 %5223
    %5227 = vset.pattern.permute.xlu0 0
    %5228 = vperm.xlu0 %5227, %v5216
    %v5229 = vpop.permute.xlu0 %5228
    %5232 = vset.pattern.permute.xlu0 0
    %5233 = vperm.xlu0 %5232, %v5218
    %v5234 = vpop.permute.xlu0 %5233
    %5237 = vset.pattern.permute.xlu0 0
    %5238 = vperm.xlu0 %5237, %v5220
    %v5239 = vpop.permute.xlu0 %5238
    %v5241 = vmul.f32 %v5107, %v5224
    %v5242 = vmul.f32 %v5108, %v5224
    %v5243 = vmul.f32 %v5111, %v5229
    %v5244 = vmul.f32 %v5112, %v5229
    %v5245 = vmul.f32 %v5115, %v5234
    %v5246 = vmul.f32 %v5116, %v5234
    %v5247 = vmul.f32 %v5119, %v5239
    %v5248 = vmul.f32 %v5120, %v5239
    %5249 = vst [vmem:[#allocation8] sm:$0xff] %v5241
    %5250 = vst [vmem:[#allocation8 + $0x8] sm:$0xff] %v5242
    %5251 = vst [vmem:[#allocation8 + $0x20] sm:$0xff] %v5243
    %5252 = vst [vmem:[#allocation8 + $0x28] sm:$0xff] %v5244
    %5253 = vst [vmem:[#allocation8 + $0x40] sm:$0xff] %v5245
    %5254 = vst [vmem:[#allocation8 + $0x48] sm:$0xff] %v5246
    %5255 = vst [vmem:[#allocation8 + $0x60] sm:$0xff] %v5247
    %5256 = vst [vmem:[#allocation8 + $0x68] sm:$0xff] %v5248
    %v5257 = vadd.f32 %v5109, %v5110
    %5258 = vadd.xlane.f32.xlu0 %v5257
    %v5259 = vpop.xlane.xlu0 %5258
    %v5260 = vadd.f32 %v5113, %v5114
    %5261 = vadd.xlane.f32.xlu0 %v5260
    %v5262 = vpop.xlane.xlu0 %5261
    %v5263 = vadd.f32 %v5117, %v5118
    %5264 = vadd.xlane.f32.xlu0 %v5263
    %v5265 = vpop.xlane.xlu0 %5264
    %v5266 = vadd.f32 %v5121, %v5122
    %5267 = vadd.xlane.f32.xlu0 %v5266
    %v5268 = vpop.xlane.xlu0 %5267
    %v5269 = vmul.f32 %v5259, %v5135
    %v5270 = vmul.f32 %v5262, %v5135
    %v5271 = vmul.f32 %v5265, %v5135
    %v5272 = vmul.f32 %v5268, %v5135
    %v5273 = vld [vmem:[%s6] sm:$0xff]
    %v5274 = vld [vmem:[%s6 + $0x8] sm:$0xff]
    %v5275 = vld [vmem:[%s6 + $0x10] sm:$0xff]
    %v5276 = vld [vmem:[%s6 + $0x18] sm:$0xff]
    %v5277 = vmul.f32 %v5273, %v5269
    %v5278 = vmul.f32 %v5274, %v5270
    %v5279 = vmul.f32 %v5275, %v5271
    %v5280 = vmul.f32 %v5276, %v5272
    %v5281 = vsel %vm5148, %v5277, 0.0
    %v5282 = vsel %vm5148, %v5278, 0.0
    %v5283 = vadd.f32 %v5281, %v5282
    %v5284 = vsel %vm5148, %v5279, 0.0
    %v5285 = vadd.f32 %v5283, %v5284
    %v5286 = vsel %vm5148, %v5280, 0.0
    %v5287 = vadd.f32 %v5285, %v5286
    %v5288 = vrot.slane %v5287, 4
    %v5289 = vadd.f32 %v5287, %v5288
    %v5290 = vrot.slane %v5289, 2
    %v5291 = vadd.f32 %v5289, %v5290
    %v5292 = vrot.slane %v5291, 1
    %v5293 = vadd.f32 %v5291, %v5292
    %v5294 = vld [vmem:[%s7] sm:$0x1]
    %v5295 = vadd.f32 %v5293, %v5294
    %v5296 = vmax.f32 %v5295, 0.0
    %v5297 = vld [vmem:[%s8] sm:$0xff]
    %v5298 = vld [vmem:[%s8 + $0x8] sm:$0xff]
    %v5299 = vld [vmem:[%s8 + $0x10] sm:$0xff]
    %v5300 = vld [vmem:[%s8 + $0x18] sm:$0xff]
    %v5301 = vlaneseq
    %v5302 = vshrl.u32 %v5301, 7
    %v5303 = vsub.s32 0, %v5302
    %v5304 = vrot.slane %v5296, %v5303
    %v5305 = vmul.f32 %v5297, %v5304
    %v5306 = vmul.f32 %v5298, %v5304
    %v5307 = vmul.f32 %v5299, %v5304
    %v5308 = vmul.f32 %v5300, %v5304
    %v5309 = vsel %vm5148, %v5305, 0.0
    %5310 = vadd.xlane.f32.xlu0 %v5309
    %v5311 = vpop.xlane.xlu0 %5310
    %v5312 = vsel %vm5148, %v5306, 0.0
    %5313 = vadd.xlane.f32.xlu0 %v5312
    %v5314 = vpop.xlane.xlu0 %5313
    %v5315 = vsel %vm5148, %v5307, 0.0
    %5316 = vadd.xlane.f32.xlu0 %v5315
    %v5317 = vpop.xlane.xlu0 %5316
    %v5318 = vsel %vm5148, %v5308, 0.0
    %5319 = vadd.xlane.f32.xlu0 %v5318
    %v5320 = vpop.xlane.xlu0 %5319
    %v5321 = vld [vmem:[%s9] sm:$0xff]
    %v5322 = vld [vmem:[%s9 + $0x8] sm:$0xff]
    %v5323 = vld [vmem:[%s9 + $0x10] sm:$0xff]
    %v5324 = vld [vmem:[%s9 + $0x18] sm:$0xff]
    %v5325 = vadd.f32 %v5311, %v5321
    %v5326 = vadd.f32 %v5314, %v5322
    %v5327 = vadd.f32 %v5317, %v5323
    %v5328 = vadd.f32 %v5320, %v5324
    %v5329 = vxor.u32 %v5325, 2147483648
    %v5330 = vxor.u32 %v5326, 2147483648
    %v5331 = vxor.u32 %v5327, 2147483648
    %v5332 = vxor.u32 %v5328, 2147483648
    %v5333 = vmul.f32 %v5329, 1.442695
    %v5334 = vpow.pop %v5333
    %v5335 = vmul.f32 %v5330, 1.442695
    %v5336 = vpow.pop %v5335
    %v5337 = vmul.f32 %v5331, 1.442695
    %v5338 = vpow.pop %v5337
    %v5339 = vmul.f32 %v5332, 1.442695
    %v5340 = vpow.pop %v5339
    %v5341 = vadd.f32 %v5334, 1.0
    %v5342 = vadd.f32 %v5336, 1.0
    %v5343 = vadd.f32 %v5338, 1.0
    %v5344 = vadd.f32 %v5340, 1.0
    %v5345 = vrcp.pop %v5341
    %v5346 = vmul.f32 1.0, %v5345
    %v5347 = vrcp.pop %v5342
    %v5348 = vmul.f32 1.0, %v5347
    %v5349 = vrcp.pop %v5343
    %v5350 = vmul.f32 1.0, %v5349
    %v5351 = vrcp.pop %v5344
    %v5352 = vmul.f32 1.0, %v5351
    %5354 = vset.pattern.permute.xlu0 0
    %5355 = vperm.xlu0 %5354, %v5346
    %v5356 = vpop.permute.xlu0 %5355
    %5359 = vset.pattern.permute.xlu0 0
    %5360 = vperm.xlu0 %5359, %v5348
    %v5361 = vpop.permute.xlu0 %5360
    %5364 = vset.pattern.permute.xlu0 0
    %5365 = vperm.xlu0 %5364, %v5350
    %v5366 = vpop.permute.xlu0 %5365
    %5369 = vset.pattern.permute.xlu0 0
    %5370 = vperm.xlu0 %5369, %v5352
    %v5371 = vpop.permute.xlu0 %5370
    %v5373 = vmul.f32 %v5109, %v5356
    %v5374 = vmul.f32 %v5110, %v5356
    %v5375 = vmul.f32 %v5113, %v5361
    %v5376 = vmul.f32 %v5114, %v5361
    %v5377 = vmul.f32 %v5117, %v5366
    %v5378 = vmul.f32 %v5118, %v5366
    %v5379 = vmul.f32 %v5121, %v5371
    %v5380 = vmul.f32 %v5122, %v5371
    %5381 = vst [vmem:[#allocation8 + $0x10] sm:$0xff] %v5373
    %5382 = vst [vmem:[#allocation8 + $0x18] sm:$0xff] %v5374
    %5383 = vst [vmem:[#allocation8 + $0x30] sm:$0xff] %v5375
    %5384 = vst [vmem:[#allocation8 + $0x38] sm:$0xff] %v5376
    %5385 = vst [vmem:[#allocation8 + $0x50] sm:$0xff] %v5377
    %5386 = vst [vmem:[#allocation8 + $0x58] sm:$0xff] %v5378
    %5387 = vst [vmem:[#allocation8 + $0x70] sm:$0xff] %v5379
    %5388 = vst [vmem:[#allocation8 + $0x78] sm:$0xff] %v5380
    // Predicated region
    $region54: #{tpu_custom_call.1} parent=1 // pred_check
      _
    $region55: #{tpu_custom_call.1} parent=1 // pred_check_branch
      %5390 = sbr.rel (0) target = $region57
    $region56: #{tpu_custom_call.1} parent=1 // pred_region
      %s5392 = ssub.s32 2048, 2048
      %5393 = vsyncadd [#allocation4], %s5392
      %s5394 = sshll.u32 [#allocation8], 4
      %s5395 = int_to_ptr.vmem [resolvable:$true] %s5394
      %5400 = dma.vmem_to_hbm [thread:$0]  %s5395, 2048, %s10, [#allocation4], 512, 512, 32
    $region57: #{tpu_custom_call.1} parent=1 // pred_fallthru
      _
    // Predicated region
    $region58: #{tpu_custom_call.1} parent=1 // pred_check
      _
    $region59: #{tpu_custom_call.1} parent=1 // pred_check_branch
      %5402 = sbr.rel (0) target = $region61
    $region60: #{tpu_custom_call.1} parent=1 // pred_region
      %5403 = dma.done [#allocation4], 2048
    $region61: #{tpu_custom_call.1} parent=1 // pred_fallthru
      _
    %5404 = vsyncpa [#allocation3], 1
    %5405 = vsyncpa [#allocation6], 1
    %5406 = vsyncpa [#allocation4], 1

</llo_original>
